<compile_context>
chip_gen: v7x
topology: tpu7x:2x2x1
jax: 0.10.0
libtpu: 0.0.40
codegen_flags: <defaults>
</compile_context>

<pallas_src>
import functools
import math

import numpy as np

import jax
import jax.numpy as jnp
from jax.experimental import pallas as pl
from jax.experimental.pallas import tpu as pltpu

MASK_VALUE = -9.0e15


# ---------------------------------------------------------------------------
# Kernel 1: per-head linear  h = x @ W^T + b  (hoisted out of the attention).
# Layer 0 consumes the shared 2-D x (index_map ignores the head axis) so the
# feature matrix is never broadcast/materialized H times.
# ---------------------------------------------------------------------------
def linear_head_kernel(x_ref, w_ref, b_ref, out_ref):
    x = x_ref[...]
    if x.ndim == 3:                      # (1, TM, Din) per-head input
        x = x[0]
    x = x.astype(jnp.float32)            # (TM, Din)
    w = w_ref[0]                         # (Din, Dout)  (already W^T)
    b = b_ref[0]                         # (1, Dout)
    h = jnp.dot(x, w, preferred_element_type=jnp.float32) + b
    out_ref[0] = h.astype(out_ref.dtype)  # bf16 operand for aggregation


def linear_heads(x, w_t, b, *, tm_lin):
    H, Din, Dout = w_t.shape
    if x.ndim == 2:                      # layer 0: shared x, no broadcast
        npad = x.shape[0]
        x_spec = pl.BlockSpec((tm_lin, Din), lambda h, i: (i, 0))
    else:                                # hidden layers: per-head features
        npad = x.shape[1]
        x_spec = pl.BlockSpec((1, tm_lin, Din), lambda h, i: (h, i, 0))
    assert npad % tm_lin == 0
    return pl.pallas_call(
        linear_head_kernel,
        out_shape=jax.ShapeDtypeStruct((H, npad, Dout), jnp.bfloat16),
        grid_spec=pltpu.PrefetchScalarGridSpec(
            num_scalar_prefetch=0,
            grid=(H, npad // tm_lin),
            in_specs=[
                x_spec,
                pl.BlockSpec((1, Din, Dout), lambda h, i: (h, 0, 0)),
                pl.BlockSpec((1, 1, Dout), lambda h, i: (h, 0, 0)),
            ],
            out_specs=pl.BlockSpec((1, tm_lin, Dout), lambda h, i: (h, i, 0)),
        ),
        compiler_params=pltpu.CompilerParams(
            dimension_semantics=("parallel", "parallel")),
    )(x, w_t, b)


# ---------------------------------------------------------------------------
# Kernel 2: block-sparse flash-style masked-softmax attention + aggregation
# (+ fused ELU for hidden layers, fused mean-over-heads for the last layer).
#
# Grid: a single flattened axis over the active (row_tile, head, col_block)
# triples, ordered row-tile outermost / head middle / col innermost.  The
# scalar-prefetched schedule arrays drive all index_maps; first/last flags
# delimit each online-softmax segment.  The last-layer output block (i, 0)
# only changes when the row tile changes, so it is written back exactly once,
# after the final head's final column block (see review concern on grid
# reordering — do not reorder the schedule without re-checking this).
# ---------------------------------------------------------------------------
def attn_agg_kernel(rows_ref, heads_ref, cols_ref, first_ref, last_ref,
                    s_ref, h_ref, out_ref,
                    m_sc, l_sc, acc_sc, head_sc, *,
                    last_layer, num_head, tk):
    step = pl.program_id(0)
    is_first = first_ref[step] == 1
    is_last = last_ref[step] == 1
    h_idx = heads_ref[step]
    k_blk = cols_ref[step]

    @pl.when(is_first)
    def _():
        m_sc[...] = jnp.full_like(m_sc, -jnp.inf)
        l_sc[...] = jnp.zeros_like(l_sc)
        acc_sc[...] = jnp.zeros_like(acc_sc)

    # online softmax over the active column blocks (scores pre-masked, bf16)
    s = s_ref[0].astype(jnp.float32)                         # (TM, TK)
    m_prev = m_sc[...]
    m_new = jnp.maximum(m_prev, jnp.max(s, axis=-1, keepdims=True))
    alpha = jnp.exp(m_prev - m_new)
    p = jnp.exp(s - m_new)
    l_sc[...] = alpha * l_sc[...] + jnp.sum(p, axis=-1, keepdims=True)
    # h is fully resident in VMEM (one block per head); slice the column tile.
    start = pl.multiple_of(k_blk * tk, tk)
    h_tile = h_ref[0, pl.ds(start, tk), :]                   # (TK, Dout) bf16
    acc_sc[...] = alpha * acc_sc[...] + jnp.dot(
        p.astype(h_tile.dtype), h_tile, preferred_element_type=jnp.float32)
    m_sc[...] = m_new

    @pl.when(is_last)
    def _():
        o = acc_sc[...] * pl.reciprocal(l_sc[...], approx=True)
        if last_layer:
            # fused mean over heads: accumulate in persistent VMEM scratch,
            # single store on the final head of this row tile.
            @pl.when(h_idx == 0)
            def _():
                head_sc[...] = o

            @pl.when(h_idx > 0)
            def _():
                head_sc[...] = head_sc[...] + o

            @pl.when(h_idx == num_head - 1)
            def _():
                out_ref[...] = (head_sc[...] * (1.0 / num_head)).astype(out_ref.dtype)
        else:
            # ELU(alpha=1); clamp before exp so the unselected branch never
            # evaluates exp of a large positive value.
            o = jnp.where(o > 0, o, jnp.exp(jnp.minimum(o, 0.0)) - 1.0)
            out_ref[0] = o.astype(out_ref.dtype)


def attention_aggregate(scores, h_all, schedule, *, last_layer, num_head, tm, tk):
    rows, heads, cols, first, last = schedule
    H, npad, _ = scores.shape
    Dout = h_all.shape[-1]
    assert npad % tm == 0 and npad % tk == 0
    n_steps = int(rows.shape[0])          # static

    if last_layer:
        out_shape = jax.ShapeDtypeStruct((npad, Dout), jnp.float32)
        out_spec = pl.BlockSpec((tm, Dout), lambda s, r, h, c, f, l: (r[s], 0))
        out_bytes = npad * Dout * 4
    else:
        out_shape = jax.ShapeDtypeStruct((H, npad, Dout), jnp.float32)
        out_spec = pl.BlockSpec((1, tm, Dout),
                                lambda s, r, h, c, f, l: (h[s], r[s], 0))
        out_bytes = H * npad * Dout * 4

    cost = pl.CostEstimate(
        flops=2 * n_steps * tm * tk * Dout + 6 * n_steps * tm * tk,
        transcendentals=n_steps * tm * tk,
        bytes_accessed=n_steps * tm * tk * 2 + H * npad * Dout * 2 + out_bytes,
    )

    kernel = functools.partial(attn_agg_kernel, last_layer=last_layer,
                               num_head=num_head, tk=tk)
    return pl.pallas_call(
        kernel,
        out_shape=out_shape,
        grid_spec=pltpu.PrefetchScalarGridSpec(
            num_scalar_prefetch=5,                 # rows, heads, cols, first, last
            grid=(n_steps,),
            in_specs=[
                # pre-masked bf16 scores, only active blocks are streamed
                pl.BlockSpec((1, tm, tk),
                             lambda s, r, h, c, f, l: (h[s], r[s], c[s])),
                # h resident in VMEM: full (Npad, Dout) block per head
                pl.BlockSpec((1, npad, Dout),
                             lambda s, r, h, c, f, l: (h[s], 0, 0)),
            ],
            out_specs=out_spec,
            scratch_shapes=[
                pltpu.VMEM((tm, 1), jnp.float32),     # running max  m
                pltpu.VMEM((tm, 1), jnp.float32),     # running sum  l
                pltpu.VMEM((tm, Dout), jnp.float32),  # online-softmax acc
                pltpu.VMEM((tm, Dout), jnp.float32),  # head-mean acc (last layer)
            ],
        ),
        compiler_params=pltpu.CompilerParams(
            # flattened sparse grid with output-block revisits -> arbitrary
            dimension_semantics=("arbitrary",),
            # <= v7x's 64 MiB physical VMEM; raise toward 96-112 MiB on
            # v5e/v6e when using very large column tiles (tk=4096-8192).
            vmem_limit_bytes=48 * 1024 * 1024,
        ),
        cost_estimate=cost,
    )(rows, heads, cols, first, last, scores, h_all)


# ---------------------------------------------------------------------------
# Host-side, one-time preprocessing of the static adjacency: block-sparse
# schedule (flattened active-block list + segment first/last flags).
# ---------------------------------------------------------------------------
def build_block_schedule(adj_pad, num_head, tm, tk):
    adj_np = np.asarray(adj_pad)
    npad = adj_np.shape[0]
    ni, nk = npad // tm, npad // tk
    # Fold the identity in so every row tile owns >= 1 active block: keeps
    # every output block written (finite) even for padded / isolated rows.
    a = adj_np.copy()
    np.fill_diagonal(a, 1.0)
    active = a.reshape(ni, tm, nk, tk).sum(axis=(1, 3)) > 0      # (ni, nk)
    rows, heads, cols, first, last = [], [], [], [], []
    for i in range(ni):
        ks = np.nonzero(active[i])[0]
        for h in range(num_head):
            for j, k in enumerate(ks):
                rows.append(i)
                heads.append(h)
                cols.append(int(k))
                first.append(1 if j == 0 else 0)
                last.append(1 if j == len(ks) - 1 else 0)
    as_i32 = lambda v: jnp.asarray(np.asarray(v, dtype=np.int32))
    return (as_i32(rows), as_i32(heads), as_i32(cols), as_i32(first),
            as_i32(last))


# ---------------------------------------------------------------------------
# Parameters (arrays only in the pytree; layer metadata stays Python/static).
# Masked bf16 scores are pre-folded ONCE here (eval semantics: att_pattern
# and adj are fixed), so the forward never re-materializes them.
# ---------------------------------------------------------------------------
def pad_to(arr, target, axis, value=0.0):
    pad = target - arr.shape[axis]
    if pad == 0:
        return arr
    widths = [(0, 0)] * arr.ndim
    widths[axis] = (0, pad)
    return jnp.pad(arr, widths, constant_values=value)


def xavier_uniform(key, shape):
    fan_in, fan_out = shape[-1], shape[-2]
    limit = math.sqrt(6.0 / (fan_in + fan_out))
    return jax.random.uniform(key, shape, jnp.float32, -limit, limit)


def build_params(key, n_layer, in_dim, hidden_dim, class_cardinality,
                 num_head, n_real, npad, adj_pad):
    params = []
    for i in range(n_layer):
        d_in = in_dim if i == 0 else hidden_dim // (2 * i)
        d_out = class_cardinality if i == n_layer - 1 else hidden_dim // (2 * (i + 1))
        key, kw, kb, ka = jax.random.split(key, 4)
        W = xavier_uniform(kw, (num_head, d_out, d_in))    # torch Linear (out, in)
        w_t = jnp.transpose(W, (0, 2, 1))                  # store W^T: (H, d_in, d_out)
        bound = 1.0 / math.sqrt(d_in)
        b = jax.random.uniform(kb, (num_head, 1, d_out), jnp.float32, -bound, bound)
        att = xavier_uniform(ka, (num_head, n_real, n_real))   # att_pattern per head
        att = pad_to(pad_to(att, npad, 1), npad, 2)
        # LeakyReLU(0.2) + adjacency mask folded once -> one bf16 N^2 stream.
        scores = jnp.where(adj_pad[None] > 0,
                           jnp.where(att > 0, att, 0.2 * att),
                           jnp.float32(MASK_VALUE)).astype(jnp.bfloat16)
        params.append(dict(w_t=w_t, b=b, scores=scores))
    return params


# ---------------------------------------------------------------------------
# Full GCNNet forward (last-layer head mean fused in the attention kernel).
# ---------------------------------------------------------------------------
def gcnnet_forward(x_pad, target_X, target, params, schedule, *,
                   num_head, n_real, tm, tk, tm_lin):
    n_layer = len(params)                                  # static under jit
    feats = x_pad                                          # (Npad, Din), shared across heads
    y_pad = None
    for i, p in enumerate(params):
        last = (i == n_layer - 1)                          # Python bool (static)
        h_all = linear_heads(feats, p["w_t"], p["b"], tm_lin=tm_lin)
        res = attention_aggregate(p["scores"], h_all, schedule,
                                  last_layer=last, num_head=num_head,
                                  tm=tm, tk=tk)
        if last:
            y_pad = res                                    # (Npad, C) head mean fused
        else:
            feats = res                                    # (H, Npad, Dout), ELU fused
            # TODO(synk): feature dropout (dropout_rate) is identity in eval.
            # TODO(synk): attention dropout (attention_dropout_rate) is identity in eval.
    y = y_pad[:n_real]
    logits = y[target_X]
    logp = logits - jax.scipy.special.logsumexp(logits, axis=-1, keepdims=True)
    loss = -jnp.mean(jnp.take_along_axis(logp, target[:, None], axis=-1))
    return loss, logits, y


# ---------------------------------------------------------------------------
# Plain-JAX reference (mirror of the PyTorch eval forward) for validation.
# ---------------------------------------------------------------------------
def reference_forward(x, params, target_X, target, *, num_head, n_real):
    feats = jnp.broadcast_to(x[None], (num_head,) + x.shape)
    y = None
    for i, p in enumerate(params):
        last = (i == len(params) - 1)
        h = jnp.einsum("hnd,hdo->hno", feats, p["w_t"]) + p["b"]
        s = p["scores"][:, :n_real, :n_real].astype(jnp.float32)
        att = jax.nn.softmax(s, axis=-1)
        out = jnp.einsum("hnm,hmo->hno", att, h)
        if last:
            y = jnp.mean(out, axis=0)
        else:
            feats = jax.nn.elu(out)
    logits = y[target_X]
    logp = logits - jax.scipy.special.logsumexp(logits, axis=-1, keepdims=True)
    loss = -jnp.mean(jnp.take_along_axis(logp, target[:, None], axis=-1))
    return loss, logits, y


if __name__ == "__main__":
    # small deterministic stand-in for the real N=18405 problem; N is chosen
    # non-tile-aligned on purpose so the padding path is exercised.
    N = 300
    in_dim = 16
    hidden_dim = 32
    class_cardinality = 8
    num_head = 2
    n_layer = 2
    # At the real N=18405 pad to 18432 and use ~TM=512, TK=2048 (scores tile
    # 2 MiB bf16, 4 MiB double-buffered -> fits v7x/v6e/v5e); the self-test
    # keeps small tiles so the grid has several row/col blocks.
    TM, TK = 128, 128
    TM_LIN = 1024          # linear row tile, decoupled from the attention tiles

    tile_lcm = math.lcm(TM, TK)
    Npad = ((N + tile_lcm - 1) // tile_lcm) * tile_lcm
    tm_lin = TM_LIN
    while Npad % tm_lin:
        tm_lin //= 2

    key = jax.random.PRNGKey(0)
    k_x, k_adj, k_p, k_tx, k_t = jax.random.split(key, 5)

    x = jax.random.normal(k_x, (N, in_dim), jnp.float32)
    adj = (jax.random.uniform(k_adj, (N, N)) < 0.05).astype(jnp.float32)
    adj = jnp.maximum(adj, jnp.eye(N, dtype=jnp.float32))   # self loops

    x_pad = pad_to(x, Npad, 0)
    adj_pad = pad_to(pad_to(adj, Npad, 0), Npad, 1)

    params = build_params(k_p, n_layer, in_dim, hidden_dim,
                          class_cardinality, num_head, N, Npad, adj_pad)
    schedule = build_block_schedule(adj_pad, num_head, TM, TK)

    T = 8
    target_X = jax.random.choice(k_tx, N, (T,), replace=False)
    target = jax.random.randint(k_t, (T,), 0, class_cardinality)

    fwd = jax.jit(functools.partial(gcnnet_forward, num_head=num_head,
                                    n_real=N, tm=TM, tk=TK, tm_lin=tm_lin))
    loss, logits_sel, y = fwd(x_pad, target_X, target, params, schedule)
    jax.block_until_ready((loss, logits_sel, y))

    assert y.shape == (N, class_cardinality)
    assert logits_sel.shape == (T, class_cardinality)
    assert bool(jnp.isfinite(loss))
    assert bool(jnp.all(jnp.isfinite(y)))

    # validate against the f32 reference (bf16 scores/h + approx reciprocal
    # introduce ~1% relative error; use a loose but meaningful tolerance)
    loss_ref, _, y_ref = reference_forward(x, params, target_X, target,
                                           num_head=num_head, n_real=N)
    err = float(jnp.max(jnp.abs(y - y_ref)))
    scale = float(jnp.max(jnp.abs(y_ref)))
    assert err <= 0.05 * scale + 0.02, (err, scale)
    assert abs(float(loss) - float(loss_ref)) <= 0.05 * abs(float(loss_ref)) + 0.02

    print("KERNEL_OK")
</pallas_src>

<mosaic_0001>
module attributes {stable_mosaic.version = 11 : i64} {
  func.func @attn_agg_kernel(%arg0: i32, %arg1: memref<18xi32, #tpu.memory_space<smem>>, %arg2: memref<18xi32, #tpu.memory_space<smem>>, %arg3: memref<18xi32, #tpu.memory_space<smem>>, %arg4: memref<18xi32, #tpu.memory_space<smem>>, %arg5: memref<18xi32, #tpu.memory_space<smem>>, %arg6: memref<1x128x128xbf16, #tpu.memory_space<vmem>>, %arg7: memref<1x384x16xbf16, #tpu.memory_space<vmem>>, %arg8: memref<1x128x16xf32, #tpu.memory_space<vmem>>, %arg9: memref<128x1xf32, #tpu.memory_space<vmem>>, %arg10: memref<128x1xf32, #tpu.memory_space<vmem>>, %arg11: memref<128x16xf32, #tpu.memory_space<vmem>>, %arg12: memref<128x16xf32, #tpu.memory_space<vmem>>) attributes {dimension_semantics = [#tpu.dimension_semantics<arbitrary>], iteration_bounds = array<i64: 18>, scalar_prefetch = 5 : i64, scratch_operands = 4 : i64, tpu.core_type = #tpu.core_type<tc>, window_params = [{transform_indices = @transform_0, window_bounds = array<i64: 1, 128, 128>}, {transform_indices = @transform_1, window_bounds = array<i64: 1, 384, 16>}, {transform_indices = @transform_2, window_bounds = array<i64: 1, 128, 16>}]} {
    %0 = arith.index_cast %arg0 : i32 to index
    %1 = memref.load %arg4[%0] : memref<18xi32, #tpu.memory_space<smem>>
    %c1_i32 = arith.constant 1 : i32
    %2 = arith.cmpi eq, %1, %c1_i32 : i32
    %3 = arith.index_cast %arg0 : i32 to index
    %4 = memref.load %arg5[%3] : memref<18xi32, #tpu.memory_space<smem>>
    %c1_i32_0 = arith.constant 1 : i32
    %5 = arith.cmpi eq, %4, %c1_i32_0 : i32
    %6 = arith.index_cast %arg0 : i32 to index
    %7 = memref.load %arg3[%6] : memref<18xi32, #tpu.memory_space<smem>>
    %8 = arith.extui %2 : i1 to i32
    %c0_i32 = arith.constant 0 : i32
    %9 = arith.cmpi ne, %8, %c0_i32 : i32
    scf.if %9 {
      %cst_20 = arith.constant 0xFF800000 : f32
      %43 = vector.broadcast %cst_20 : f32 to vector<128x1xf32>
      %c0_21 = arith.constant 0 : index
      %c0_22 = arith.constant 0 : index
      %44 = vector.load %arg9[%c0_21, %c0_22] : memref<128x1xf32, #tpu.memory_space<vmem>>, vector<128x1xf32>
      tpu.vector_store %arg9[%c0_21, %c0_22], %43 {strides = array<i32>} : memref<128x1xf32, #tpu.memory_space<vmem>>, vector<128x1xf32>,
      %cst_23 = arith.constant 0.000000e+00 : f32
      %45 = vector.broadcast %cst_23 : f32 to vector<128x1xf32>
      %c0_24 = arith.constant 0 : index
      %c0_25 = arith.constant 0 : index
      %46 = vector.load %arg10[%c0_24, %c0_25] : memref<128x1xf32, #tpu.memory_space<vmem>>, vector<128x1xf32>
      tpu.vector_store %arg10[%c0_24, %c0_25], %45 {strides = array<i32>} : memref<128x1xf32, #tpu.memory_space<vmem>>, vector<128x1xf32>,
      %cst_26 = arith.constant 0.000000e+00 : f32
      %47 = vector.broadcast %cst_26 : f32 to vector<128x16xf32>
      %c0_27 = arith.constant 0 : index
      %c0_28 = arith.constant 0 : index
      %48 = vector.load %arg11[%c0_27, %c0_28] : memref<128x16xf32, #tpu.memory_space<vmem>>, vector<128x16xf32>
      tpu.vector_store %arg11[%c0_27, %c0_28], %47 {strides = array<i32>} : memref<128x16xf32, #tpu.memory_space<vmem>>, vector<128x16xf32>,
    } else {
    }
    %c0 = arith.constant 0 : index
    %c0_1 = arith.constant 0 : index
    %c0_2 = arith.constant 0 : index
    %10 = vector.load %arg6[%c0, %c0_1, %c0_2] : memref<1x128x128xbf16, #tpu.memory_space<vmem>>, vector<1x128x128xbf16>
    %11 = vector.shape_cast %10 : vector<1x128x128xbf16> to vector<128x128xbf16>
    %12 = arith.extf %11 : vector<128x128xbf16> to vector<128x128xf32>
    %c0_3 = arith.constant 0 : index
    %c0_4 = arith.constant 0 : index
    %13 = vector.load %arg9[%c0_3, %c0_4] : memref<128x1xf32, #tpu.memory_space<vmem>>, vector<128x1xf32>
    %cst = arith.constant dense<0xFF800000> : vector<128xf32>
    %14 = vector.multi_reduction <maximumf>, %12, %cst [1] : vector<128x128xf32> to vector<128xf32>
    %15 = vector.shape_cast %14 : vector<128xf32> to vector<128x1xf32>
    %16 = arith.maximumf %13, %15 : vector<128x1xf32>
    %17 = arith.subf %13, %16 : vector<128x1xf32>
    %18 = math.exp %17 : vector<128x1xf32>
    %19 = vector.broadcast %16 : vector<128x1xf32> to vector<128x128xf32>
    %20 = arith.subf %12, %19 : vector<128x128xf32>
    %21 = math.exp %20 : vector<128x128xf32>
    %c0_5 = arith.constant 0 : index
    %c0_6 = arith.constant 0 : index
    %22 = vector.load %arg10[%c0_5, %c0_6] : memref<128x1xf32, #tpu.memory_space<vmem>>, vector<128x1xf32>
    %23 = arith.mulf %18, %22 : vector<128x1xf32>
    %cst_7 = arith.constant dense<0.000000e+00> : vector<128xf32>
    %24 = vector.multi_reduction <add>, %21, %cst_7 [1] : vector<128x128xf32> to vector<128xf32>
    %25 = vector.shape_cast %24 : vector<128xf32> to vector<128x1xf32>
    %26 = arith.addf %23, %25 : vector<128x1xf32>
    %c0_8 = arith.constant 0 : index
    %c0_9 = arith.constant 0 : index
    %27 = vector.load %arg10[%c0_8, %c0_9] : memref<128x1xf32, #tpu.memory_space<vmem>>, vector<128x1xf32>
    tpu.vector_store %arg10[%c0_8, %c0_9], %26 {strides = array<i32>} : memref<128x1xf32, #tpu.memory_space<vmem>>, vector<128x1xf32>,
    %c128_i32 = arith.constant 128 : i32
    %28 = arith.muli %7, %c128_i32 : i32
    %29 = tpu.assume_multiple %28, 128 : i32
    %c0_10 = arith.constant 0 : index
    %30 = arith.index_cast %29 : i32 to index
    %c0_11 = arith.constant 0 : index
    %31 = vector.load %arg7[%c0_10, %30, %c0_11] : memref<1x384x16xbf16, #tpu.memory_space<vmem>>, vector<1x128x16xbf16>
    %32 = vector.shape_cast %31 : vector<1x128x16xbf16> to vector<128x16xbf16>
    %c0_12 = arith.constant 0 : index
    %c0_13 = arith.constant 0 : index
    %33 = vector.load %arg11[%c0_12, %c0_13] : memref<128x16xf32, #tpu.memory_space<vmem>>, vector<128x16xf32>
    %34 = vector.broadcast %18 : vector<128x1xf32> to vector<128x16xf32>
    %35 = arith.mulf %34, %33 : vector<128x16xf32>
    %36 = arith.truncf %21 : vector<128x128xf32> to vector<128x128xbf16>
    %cst_14 = arith.constant dense<0.000000e+00> : vector<128x16xf32>
    %37 = tpu.matmul %36, %32, %cst_14 {dimension_numbers = #tpu.dot_dimension_numbers<[1], [0], [0], [1], [0, 0, 1, 1], [], []>} : vector<128x128xbf16>, vector<128x16xbf16>, vector<128x16xf32> -> vector<128x16xf32>
    %38 = arith.addf %35, %37 : vector<128x16xf32>
    %c0_15 = arith.constant 0 : index
    %c0_16 = arith.constant 0 : index
    %39 = vector.load %arg11[%c0_15, %c0_16] : memref<128x16xf32, #tpu.memory_space<vmem>>, vector<128x16xf32>
    tpu.vector_store %arg11[%c0_15, %c0_16], %38 {strides = array<i32>} : memref<128x16xf32, #tpu.memory_space<vmem>>, vector<128x16xf32>,
    %c0_17 = arith.constant 0 : index
    %c0_18 = arith.constant 0 : index
    %40 = vector.load %arg9[%c0_17, %c0_18] : memref<128x1xf32, #tpu.memory_space<vmem>>, vector<128x1xf32>
    tpu.vector_store %arg9[%c0_17, %c0_18], %16 {strides = array<i32>} : memref<128x1xf32, #tpu.memory_space<vmem>>, vector<128x1xf32>,
    %41 = arith.extui %5 : i1 to i32
    %c0_i32_19 = arith.constant 0 : i32
    %42 = arith.cmpi ne, %41, %c0_i32_19 : i32
    scf.if %42 {
      %c0_20 = arith.constant 0 : index
      %c0_21 = arith.constant 0 : index
      %43 = vector.load %arg11[%c0_20, %c0_21] : memref<128x16xf32, #tpu.memory_space<vmem>>, vector<128x16xf32>
      %c0_22 = arith.constant 0 : index
      %c0_23 = arith.constant 0 : index
      %44 = vector.load %arg10[%c0_22, %c0_23] : memref<128x1xf32, #tpu.memory_space<vmem>>, vector<128x1xf32>
      %45 = tpu.reciprocal %44 {approx = true} : vector<128x1xf32> -> vector<128x1xf32>
      %46 = vector.broadcast %45 : vector<128x1xf32> to vector<128x16xf32>
      %47 = arith.mulf %43, %46 : vector<128x16xf32>
      %cst_24 = arith.constant 0.000000e+00 : f32
      %48 = vector.broadcast %cst_24 : f32 to vector<128x16xf32>
      %49 = arith.cmpf ogt, %47, %48 : vector<128x16xf32>
      %cst_25 = arith.constant 0.000000e+00 : f32
      %50 = vector.broadcast %cst_25 : f32 to vector<128x16xf32>
      %51 = arith.minimumf %47, %50 : vector<128x16xf32>
      %52 = math.exp %51 : vector<128x16xf32>
      %cst_26 = arith.constant 1.000000e+00 : f32
      %53 = vector.broadcast %cst_26 : f32 to vector<128x16xf32>
      %54 = arith.subf %52, %53 : vector<128x16xf32>
      %55 = arith.select %49, %47, %54 : vector<128x16xi1>, vector<128x16xf32>
      %c0_27 = arith.constant 0 : index
      %c0_28 = arith.constant 0 : index
      %c0_29 = arith.constant 0 : index
      %56 = vector.load %arg8[%c0_27, %c0_28, %c0_29] : memref<1x128x16xf32, #tpu.memory_space<vmem>>, vector<1x128x16xf32>
      %57 = vector.shape_cast %56 : vector<1x128x16xf32> to vector<128x16xf32>
      %58 = vector.shape_cast %55 : vector<128x16xf32> to vector<1x128x16xf32>
      tpu.vector_store %arg8[%c0_27, %c0_28, %c0_29], %58 {strides = array<i32>} : memref<1x128x16xf32, #tpu.memory_space<vmem>>, vector<1x128x16xf32>,
    } else {
    }
    return
  }
  func.func @transform_0(%arg0: i32, %arg1: memref<18xi32, #tpu.memory_space<smem>>, %arg2: memref<18xi32, #tpu.memory_space<smem>>, %arg3: memref<18xi32, #tpu.memory_space<smem>>, %arg4: memref<18xi32, #tpu.memory_space<smem>>, %arg5: memref<18xi32, #tpu.memory_space<smem>>) -> (i32, i32, i32) {
    %0 = arith.index_cast %arg0 : i32 to index
    %1 = memref.load %arg2[%0] : memref<18xi32, #tpu.memory_space<smem>>
    %2 = arith.index_cast %arg0 : i32 to index
    %3 = memref.load %arg1[%2] : memref<18xi32, #tpu.memory_space<smem>>
    %4 = arith.index_cast %arg0 : i32 to index
    %5 = memref.load %arg3[%4] : memref<18xi32, #tpu.memory_space<smem>>
    %c0_i32 = arith.constant 0 : i32
    return %1, %3, %5 : i32, i32, i32
  }
  func.func @transform_1(%arg0: i32, %arg1: memref<18xi32, #tpu.memory_space<smem>>, %arg2: memref<18xi32, #tpu.memory_space<smem>>, %arg3: memref<18xi32, #tpu.memory_space<smem>>, %arg4: memref<18xi32, #tpu.memory_space<smem>>, %arg5: memref<18xi32, #tpu.memory_space<smem>>) -> (i32, i32, i32) {
    %0 = arith.index_cast %arg0 : i32 to index
    %1 = memref.load %arg2[%0] : memref<18xi32, #tpu.memory_space<smem>>
    %c0_i32 = arith.constant 0 : i32
    %c0_i32_0 = arith.constant 0 : i32
    %c0_i32_1 = arith.constant 0 : i32
    return %1, %c0_i32, %c0_i32_0 : i32, i32, i32
  }
  func.func @transform_2(%arg0: i32, %arg1: memref<18xi32, #tpu.memory_space<smem>>, %arg2: memref<18xi32, #tpu.memory_space<smem>>, %arg3: memref<18xi32, #tpu.memory_space<smem>>, %arg4: memref<18xi32, #tpu.memory_space<smem>>, %arg5: memref<18xi32, #tpu.memory_space<smem>>) -> (i32, i32, i32) {
    %0 = arith.index_cast %arg0 : i32 to index
    %1 = memref.load %arg2[%0] : memref<18xi32, #tpu.memory_space<smem>>
    %2 = arith.index_cast %arg0 : i32 to index
    %3 = memref.load %arg1[%2] : memref<18xi32, #tpu.memory_space<smem>>
    %c0_i32 = arith.constant 0 : i32
    %c0_i32_0 = arith.constant 0 : i32
    return %1, %3, %c0_i32 : i32, i32, i32
  }
}

module attributes {stable_mosaic.version = 11 : i64} {
  func.func @linear_head_kernel(%arg0: i32, %arg1: i32, %arg2: memref<128x16xf32, #tpu.memory_space<vmem>>, %arg3: memref<1x16x16xf32, #tpu.memory_space<vmem>>, %arg4: memref<1x1x16xf32, #tpu.memory_space<vmem>>, %arg5: memref<1x128x16xbf16, #tpu.memory_space<vmem>>) attributes {dimension_semantics = [#tpu.dimension_semantics<parallel>, #tpu.dimension_semantics<parallel>], iteration_bounds = array<i64: 2, 3>, scalar_prefetch = 0 : i64, scratch_operands = 0 : i64, tpu.core_type = #tpu.core_type<tc>, window_params = [{transform_indices = @transform_0, window_bounds = array<i64: 128, 16>}, {transform_indices = @transform_1, window_bounds = array<i64: 1, 16, 16>}, {transform_indices = @transform_2, window_bounds = array<i64: 1, 1, 16>}, {transform_indices = @transform_3, window_bounds = array<i64: 1, 128, 16>}]} {
    %c0 = arith.constant 0 : index
    %c0_0 = arith.constant 0 : index
    %0 = vector.load %arg2[%c0, %c0_0] : memref<128x16xf32, #tpu.memory_space<vmem>>, vector<128x16xf32>
    %c0_1 = arith.constant 0 : index
    %c0_2 = arith.constant 0 : index
    %c0_3 = arith.constant 0 : index
    %1 = vector.load %arg3[%c0_1, %c0_2, %c0_3] : memref<1x16x16xf32, #tpu.memory_space<vmem>>, vector<1x16x16xf32>
    %2 = vector.shape_cast %1 : vector<1x16x16xf32> to vector<16x16xf32>
    %c0_4 = arith.constant 0 : index
    %c0_5 = arith.constant 0 : index
    %c0_6 = arith.constant 0 : index
    %3 = vector.load %arg4[%c0_4, %c0_5, %c0_6] : memref<1x1x16xf32, #tpu.memory_space<vmem>>, vector<1x1x16xf32>
    %4 = vector.shape_cast %3 : vector<1x1x16xf32> to vector<1x16xf32>
    %cst = arith.constant dense<0.000000e+00> : vector<128x16xf32>
    %5 = tpu.matmul %0, %2, %cst {dimension_numbers = #tpu.dot_dimension_numbers<[1], [0], [0], [1], [0, 0, 1, 1], [], []>} : vector<128x16xf32>, vector<16x16xf32>, vector<128x16xf32> -> vector<128x16xf32>
    %6 = vector.broadcast %4 : vector<1x16xf32> to vector<128x16xf32>
    %7 = arith.addf %5, %6 : vector<128x16xf32>
    %8 = arith.truncf %7 : vector<128x16xf32> to vector<128x16xbf16>
    %c0_7 = arith.constant 0 : index
    %c0_8 = arith.constant 0 : index
    %c0_9 = arith.constant 0 : index
    %9 = vector.load %arg5[%c0_7, %c0_8, %c0_9] : memref<1x128x16xbf16, #tpu.memory_space<vmem>>, vector<1x128x16xbf16>
    %10 = vector.shape_cast %9 : vector<1x128x16xbf16> to vector<128x16xbf16>
    %11 = vector.shape_cast %8 : vector<128x16xbf16> to vector<1x128x16xbf16>
    tpu.vector_store %arg5[%c0_7, %c0_8, %c0_9], %11 {strides = array<i32>} : memref<1x128x16xbf16, #tpu.memory_space<vmem>>, vector<1x128x16xbf16>,
    return
  }
  func.func @transform_0(%arg0: i32, %arg1: i32) -> (i32, i32) {
    %c0_i32 = arith.constant 0 : i32
    %c0_i32_0 = arith.constant 0 : i32
    return %arg1, %c0_i32 : i32, i32
  }
  func.func @transform_1(%arg0: i32, %arg1: i32) -> (i32, i32, i32) {
    %c0_i32 = arith.constant 0 : i32
    %c0_i32_0 = arith.constant 0 : i32
    %c0_i32_1 = arith.constant 0 : i32
    return %arg0, %c0_i32, %c0_i32_0 : i32, i32, i32
  }
  func.func @transform_2(%arg0: i32, %arg1: i32) -> (i32, i32, i32) {
    %c0_i32 = arith.constant 0 : i32
    %c0_i32_0 = arith.constant 0 : i32
    %c0_i32_1 = arith.constant 0 : i32
    return %arg0, %c0_i32, %c0_i32_0 : i32, i32, i32
  }
  func.func @transform_3(%arg0: i32, %arg1: i32) -> (i32, i32, i32) {
    %c0_i32 = arith.constant 0 : i32
    %c0_i32_0 = arith.constant 0 : i32
    return %arg0, %arg1, %c0_i32 : i32, i32, i32
  }
}

module attributes {stable_mosaic.version = 11 : i64} {
  func.func @attn_agg_kernel(%arg0: i32, %arg1: memref<18xi32, #tpu.memory_space<smem>>, %arg2: memref<18xi32, #tpu.memory_space<smem>>, %arg3: memref<18xi32, #tpu.memory_space<smem>>, %arg4: memref<18xi32, #tpu.memory_space<smem>>, %arg5: memref<18xi32, #tpu.memory_space<smem>>, %arg6: memref<1x128x128xbf16, #tpu.memory_space<vmem>>, %arg7: memref<1x384x8xbf16, #tpu.memory_space<vmem>>, %arg8: memref<128x8xf32, #tpu.memory_space<vmem>>, %arg9: memref<128x1xf32, #tpu.memory_space<vmem>>, %arg10: memref<128x1xf32, #tpu.memory_space<vmem>>, %arg11: memref<128x8xf32, #tpu.memory_space<vmem>>, %arg12: memref<128x8xf32, #tpu.memory_space<vmem>>) attributes {dimension_semantics = [#tpu.dimension_semantics<arbitrary>], iteration_bounds = array<i64: 18>, scalar_prefetch = 5 : i64, scratch_operands = 4 : i64, tpu.core_type = #tpu.core_type<tc>, window_params = [{transform_indices = @transform_0, window_bounds = array<i64: 1, 128, 128>}, {transform_indices = @transform_1, window_bounds = array<i64: 1, 384, 8>}, {transform_indices = @transform_2, window_bounds = array<i64: 128, 8>}]} {
    %0 = arith.index_cast %arg0 : i32 to index
    %1 = memref.load %arg4[%0] : memref<18xi32, #tpu.memory_space<smem>>
    %c1_i32 = arith.constant 1 : i32
    %2 = arith.cmpi eq, %1, %c1_i32 : i32
    %3 = arith.index_cast %arg0 : i32 to index
    %4 = memref.load %arg5[%3] : memref<18xi32, #tpu.memory_space<smem>>
    %c1_i32_0 = arith.constant 1 : i32
    %5 = arith.cmpi eq, %4, %c1_i32_0 : i32
    %6 = arith.index_cast %arg0 : i32 to index
    %7 = memref.load %arg2[%6] : memref<18xi32, #tpu.memory_space<smem>>
    %8 = arith.index_cast %arg0 : i32 to index
    %9 = memref.load %arg3[%8] : memref<18xi32, #tpu.memory_space<smem>>
    %10 = arith.extui %2 : i1 to i32
    %c0_i32 = arith.constant 0 : i32
    %11 = arith.cmpi ne, %10, %c0_i32 : i32
    scf.if %11 {
      %cst_20 = arith.constant 0xFF800000 : f32
      %45 = vector.broadcast %cst_20 : f32 to vector<128x1xf32>
      %c0_21 = arith.constant 0 : index
      %c0_22 = arith.constant 0 : index
      %46 = vector.load %arg9[%c0_21, %c0_22] : memref<128x1xf32, #tpu.memory_space<vmem>>, vector<128x1xf32>
      tpu.vector_store %arg9[%c0_21, %c0_22], %45 {strides = array<i32>} : memref<128x1xf32, #tpu.memory_space<vmem>>, vector<128x1xf32>,
      %cst_23 = arith.constant 0.000000e+00 : f32
      %47 = vector.broadcast %cst_23 : f32 to vector<128x1xf32>
      %c0_24 = arith.constant 0 : index
      %c0_25 = arith.constant 0 : index
      %48 = vector.load %arg10[%c0_24, %c0_25] : memref<128x1xf32, #tpu.memory_space<vmem>>, vector<128x1xf32>
      tpu.vector_store %arg10[%c0_24, %c0_25], %47 {strides = array<i32>} : memref<128x1xf32, #tpu.memory_space<vmem>>, vector<128x1xf32>,
      %cst_26 = arith.constant 0.000000e+00 : f32
      %49 = vector.broadcast %cst_26 : f32 to vector<128x8xf32>
      %c0_27 = arith.constant 0 : index
      %c0_28 = arith.constant 0 : index
      %50 = vector.load %arg11[%c0_27, %c0_28] : memref<128x8xf32, #tpu.memory_space<vmem>>, vector<128x8xf32>
      tpu.vector_store %arg11[%c0_27, %c0_28], %49 {strides = array<i32>} : memref<128x8xf32, #tpu.memory_space<vmem>>, vector<128x8xf32>,
    } else {
    }
    %c0 = arith.constant 0 : index
    %c0_1 = arith.constant 0 : index
    %c0_2 = arith.constant 0 : index
    %12 = vector.load %arg6[%c0, %c0_1, %c0_2] : memref<1x128x128xbf16, #tpu.memory_space<vmem>>, vector<1x128x128xbf16>
    %13 = vector.shape_cast %12 : vector<1x128x128xbf16> to vector<128x128xbf16>
    %14 = arith.extf %13 : vector<128x128xbf16> to vector<128x128xf32>
    %c0_3 = arith.constant 0 : index
    %c0_4 = arith.constant 0 : index
    %15 = vector.load %arg9[%c0_3, %c0_4] : memref<128x1xf32, #tpu.memory_space<vmem>>, vector<128x1xf32>
    %cst = arith.constant dense<0xFF800000> : vector<128xf32>
    %16 = vector.multi_reduction <maximumf>, %14, %cst [1] : vector<128x128xf32> to vector<128xf32>
    %17 = vector.shape_cast %16 : vector<128xf32> to vector<128x1xf32>
    %18 = arith.maximumf %15, %17 : vector<128x1xf32>
    %19 = arith.subf %15, %18 : vector<128x1xf32>
    %20 = math.exp %19 : vector<128x1xf32>
    %21 = vector.broadcast %18 : vector<128x1xf32> to vector<128x128xf32>
    %22 = arith.subf %14, %21 : vector<128x128xf32>
    %23 = math.exp %22 : vector<128x128xf32>
    %c0_5 = arith.constant 0 : index
    %c0_6 = arith.constant 0 : index
    %24 = vector.load %arg10[%c0_5, %c0_6] : memref<128x1xf32, #tpu.memory_space<vmem>>, vector<128x1xf32>
    %25 = arith.mulf %20, %24 : vector<128x1xf32>
    %cst_7 = arith.constant dense<0.000000e+00> : vector<128xf32>
    %26 = vector.multi_reduction <add>, %23, %cst_7 [1] : vector<128x128xf32> to vector<128xf32>
    %27 = vector.shape_cast %26 : vector<128xf32> to vector<128x1xf32>
    %28 = arith.addf %25, %27 : vector<128x1xf32>
    %c0_8 = arith.constant 0 : index
    %c0_9 = arith.constant 0 : index
    %29 = vector.load %arg10[%c0_8, %c0_9] : memref<128x1xf32, #tpu.memory_space<vmem>>, vector<128x1xf32>
    tpu.vector_store %arg10[%c0_8, %c0_9], %28 {strides = array<i32>} : memref<128x1xf32, #tpu.memory_space<vmem>>, vector<128x1xf32>,
    %c128_i32 = arith.constant 128 : i32
    %30 = arith.muli %9, %c128_i32 : i32
    %31 = tpu.assume_multiple %30, 128 : i32
    %c0_10 = arith.constant 0 : index
    %32 = arith.index_cast %31 : i32 to index
    %c0_11 = arith.constant 0 : index
    %33 = vector.load %arg7[%c0_10, %32, %c0_11] : memref<1x384x8xbf16, #tpu.memory_space<vmem>>, vector<1x128x8xbf16>
    %34 = vector.shape_cast %33 : vector<1x128x8xbf16> to vector<128x8xbf16>
    %c0_12 = arith.constant 0 : index
    %c0_13 = arith.constant 0 : index
    %35 = vector.load %arg11[%c0_12, %c0_13] : memref<128x8xf32, #tpu.memory_space<vmem>>, vector<128x8xf32>
    %36 = vector.broadcast %20 : vector<128x1xf32> to vector<128x8xf32>
    %37 = arith.mulf %36, %35 : vector<128x8xf32>
    %38 = arith.truncf %23 : vector<128x128xf32> to vector<128x128xbf16>
    %cst_14 = arith.constant dense<0.000000e+00> : vector<128x8xf32>
    %39 = tpu.matmul %38, %34, %cst_14 {dimension_numbers = #tpu.dot_dimension_numbers<[1], [0], [0], [1], [0, 0, 1, 1], [], []>} : vector<128x128xbf16>, vector<128x8xbf16>, vector<128x8xf32> -> vector<128x8xf32>
    %40 = arith.addf %37, %39 : vector<128x8xf32>
    %c0_15 = arith.constant 0 : index
    %c0_16 = arith.constant 0 : index
    %41 = vector.load %arg11[%c0_15, %c0_16] : memref<128x8xf32, #tpu.memory_space<vmem>>, vector<128x8xf32>
    tpu.vector_store %arg11[%c0_15, %c0_16], %40 {strides = array<i32>} : memref<128x8xf32, #tpu.memory_space<vmem>>, vector<128x8xf32>,
    %c0_17 = arith.constant 0 : index
    %c0_18 = arith.constant 0 : index
    %42 = vector.load %arg9[%c0_17, %c0_18] : memref<128x1xf32, #tpu.memory_space<vmem>>, vector<128x1xf32>
    tpu.vector_store %arg9[%c0_17, %c0_18], %18 {strides = array<i32>} : memref<128x1xf32, #tpu.memory_space<vmem>>, vector<128x1xf32>,
    %43 = arith.extui %5 : i1 to i32
    %c0_i32_19 = arith.constant 0 : i32
    %44 = arith.cmpi ne, %43, %c0_i32_19 : i32
    scf.if %44 {
      %c0_20 = arith.constant 0 : index
      %c0_21 = arith.constant 0 : index
      %45 = vector.load %arg11[%c0_20, %c0_21] : memref<128x8xf32, #tpu.memory_space<vmem>>, vector<128x8xf32>
      %c0_22 = arith.constant 0 : index
      %c0_23 = arith.constant 0 : index
      %46 = vector.load %arg10[%c0_22, %c0_23] : memref<128x1xf32, #tpu.memory_space<vmem>>, vector<128x1xf32>
      %47 = tpu.reciprocal %46 {approx = true} : vector<128x1xf32> -> vector<128x1xf32>
      %48 = vector.broadcast %47 : vector<128x1xf32> to vector<128x8xf32>
      %49 = arith.mulf %45, %48 : vector<128x8xf32>
      %c0_i32_24 = arith.constant 0 : i32
      %50 = arith.cmpi eq, %7, %c0_i32_24 : i32
      %51 = arith.extui %50 : i1 to i32
      %c0_i32_25 = arith.constant 0 : i32
      %52 = arith.cmpi ne, %51, %c0_i32_25 : i32
      scf.if %52 {
        %c0_30 = arith.constant 0 : index
        %c0_31 = arith.constant 0 : index
        %59 = vector.load %arg12[%c0_30, %c0_31] : memref<128x8xf32, #tpu.memory_space<vmem>>, vector<128x8xf32>
        tpu.vector_store %arg12[%c0_30, %c0_31], %49 {strides = array<i32>} : memref<128x8xf32, #tpu.memory_space<vmem>>, vector<128x8xf32>,
      } else {
      }
      %c0_i32_26 = arith.constant 0 : i32
      %53 = arith.cmpi sgt, %7, %c0_i32_26 : i32
      %54 = arith.extui %53 : i1 to i32
      %c0_i32_27 = arith.constant 0 : i32
      %55 = arith.cmpi ne, %54, %c0_i32_27 : i32
      scf.if %55 {
        %c0_30 = arith.constant 0 : index
        %c0_31 = arith.constant 0 : index
        %59 = vector.load %arg12[%c0_30, %c0_31] : memref<128x8xf32, #tpu.memory_space<vmem>>, vector<128x8xf32>
        %60 = arith.addf %59, %49 : vector<128x8xf32>
        %c0_32 = arith.constant 0 : index
        %c0_33 = arith.constant 0 : index
        %61 = vector.load %arg12[%c0_32, %c0_33] : memref<128x8xf32, #tpu.memory_space<vmem>>, vector<128x8xf32>
        tpu.vector_store %arg12[%c0_32, %c0_33], %60 {strides = array<i32>} : memref<128x8xf32, #tpu.memory_space<vmem>>, vector<128x8xf32>,
      } else {
      }
      %c1_i32_28 = arith.constant 1 : i32
      %56 = arith.cmpi eq, %7, %c1_i32_28 : i32
      %57 = arith.extui %56 : i1 to i32
      %c0_i32_29 = arith.constant 0 : i32
      %58 = arith.cmpi ne, %57, %c0_i32_29 : i32
      scf.if %58 {
        %c0_30 = arith.constant 0 : index
        %c0_31 = arith.constant 0 : index
        %59 = vector.load %arg12[%c0_30, %c0_31] : memref<128x8xf32, #tpu.memory_space<vmem>>, vector<128x8xf32>
        %cst_32 = arith.constant 5.000000e-01 : f32
        %60 = vector.broadcast %cst_32 : f32 to vector<128x8xf32>
        %61 = arith.mulf %59, %60 : vector<128x8xf32>
        %c0_33 = arith.constant 0 : index
        %c0_34 = arith.constant 0 : index
        %62 = vector.load %arg8[%c0_33, %c0_34] : memref<128x8xf32, #tpu.memory_space<vmem>>, vector<128x8xf32>
        tpu.vector_store %arg8[%c0_33, %c0_34], %61 {strides = array<i32>} : memref<128x8xf32, #tpu.memory_space<vmem>>, vector<128x8xf32>,
      } else {
      }
    } else {
    }
    return
  }
  func.func @transform_0(%arg0: i32, %arg1: memref<18xi32, #tpu.memory_space<smem>>, %arg2: memref<18xi32, #tpu.memory_space<smem>>, %arg3: memref<18xi32, #tpu.memory_space<smem>>, %arg4: memref<18xi32, #tpu.memory_space<smem>>, %arg5: memref<18xi32, #tpu.memory_space<smem>>) -> (i32, i32, i32) {
    %0 = arith.index_cast %arg0 : i32 to index
    %1 = memref.load %arg2[%0] : memref<18xi32, #tpu.memory_space<smem>>
    %2 = arith.index_cast %arg0 : i32 to index
    %3 = memref.load %arg1[%2] : memref<18xi32, #tpu.memory_space<smem>>
    %4 = arith.index_cast %arg0 : i32 to index
    %5 = memref.load %arg3[%4] : memref<18xi32, #tpu.memory_space<smem>>
    %c0_i32 = arith.constant 0 : i32
    return %1, %3, %5 : i32, i32, i32
  }
  func.func @transform_1(%arg0: i32, %arg1: memref<18xi32, #tpu.memory_space<smem>>, %arg2: memref<18xi32, #tpu.memory_space<smem>>, %arg3: memref<18xi32, #tpu.memory_space<smem>>, %arg4: memref<18xi32, #tpu.memory_space<smem>>, %arg5: memref<18xi32, #tpu.memory_space<smem>>) -> (i32, i32, i32) {
    %0 = arith.index_cast %arg0 : i32 to index
    %1 = memref.load %arg2[%0] : memref<18xi32, #tpu.memory_space<smem>>
    %c0_i32 = arith.constant 0 : i32
    %c0_i32_0 = arith.constant 0 : i32
    %c0_i32_1 = arith.constant 0 : i32
    return %1, %c0_i32, %c0_i32_0 : i32, i32, i32
  }
  func.func @transform_2(%arg0: i32, %arg1: memref<18xi32, #tpu.memory_space<smem>>, %arg2: memref<18xi32, #tpu.memory_space<smem>>, %arg3: memref<18xi32, #tpu.memory_space<smem>>, %arg4: memref<18xi32, #tpu.memory_space<smem>>, %arg5: memref<18xi32, #tpu.memory_space<smem>>) -> (i32, i32) {
    %0 = arith.index_cast %arg0 : i32 to index
    %1 = memref.load %arg1[%0] : memref<18xi32, #tpu.memory_space<smem>>
    %c0_i32 = arith.constant 0 : i32
    %c0_i32_0 = arith.constant 0 : i32
    return %1, %c0_i32 : i32, i32
  }
}

module attributes {stable_mosaic.version = 11 : i64} {
  func.func @linear_head_kernel(%arg0: i32, %arg1: i32, %arg2: memref<1x128x16xf32, #tpu.memory_space<vmem>>, %arg3: memref<1x16x8xf32, #tpu.memory_space<vmem>>, %arg4: memref<1x1x8xf32, #tpu.memory_space<vmem>>, %arg5: memref<1x128x8xbf16, #tpu.memory_space<vmem>>) attributes {dimension_semantics = [#tpu.dimension_semantics<parallel>, #tpu.dimension_semantics<parallel>], iteration_bounds = array<i64: 2, 3>, scalar_prefetch = 0 : i64, scratch_operands = 0 : i64, tpu.core_type = #tpu.core_type<tc>, window_params = [{transform_indices = @transform_0, window_bounds = array<i64: 1, 128, 16>}, {transform_indices = @transform_1, window_bounds = array<i64: 1, 16, 8>}, {transform_indices = @transform_2, window_bounds = array<i64: 1, 1, 8>}, {transform_indices = @transform_3, window_bounds = array<i64: 1, 128, 8>}]} {
    %c0 = arith.constant 0 : index
    %c0_0 = arith.constant 0 : index
    %c0_1 = arith.constant 0 : index
    %0 = vector.load %arg2[%c0, %c0_0, %c0_1] : memref<1x128x16xf32, #tpu.memory_space<vmem>>, vector<1x128x16xf32>
    %1 = vector.shape_cast %0 : vector<1x128x16xf32> to vector<128x16xf32>
    %c0_2 = arith.constant 0 : index
    %c0_3 = arith.constant 0 : index
    %c0_4 = arith.constant 0 : index
    %2 = vector.load %arg3[%c0_2, %c0_3, %c0_4] : memref<1x16x8xf32, #tpu.memory_space<vmem>>, vector<1x16x8xf32>
    %3 = vector.shape_cast %2 : vector<1x16x8xf32> to vector<16x8xf32>
    %c0_5 = arith.constant 0 : index
    %c0_6 = arith.constant 0 : index
    %c0_7 = arith.constant 0 : index
    %4 = vector.load %arg4[%c0_5, %c0_6, %c0_7] : memref<1x1x8xf32, #tpu.memory_space<vmem>>, vector<1x1x8xf32>
    %5 = vector.shape_cast %4 : vector<1x1x8xf32> to vector<1x8xf32>
    %cst = arith.constant dense<0.000000e+00> : vector<128x8xf32>
    %6 = tpu.matmul %1, %3, %cst {dimension_numbers = #tpu.dot_dimension_numbers<[1], [0], [0], [1], [0, 0, 1, 1], [], []>} : vector<128x16xf32>, vector<16x8xf32>, vector<128x8xf32> -> vector<128x8xf32>
    %7 = vector.broadcast %5 : vector<1x8xf32> to vector<128x8xf32>
    %8 = arith.addf %6, %7 : vector<128x8xf32>
    %9 = arith.truncf %8 : vector<128x8xf32> to vector<128x8xbf16>
    %c0_8 = arith.constant 0 : index
    %c0_9 = arith.constant 0 : index
    %c0_10 = arith.constant 0 : index
    %10 = vector.load %arg5[%c0_8, %c0_9, %c0_10] : memref<1x128x8xbf16, #tpu.memory_space<vmem>>, vector<1x128x8xbf16>
    %11 = vector.shape_cast %10 : vector<1x128x8xbf16> to vector<128x8xbf16>
    %12 = vector.shape_cast %9 : vector<128x8xbf16> to vector<1x128x8xbf16>
    tpu.vector_store %arg5[%c0_8, %c0_9, %c0_10], %12 {strides = array<i32>} : memref<1x128x8xbf16, #tpu.memory_space<vmem>>, vector<1x128x8xbf16>,
    return
  }
  func.func @transform_0(%arg0: i32, %arg1: i32) -> (i32, i32, i32) {
    %c0_i32 = arith.constant 0 : i32
    %c0_i32_0 = arith.constant 0 : i32
    return %arg0, %arg1, %c0_i32 : i32, i32, i32
  }
  func.func @transform_1(%arg0: i32, %arg1: i32) -> (i32, i32, i32) {
    %c0_i32 = arith.constant 0 : i32
    %c0_i32_0 = arith.constant 0 : i32
    %c0_i32_1 = arith.constant 0 : i32
    return %arg0, %c0_i32, %c0_i32_0 : i32, i32, i32
  }
  func.func @transform_2(%arg0: i32, %arg1: i32) -> (i32, i32, i32) {
    %c0_i32 = arith.constant 0 : i32
    %c0_i32_0 = arith.constant 0 : i32
    %c0_i32_1 = arith.constant 0 : i32
    return %arg0, %c0_i32, %c0_i32_0 : i32, i32, i32
  }
  func.func @transform_3(%arg0: i32, %arg1: i32) -> (i32, i32, i32) {
    %c0_i32 = arith.constant 0 : i32
    %c0_i32_0 = arith.constant 0 : i32
    return %arg0, %arg1, %c0_i32 : i32, i32, i32
  }
}

</mosaic_0001>

<llo_original>
// kernel: gcnnet_forward.4
$region0: #{gcnnet_forward.4}
  #allocation0 [shape = 'u32[]', space=smem, size = 0x4, offset = 0x4, fixed_abs, tag = 'smem constant byte address 0x4 - core index']
  #allocation1 [shape = 'u32[144,128]{1,0:T(1,128)}', space=vmem, size = 0x12000, scoped, tag = 'internal scratch']
  %s0 = inlined_call_operand.vmem [shape: f32[384,16], index: 0, kind: input, shape index: {}]
  %s1 = inlined_call_operand.hbm [shape: f32[2,16,16], index: 1, kind: input, shape index: {}]
  %s2 = inlined_call_operand.vmem [shape: f32[2,1,16], index: 2, kind: input, shape index: {}]
  %s3 = inlined_call_operand.vmem [shape: bf16[2,384,16], index: 3, kind: output, shape index: {}]
  %s4 = sld [smem:[#allocation0]]
  $region49: #{gcnnet_forward.4} parent=0
    _
  %s6 = ssub.s32 1, %s4
  %s7 = scalar_select 0, %s6, %s4
  $region1: #{gcnnet_forward.4} parent=0
    #allocation2 [shape = 'u8[16384]{0}', space=vmem, size = 0x4000, scoped, tag = 'input window, operand 1']
    #allocation3 [shape = 's32[2]{0}', space=sflag, size = 0x8, scoped, tag = 'scoped memory for gcnnet_forward.4']
    %8 = vsyncpa [#allocation3], 0
    %s9 = scalar_lea.sflag [#allocation3], 1
    %10 = vsyncpa %s9, 0
    loop: start=0, step=1, limit=8
    $region2: #{gcnnet_forward.4} parent=1 // loop_pre_header
      _
    $region3: #{gcnnet_forward.4} parent=1 // loop_header
      %s12 = sphi 0, %s16
      %p13 = scmp.ge.s32.totalorder %s12, 8
      %s19 = sphi 0, %s31
      %s20 = sphi 0, %s27
      %s21 = sphi 0, %s19
      %s22 = sphi 0, %s20
      %s23 = sphi 0, %s21
      %s24 = sphi 0, %s22
      %s34 = sphi 0, %s36
      %s37 = sphi 0, %s34
      %s38 = sphi 0, %s37
      %s54 = sphi 0, %s38
      %s60 = sphi 0, %s62
      %s63 = sphi 0, %s60
      %s64 = sphi 0, %s63
      %s80 = sphi 0, %s64
      %s86 = sphi 0, %s88
      %s89 = sphi 0, %s86
      %s90 = sphi 0, %s89
      %s106 = sphi 0, %s90
      %s114 = sphi 0, %s116
      %s117 = sphi 0, %s114
      %s118 = sphi 0, %s117
      %s134 = sphi 0, %s118
    $region4: #{gcnnet_forward.4} parent=1 // loop_header_branch
      %15 = sbr.rel (%p13) target = $region8
    $region5: #{gcnnet_forward.4} parent=1 // loop_body
      %s17 = ssub.s32 %s12, 1
      %s18 = ssub.s32 %s12, 2
      %s25 = sadd.s32 1, %s20
      %p26 = scmp.ge.s32.totalorder %s25, 3
      %s27 = scalar_select %p26, 0, %s25
      %s28 = sadd.s32 1, %s19
      %s29 = scalar_select %p26, %s28, %s19
      %p30 = scmp.ge.s32.totalorder %s29, 2
      %s31 = scalar_select %p30, 0, %s29
      %s32 = ssub.s32 %s20, %s27
      %p33 = scmp.eq.s32.totalorder %s32, 0
      %s35 = sadd.s32 %s34, 1
      %s36 = scalar_select %p33, %s34, %s35
      %p39 = pneg %p33
      %p40 = scmp.eq.s32.totalorder %s12, 5
      %p41 = por %p39, %p40
      %p42 = scmp.ne.s32.totalorder %s34, %s37
      %p43 = scmp.eq.s32.totalorder %s12, 0
      %p44 = por %p42, %p43
      %p45 = scmp.ne.s32.totalorder %s34, %s37
      %p46 = scmp.eq.s32.totalorder %s17, 5
      %p47 = por %p45, %p46
      %p48 = scmp.ne.s32.totalorder %s37, %s38
      %p49 = scmp.eq.s32.totalorder %s17, 0
      %p50 = por %p48, %p49
      %p51 = scmp.ne.s32.totalorder %s37, %s38
      %p52 = scmp.eq.s32.totalorder %s18, 5
      %p53 = por %p51, %p52
      %p55 = scmp.ne.s32.totalorder %s38, %s54
      %p56 = scmp.eq.s32.totalorder %s18, 0
      %p57 = por %p55, %p56
      %s58 = ssub.s32 %s19, %s31
      %p59 = scmp.eq.s32.totalorder %s58, 0
      %s61 = sadd.s32 %s60, 1
      %s62 = scalar_select %p59, %s60, %s61
      %p65 = pneg %p59
      %p66 = scmp.eq.s32.totalorder %s12, 5
      %p67 = por %p65, %p66
      %p68 = scmp.ne.s32.totalorder %s60, %s63
      %p69 = scmp.eq.s32.totalorder %s12, 0
      %p70 = por %p68, %p69
      %p71 = scmp.ne.s32.totalorder %s60, %s63
      %p72 = scmp.eq.s32.totalorder %s17, 5
      %p73 = por %p71, %p72
      %p74 = scmp.ne.s32.totalorder %s63, %s64
      %p75 = scmp.eq.s32.totalorder %s17, 0
      %p76 = por %p74, %p75
      %p77 = scmp.ne.s32.totalorder %s63, %s64
      %p78 = scmp.eq.s32.totalorder %s18, 5
      %p79 = por %p77, %p78
      %p81 = scmp.ne.s32.totalorder %s64, %s80
      %p82 = scmp.eq.s32.totalorder %s18, 0
      %p83 = por %p81, %p82
      %s84 = ssub.s32 %s19, %s31
      %p85 = scmp.eq.s32.totalorder %s84, 0
      %s87 = sadd.s32 %s86, 1
      %s88 = scalar_select %p85, %s86, %s87
      %p91 = pneg %p85
      %p92 = scmp.eq.s32.totalorder %s12, 5
      %p93 = por %p91, %p92
      %p94 = scmp.ne.s32.totalorder %s86, %s89
      %p95 = scmp.eq.s32.totalorder %s12, 0
      %p96 = por %p94, %p95
      %p97 = scmp.ne.s32.totalorder %s86, %s89
      %p98 = scmp.eq.s32.totalorder %s17, 5
      %p99 = por %p97, %p98
      %p100 = scmp.ne.s32.totalorder %s89, %s90
      %p101 = scmp.eq.s32.totalorder %s17, 0
      %p102 = por %p100, %p101
      %p103 = scmp.ne.s32.totalorder %s89, %s90
      %p104 = scmp.eq.s32.totalorder %s18, 5
      %p105 = por %p103, %p104
      %p107 = scmp.ne.s32.totalorder %s90, %s106
      %p108 = scmp.eq.s32.totalorder %s18, 0
      %p109 = por %p107, %p108
      %s110 = ssub.s32 %s19, %s31
      %s111 = ssub.s32 %s20, %s27
      %s112 = sor.u32 %s110, %s111
      %p113 = scmp.eq.s32.totalorder %s112, 0
      %s115 = sadd.s32 %s114, 1
      %s116 = scalar_select %p113, %s114, %s115
      %p119 = pneg %p113
      %p120 = scmp.eq.s32.totalorder %s12, 5
      %p121 = por %p119, %p120
      %p122 = scmp.ne.s32.totalorder %s114, %s117
      %p123 = scmp.eq.s32.totalorder %s12, 0
      %p124 = por %p122, %p123
      %p125 = scmp.ne.s32.totalorder %s114, %s117
      %p126 = scmp.eq.s32.totalorder %s17, 5
      %p127 = por %p125, %p126
      %p128 = scmp.ne.s32.totalorder %s117, %s118
      %p129 = scmp.eq.s32.totalorder %s17, 0
      %p130 = por %p128, %p129
      %p131 = scmp.ne.s32.totalorder %s117, %s118
      %p132 = scmp.eq.s32.totalorder %s18, 5
      %p133 = por %p131, %p132
      %p135 = scmp.ne.s32.totalorder %s118, %s134
      %p136 = scmp.eq.s32.totalorder %s18, 0
      %p137 = por %p135, %p136
      %p138 = scmp.le.s32.totalorder 1, %s12
      %p139 = scmp.lt.s32.totalorder %s12, 7
      %p140 = pnand %p138, %p139
      %p141 = pneg %p140
      // Predicated region
      $region9: #{gcnnet_forward.4} parent=5 // pred_check
        _
      $region10: #{gcnnet_forward.4} parent=5 // pred_check_branch
        %143 = sbr.rel (%p140) target = $region12
      $region11: #{gcnnet_forward.4} parent=5 // pred_region
        %s144 = ssub.s32 %s12, 1
      $region12: #{gcnnet_forward.4} parent=5 // pred_fallthru
        _
      %p145 = scmp.lt.s32.totalorder %s12, 6
      // Predicated region
      $region13: #{gcnnet_forward.4} parent=5 // pred_check
        %p146 = pneg %p145
      $region14: #{gcnnet_forward.4} parent=5 // pred_check_branch
        %148 = sbr.rel (%p146) target = $region16
      $region15: #{gcnnet_forward.4} parent=5 // pred_region
        // Predicated region
        $region17: #{gcnnet_forward.4} parent=15 // pred_check
          %p149 = pneg %p44
        $region18: #{gcnnet_forward.4} parent=15 // pred_check_branch
          %151 = sbr.rel (%p149) target = $region20
        $region19: #{gcnnet_forward.4} parent=15 // pred_region
          %s152 = smul.u32 16, %s20
          %p153 = scmp.lt.s32.totalorder %s152, 47
          %s154 = scalar_select %p153, %s152, 47
          %s155 = smul.addr %s154, 8
          %s156 = scalar_lea.vmem %s0, %s155
          %s157 = smul.u32 16, %s20
        $region20: #{gcnnet_forward.4} parent=15 // pred_fallthru
          _
        // Predicated region
        $region21: #{gcnnet_forward.4} parent=15 // pred_check
          %p158 = pneg %p70
        $region22: #{gcnnet_forward.4} parent=15 // pred_check_branch
          %160 = sbr.rel (%p158) target = $region24
        $region23: #{gcnnet_forward.4} parent=15 // pred_region
          %s161 = sand.u32 %s60, 1
          %s162 = scalar_lea.sflag [#allocation3], %s161
          %s163 = sand.u32 %s60, 1
          %s164 = smul.addr %s163, 16
          %s165 = scalar_lea.vmem [#allocation2], %s164
          %s167 = ssub.s32 256, 256
          %168 = vsyncadd %s162, %s167
          %s169 = smul.addr %s19, 2
          %s170 = smul.addr %s169, 128
          %s171 = scalar_lea.hbm %s1, %s170
          %s172 = sshll.u32 %s165, 4
          %s173 = int_to_ptr.vmem [resolvable:$true] %s172
          %178 = dma.hbm_to_vmem [thread:$0]  %s171, 256, %s173, %s162, 128, 128, 8
        $region24: #{gcnnet_forward.4} parent=15 // pred_fallthru
          _
        // Predicated region
        $region25: #{gcnnet_forward.4} parent=15 // pred_check
          %p179 = pneg %p96
        $region26: #{gcnnet_forward.4} parent=15 // pred_check_branch
          %181 = sbr.rel (%p179) target = $region28
        $region27: #{gcnnet_forward.4} parent=15 // pred_region
          %p182 = scmp.lt.s32.totalorder %s19, 1
          %s183 = scalar_select %p182, %s19, 1
          %s184 = scalar_lea.vmem %s2, %s183
        $region28: #{gcnnet_forward.4} parent=15 // pred_fallthru
          _
      $region16: #{gcnnet_forward.4} parent=5 // pred_fallthru
        _
      %p185 = scmp.le.s32.totalorder 1, %s12
      %p186 = scmp.lt.s32.totalorder %s12, 7
      %p187 = pnand %p185, %p186
      %p188 = pneg %p187
      // Predicated region
      $region29: #{gcnnet_forward.4} parent=5 // pred_check
        _
      $region30: #{gcnnet_forward.4} parent=5 // pred_check_branch
        %190 = sbr.rel (%p187) target = $region32
      $region31: #{gcnnet_forward.4} parent=5 // pred_region
        %s191 = ssub.s32 %s12, 1
        %s192 = sand.u32 %s63, 1
        %s193 = scalar_lea.sflag [#allocation3], %s192
        %s194 = sand.u32 %s63, 1
        %s195 = smul.addr %s194, 16
        %s196 = scalar_lea.vmem [#allocation2], %s195
        // Predicated region
        $region33: #{gcnnet_forward.4} parent=31 // pred_check
          %p197 = pneg %p76
        $region34: #{gcnnet_forward.4} parent=31 // pred_check_branch
          %199 = sbr.rel (%p197) target = $region36
        $region35: #{gcnnet_forward.4} parent=31 // pred_region
          %200 = dma.done %s193, 256
        $region36: #{gcnnet_forward.4} parent=31 // pred_fallthru
          _
        %s201 = smul.u32 16, %s22
        %p202 = scmp.lt.s32.totalorder %s201, 47
        %s203 = scalar_select %p202, %s201, 47
        %s204 = smul.addr %s203, 8
        %s205 = scalar_lea.vmem %s0, %s204
        %p206 = pneg %p50
        %p207 = pneg %p47
        %s208 = sand.u32 %s63, 1
        %s209 = scalar_lea.sflag [#allocation3], %s208
        %s210 = sand.u32 %s63, 1
        %s211 = smul.addr %s210, 16
        %s212 = scalar_lea.vmem [#allocation2], %s211
        %p213 = pneg %p76
        %p214 = pneg %p73
        %p215 = scmp.lt.s32.totalorder %s21, 1
        %s216 = scalar_select %p215, %s21, 1
        %s217 = scalar_lea.vmem %s2, %s216
        %p218 = pneg %p102
        %p219 = pneg %p99
        %p220 = pneg %p130
        %p221 = pneg %p127
        %s222 = smul.u32 16, %s22
        %p223 = scmp.lt.s32.totalorder %s21, 1
        %s224 = scalar_select %p223, %s21, 1
        %p225 = scmp.lt.s32.totalorder %s222, 47
        %s226 = scalar_select %p225, %s222, 47
        %s227 = smul.addr %s224, 48
        %s228 = sadd.s32 %s226, %s227
        %s229 = smul.addr %s228, 4
        %s230 = scalar_lea.vmem %s3, %s229
        %s231 = smul.u32 16, %s22
        %p232 = scmp.lt.s32.totalorder %s231, 47
        %s233 = scalar_select %p232, %s231, 47
        %s234 = smul.addr %s233, 8
        %s235 = scalar_lea.vmem %s0, %s234
        %s236 = smul.u32 16, %s22
        %p237 = scmp.lt.s32.totalorder %s21, 1
        %s238 = scalar_select %p237, %s21, 1
        %s239 = scalar_lea.vmem %s2, %s238
        %s240 = smul.u32 16, %s22
        %p241 = scmp.lt.s32.totalorder %s21, 1
        %s242 = scalar_select %p241, %s21, 1
        %p243 = scmp.lt.s32.totalorder %s240, 47
        %s244 = scalar_select %p243, %s240, 47
        %s245 = smul.addr %s242, 48
        %s246 = sadd.s32 %s244, %s245
        %s247 = smul.addr %s246, 4
        %s248 = scalar_lea.vmem %s3, %s247
        %s249 = smul.u32 16, %s22
        %v250 = vld [vmem:[%s235] sm:$0xff]
        %v251 = vld [vmem:[%s235 + $0x8] sm:$0xff]
        %v252 = vld [vmem:[%s235 + $0x10] sm:$0xff]
        %v253 = vld [vmem:[%s235 + $0x18] sm:$0xff]
        %v254 = vld [vmem:[%s235 + $0x20] sm:$0xff]
        %v255 = vld [vmem:[%s235 + $0x28] sm:$0xff]
        %v256 = vld [vmem:[%s235 + $0x30] sm:$0xff]
        %v257 = vld [vmem:[%s235 + $0x38] sm:$0xff]
        %v258 = vld [vmem:[%s235 + $0x40] sm:$0xff]
        %v259 = vld [vmem:[%s235 + $0x48] sm:$0xff]
        %v260 = vld [vmem:[%s235 + $0x50] sm:$0xff]
        %v261 = vld [vmem:[%s235 + $0x58] sm:$0xff]
        %v262 = vld [vmem:[%s235 + $0x60] sm:$0xff]
        %v263 = vld [vmem:[%s235 + $0x68] sm:$0xff]
        %v264 = vld [vmem:[%s235 + $0x70] sm:$0xff]
        %v265 = vld [vmem:[%s235 + $0x78] sm:$0xff]
        %v266 = vld [vmem:[%s196] sm:$0xff]
        %v267 = vld [vmem:[%s196 + $0x8] sm:$0xff]
        %v268 = vld [vmem:[%s239] sm:$0x1]
        %v270 = vlaneseq
        %v271 = vshrl.u32 %v270, 7
        %v272 = vsub.s32 0, %v271
        %v273 = vrot.slane %v268, %v272
        %vm275 = vcmask 130048
        %v277 = vsel %vm275, %v250, 0
        %v280 = vsel %vm275, %v251, 0
        %v283 = vsel %vm275, %v252, 0
        %v286 = vsel %vm275, %v253, 0
        %v289 = vsel %vm275, %v254, 0
        %v292 = vsel %vm275, %v255, 0
        %v295 = vsel %vm275, %v256, 0
        %v298 = vsel %vm275, %v257, 0
        %v301 = vsel %vm275, %v258, 0
        %v304 = vsel %vm275, %v259, 0
        %v307 = vsel %vm275, %v260, 0
        %v310 = vsel %vm275, %v261, 0
        %v313 = vsel %vm275, %v262, 0
        %v316 = vsel %vm275, %v263, 0
        %v319 = vsel %vm275, %v264, 0
        %v322 = vsel %vm275, %v265, 0
        %324 = vmatprep.subr.mxu0 0.0
        %325 = vmatpush1.msra.mxu0 %v266
        %326 = vmatprep.subr.mxu0 0.0
        %327 = vmatpush1.msra.mxu0 %v267
        %328 = vmatprep.subr.mxu0 0.0
        %329 = vmatpush1.msra.mxu0 0.0
        %330 = vmatprep.subr.mxu0 0.0
        %331 = vmatpush1.msra.mxu0 0.0
        %332 = vmatprep.subr.mxu0 0.0
        %333 = vmatpush1.msra.mxu0 0.0
        %334 = vmatprep.subr.mxu0 0.0
        %335 = vmatpush1.msra.mxu0 0.0
        %336 = vmatprep.subr.mxu0 0.0
        %337 = vmatpush1.msra.mxu0 0.0
        %338 = vmatprep.subr.mxu0 0.0
        %339 = vmatpush1.msra.mxu0 0.0
        %340 = vmatprep.subr.mxu0 0.0
        %341 = vmatpush1.msra.mxu0 0.0
        %342 = vmatprep.subr.mxu0 0.0
        %343 = vmatpush1.msra.mxu0 0.0
        %344 = vmatprep.subr.mxu0 0.0
        %345 = vmatpush1.msra.mxu0 0.0
        %346 = vmatprep.subr.mxu0 0.0
        %347 = vmatpush1.msra.mxu0 0.0
        %348 = vmatprep.subr.mxu0 0.0
        %349 = vmatpush1.msra.mxu0 0.0
        %350 = vmatprep.subr.mxu0 0.0
        %351 = vmatpush1.msra.mxu0 0.0
        %352 = vmatprep.subr.mxu0 0.0
        %353 = vmatpush1.msra.mxu0 0.0
        %354 = vmatprep.subr.mxu0 0.0
        %355 = vmatpush1.msra.mxu0 0.0
        %356 = vmatprep.subr.mxu0 0.0
        %357 = vmatpush1.msra.mxu0 0.0
        %358 = vmatprep.subr.mxu0 0.0
        %359 = vmatpush1.msra.mxu0 0.0
        %360 = vmatprep.subr.mxu0 0.0
        %361 = vmatpush1.msra.mxu0 0.0
        %362 = vmatprep.subr.mxu0 0.0
        %363 = vmatpush1.msra.mxu0 0.0
        %364 = vmatprep.subr.mxu0 0.0
        %365 = vmatpush1.msra.mxu0 0.0
        %366 = vmatprep.subr.mxu0 0.0
        %367 = vmatpush1.msra.mxu0 0.0
        %368 = vmatprep.subr.mxu0 0.0
        %369 = vmatpush1.msra.mxu0 0.0
        %370 = vmatprep.subr.mxu0 0.0
        %371 = vmatpush1.msra.mxu0 0.0
        %372 = vmatprep.subr.mxu0 0.0
        %373 = vmatpush1.msra.mxu0 0.0
        %374 = vmatprep.subr.mxu0 0.0
        %375 = vmatpush1.msra.mxu0 0.0
        %376 = vmatprep.subr.mxu0 0.0
        %377 = vmatpush1.msra.mxu0 0.0
        %378 = vmatprep.subr.mxu0 0.0
        %379 = vmatpush1.msra.mxu0 0.0
        %380 = vmatprep.subr.mxu0 0.0
        %381 = vmatpush1.msra.mxu0 0.0
        %382 = vmatprep.subr.mxu0 0.0
        %383 = vmatpush1.msra.mxu0 0.0
        %384 = vmatprep.subr.mxu0 0.0
        %385 = vmatpush1.msra.mxu0 0.0
        %386 = vmatprep.subr.mxu0 0.0
        %387 = vmatpush1.msra.mxu0 0.0
        %388 = vmatprep.mubr.f32.mxu0 0.0
        %389 = vmatmul.mubr.f32.gmra.mrb[0].mxu0 %v277
        %v390 = vpop.f32.mrb[0].mxu0
        %v391 = vadd.f32 %v273, %v390
        %v392 = vpop.f32.mrb[0].mxu0
        %393 = vmatprep.mubr.f32.mxu0 0.0
        %394 = vmatmul.mubr.f32.gmra.mrb[0].mxu0 %v280
        %v395 = vpop.f32.mrb[0].mxu0
        %v396 = vadd.f32 %v273, %v395
        %v397 = vpop.f32.mrb[0].mxu0
        %398 = vmatprep.mubr.f32.mxu0 0.0
        %399 = vmatmul.mubr.f32.gmra.mrb[0].mxu0 %v283
        %v400 = vpop.f32.mrb[0].mxu0
        %v401 = vadd.f32 %v273, %v400
        %v402 = vpop.f32.mrb[0].mxu0
        %403 = vmatprep.mubr.f32.mxu0 0.0
        %404 = vmatmul.mubr.f32.gmra.mrb[0].mxu0 %v286
        %v405 = vpop.f32.mrb[0].mxu0
        %v406 = vadd.f32 %v273, %v405
        %v407 = vpop.f32.mrb[0].mxu0
        %408 = vmatprep.mubr.f32.mxu0 0.0
        %409 = vmatmul.mubr.f32.gmra.mrb[0].mxu0 %v289
        %v410 = vpop.f32.mrb[0].mxu0
        %v411 = vadd.f32 %v273, %v410
        %v412 = vpop.f32.mrb[0].mxu0
        %413 = vmatprep.mubr.f32.mxu0 0.0
        %414 = vmatmul.mubr.f32.gmra.mrb[0].mxu0 %v292
        %v415 = vpop.f32.mrb[0].mxu0
        %v416 = vadd.f32 %v273, %v415
        %v417 = vpop.f32.mrb[0].mxu0
        %418 = vmatprep.mubr.f32.mxu0 0.0
        %419 = vmatmul.mubr.f32.gmra.mrb[0].mxu0 %v295
        %v420 = vpop.f32.mrb[0].mxu0
        %v421 = vadd.f32 %v273, %v420
        %v422 = vpop.f32.mrb[0].mxu0
        %423 = vmatprep.mubr.f32.mxu0 0.0
        %424 = vmatmul.mubr.f32.gmra.mrb[0].mxu0 %v298
        %v425 = vpop.f32.mrb[0].mxu0
        %v426 = vadd.f32 %v273, %v425
        %v427 = vpop.f32.mrb[0].mxu0
        %428 = vmatprep.mubr.f32.mxu0 0.0
        %429 = vmatmul.mubr.f32.gmra.mrb[0].mxu0 %v301
        %v430 = vpop.f32.mrb[0].mxu0
        %v431 = vadd.f32 %v273, %v430
        %v432 = vpop.f32.mrb[0].mxu0
        %433 = vmatprep.mubr.f32.mxu0 0.0
        %434 = vmatmul.mubr.f32.gmra.mrb[0].mxu0 %v304
        %v435 = vpop.f32.mrb[0].mxu0
        %v436 = vadd.f32 %v273, %v435
        %v437 = vpop.f32.mrb[0].mxu0
        %438 = vmatprep.mubr.f32.mxu0 0.0
        %439 = vmatmul.mubr.f32.gmra.mrb[0].mxu0 %v307
        %v440 = vpop.f32.mrb[0].mxu0
        %v441 = vadd.f32 %v273, %v440
        %v442 = vpop.f32.mrb[0].mxu0
        %443 = vmatprep.mubr.f32.mxu0 0.0
        %444 = vmatmul.mubr.f32.gmra.mrb[0].mxu0 %v310
        %v445 = vpop.f32.mrb[0].mxu0
        %v446 = vadd.f32 %v273, %v445
        %v447 = vpop.f32.mrb[0].mxu0
        %448 = vmatprep.mubr.f32.mxu0 0.0
        %449 = vmatmul.mubr.f32.gmra.mrb[0].mxu0 %v313
        %v450 = vpop.f32.mrb[0].mxu0
        %v451 = vadd.f32 %v273, %v450
        %v452 = vpop.f32.mrb[0].mxu0
        %453 = vmatprep.mubr.f32.mxu0 0.0
        %454 = vmatmul.mubr.f32.gmra.mrb[0].mxu0 %v316
        %v455 = vpop.f32.mrb[0].mxu0
        %v456 = vadd.f32 %v273, %v455
        %v457 = vpop.f32.mrb[0].mxu0
        %458 = vmatprep.mubr.f32.mxu0 0.0
        %459 = vmatmul.mubr.f32.gmra.mrb[0].mxu0 %v319
        %v460 = vpop.f32.mrb[0].mxu0
        %v461 = vadd.f32 %v273, %v460
        %v462 = vpop.f32.mrb[0].mxu0
        %463 = vmatprep.mubr.f32.mxu0 0.0
        %464 = vmatmul.mubr.f32.gmra.mrb[0].mxu0 %v322
        %v465 = vpop.f32.mrb[0].mxu0
        %v466 = vadd.f32 %v273, %v465
        %v467 = vpop.f32.mrb[0].mxu0
        %468 = vdwg.mxu0
        %v469 = vpack.c.bf16 %v396, %v391
        %v470 = vpack.c.bf16 %v406, %v401
        %v471 = vpack.c.bf16 %v416, %v411
        %v472 = vpack.c.bf16 %v426, %v421
        %v473 = vpack.c.bf16 %v436, %v431
        %v474 = vpack.c.bf16 %v446, %v441
        %v475 = vpack.c.bf16 %v456, %v451
        %v476 = vpack.c.bf16 %v466, %v461
        %v485 = vunpack.c.l.b16 %v469
        %v486 = vunpack.c.h.b16 %v469
        %v487 = vunpack.c.l.b16 %v470
        %v488 = vunpack.c.h.b16 %v470
        %v489 = vunpack.c.l.b16 %v471
        %v490 = vunpack.c.h.b16 %v471
        %v491 = vunpack.c.l.b16 %v472
        %v492 = vunpack.c.h.b16 %v472
        %v493 = vunpack.c.l.b16 %v473
        %v494 = vunpack.c.h.b16 %v473
        %v495 = vunpack.c.l.b16 %v474
        %v496 = vunpack.c.h.b16 %v474
        %v497 = vunpack.c.l.b16 %v475
        %v498 = vunpack.c.h.b16 %v475
        %v499 = vunpack.c.l.b16 %v476
        %v500 = vunpack.c.h.b16 %v476
        %v501 = vpack.c.b16 %v485, %v485
        %v502 = vpack.c.b16 %v486, %v486
        %v503 = vpack.c.b16 %v487, %v487
        %v504 = vpack.c.b16 %v488, %v488
        %v505 = vpack.c.b16 %v489, %v489
        %v506 = vpack.c.b16 %v490, %v490
        %v507 = vpack.c.b16 %v491, %v491
        %v508 = vpack.c.b16 %v492, %v492
        %v509 = vpack.c.b16 %v493, %v493
        %v510 = vpack.c.b16 %v494, %v494
        %v511 = vpack.c.b16 %v495, %v495
        %v512 = vpack.c.b16 %v496, %v496
        %v513 = vpack.c.b16 %v497, %v497
        %v514 = vpack.c.b16 %v498, %v498
        %v515 = vpack.c.b16 %v499, %v499
        %v516 = vpack.c.b16 %v500, %v500
        %vm533 = vcmask 125952
        %534 = vst.msk [vmem:[%s248] sm:$0xf] %vm533, %v501
        %535 = vst.msk [vmem:[%s248 + $0x4] sm:$0xf] %vm533, %v502
        %536 = vst.msk [vmem:[%s248 + $0x8] sm:$0xf] %vm533, %v503
        %537 = vst.msk [vmem:[%s248 + $0xc] sm:$0xf] %vm533, %v504
        %538 = vst.msk [vmem:[%s248 + $0x10] sm:$0xf] %vm533, %v505
        %539 = vst.msk [vmem:[%s248 + $0x14] sm:$0xf] %vm533, %v506
        %540 = vst.msk [vmem:[%s248 + $0x18] sm:$0xf] %vm533, %v507
        %541 = vst.msk [vmem:[%s248 + $0x1c] sm:$0xf] %vm533, %v508
        %542 = vst.msk [vmem:[%s248 + $0x20] sm:$0xf] %vm533, %v509
        %543 = vst.msk [vmem:[%s248 + $0x24] sm:$0xf] %vm533, %v510
        %544 = vst.msk [vmem:[%s248 + $0x28] sm:$0xf] %vm533, %v511
        %545 = vst.msk [vmem:[%s248 + $0x2c] sm:$0xf] %vm533, %v512
        %546 = vst.msk [vmem:[%s248 + $0x30] sm:$0xf] %vm533, %v513
        %547 = vst.msk [vmem:[%s248 + $0x34] sm:$0xf] %vm533, %v514
        %548 = vst.msk [vmem:[%s248 + $0x38] sm:$0xf] %vm533, %v515
        %549 = vst.msk [vmem:[%s248 + $0x3c] sm:$0xf] %vm533, %v516
        %s550 = smul.u32 16, %s22
        %p551 = scmp.lt.s32.totalorder %s21, 1
        %s552 = scalar_select %p551, %s21, 1
        %p553 = scmp.lt.s32.totalorder %s550, 47
        %s554 = scalar_select %p553, %s550, 47
        %s555 = smul.addr %s552, 48
        %s556 = sadd.s32 %s554, %s555
        %s557 = smul.addr %s556, 4
        %s558 = scalar_lea.vmem %s3, %s557
        // Predicated region
        $region37: #{gcnnet_forward.4} parent=31 // pred_check
          %p559 = pneg %p127
        $region38: #{gcnnet_forward.4} parent=31 // pred_check_branch
          %561 = sbr.rel (%p559) target = $region40
        $region39: #{gcnnet_forward.4} parent=31 // pred_region
          %s562 = smul.u32 16, %s22
        $region40: #{gcnnet_forward.4} parent=31 // pred_fallthru
          _
      $region32: #{gcnnet_forward.4} parent=5 // pred_fallthru
        _
      %p563 = scmp.le.s32.totalorder 2, %s12
      // Predicated region
      $region41: #{gcnnet_forward.4} parent=5 // pred_check
        %p564 = pneg %p563
      $region42: #{gcnnet_forward.4} parent=5 // pred_check_branch
        %566 = sbr.rel (%p564) target = $region44
      $region43: #{gcnnet_forward.4} parent=5 // pred_region
        %s567 = ssub.s32 %s12, 2
        // Predicated region
        $region45: #{gcnnet_forward.4} parent=43 // pred_check
          %p568 = pneg %p133
        $region46: #{gcnnet_forward.4} parent=43 // pred_check_branch
          %570 = sbr.rel (%p568) target = $region48
        $region47: #{gcnnet_forward.4} parent=43 // pred_region
          %s571 = smul.u32 16, %s24
          %p572 = scmp.lt.s32.totalorder %s23, 1
          %s573 = scalar_select %p572, %s23, 1
          %p574 = scmp.lt.s32.totalorder %s571, 47
          %s575 = scalar_select %p574, %s571, 47
          %s576 = smul.addr %s573, 48
          %s577 = sadd.s32 %s575, %s576
          %s578 = smul.addr %s577, 4
          %s579 = scalar_lea.vmem %s3, %s578
        $region48: #{gcnnet_forward.4} parent=43 // pred_fallthru
          _
      $region44: #{gcnnet_forward.4} parent=5 // pred_fallthru
        _
    $region6: #{gcnnet_forward.4} parent=1 // loop_footer
      %s16 = sadd.s32 1, %s12
    $region7: #{gcnnet_forward.4} parent=1 // loop_footer_branch
      %11 = sbr.rel target = $region3
    $region8: #{gcnnet_forward.4} parent=1 // loop_exit
      _
    %580 = vsyncpa [#allocation3], 1
    %s581 = scalar_lea.sflag [#allocation3], 1
    %582 = vsyncpa %s581, 1

// kernel: gcnnet_forward.6
$region0: #{gcnnet_forward.6}
  #allocation0 [shape = 'u32[]', space=smem, size = 0x4, offset = 0x4, fixed_abs, tag = 'smem constant byte address 0x4 - core index']
  #allocation1 [shape = 'u32[144,128]{1,0:T(1,128)}', space=vmem, size = 0x12000, scoped, tag = 'internal scratch']
  %s0 = inlined_call_operand.vmem [shape: f32[2,384,16], index: 0, kind: input, shape index: {}]
  %s1 = inlined_call_operand.vmem [shape: f32[2,16,8], index: 1, kind: input, shape index: {}]
  %s2 = inlined_call_operand.vmem [shape: f32[2,1,8], index: 2, kind: input, shape index: {}]
  %s3 = inlined_call_operand.vmem [shape: bf16[2,384,8], index: 3, kind: output, shape index: {}]
  %s4 = sld [smem:[#allocation0]]
  $region45: #{gcnnet_forward.6} parent=0
    _
  %s6 = ssub.s32 1, %s4
  %s7 = scalar_select 0, %s6, %s4
  loop: start=0, step=1, limit=8
  $region2: #{gcnnet_forward.6} parent=0 // loop_pre_header
    _
  $region3: #{gcnnet_forward.6} parent=0 // loop_header
    %s9 = sphi 0, %s13
    %p10 = scmp.ge.s32.totalorder %s9, 8
    %s16 = sphi 0, %s28
    %s17 = sphi 0, %s24
    %s18 = sphi 0, %s16
    %s19 = sphi 0, %s17
    %s20 = sphi 0, %s18
    %s21 = sphi 0, %s19
    %s33 = sphi 0, %s35
    %s36 = sphi 0, %s33
    %s37 = sphi 0, %s36
    %s53 = sphi 0, %s37
    %s59 = sphi 0, %s61
    %s62 = sphi 0, %s59
    %s63 = sphi 0, %s62
    %s79 = sphi 0, %s63
    %s85 = sphi 0, %s87
    %s88 = sphi 0, %s85
    %s89 = sphi 0, %s88
    %s105 = sphi 0, %s89
    %s113 = sphi 0, %s115
    %s116 = sphi 0, %s113
    %s117 = sphi 0, %s116
    %s133 = sphi 0, %s117
  $region4: #{gcnnet_forward.6} parent=0 // loop_header_branch
    %12 = sbr.rel (%p10) target = $region8
  $region5: #{gcnnet_forward.6} parent=0 // loop_body
    %s14 = ssub.s32 %s9, 1
    %s15 = ssub.s32 %s9, 2
    %s22 = sadd.s32 1, %s17
    %p23 = scmp.ge.s32.totalorder %s22, 3
    %s24 = scalar_select %p23, 0, %s22
    %s25 = sadd.s32 1, %s16
    %s26 = scalar_select %p23, %s25, %s16
    %p27 = scmp.ge.s32.totalorder %s26, 2
    %s28 = scalar_select %p27, 0, %s26
    %s29 = ssub.s32 %s16, %s28
    %s30 = ssub.s32 %s17, %s24
    %s31 = sor.u32 %s29, %s30
    %p32 = scmp.eq.s32.totalorder %s31, 0
    %s34 = sadd.s32 %s33, 1
    %s35 = scalar_select %p32, %s33, %s34
    %p38 = pneg %p32
    %p39 = scmp.eq.s32.totalorder %s9, 5
    %p40 = por %p38, %p39
    %p41 = scmp.ne.s32.totalorder %s33, %s36
    %p42 = scmp.eq.s32.totalorder %s9, 0
    %p43 = por %p41, %p42
    %p44 = scmp.ne.s32.totalorder %s33, %s36
    %p45 = scmp.eq.s32.totalorder %s14, 5
    %p46 = por %p44, %p45
    %p47 = scmp.ne.s32.totalorder %s36, %s37
    %p48 = scmp.eq.s32.totalorder %s14, 0
    %p49 = por %p47, %p48
    %p50 = scmp.ne.s32.totalorder %s36, %s37
    %p51 = scmp.eq.s32.totalorder %s15, 5
    %p52 = por %p50, %p51
    %p54 = scmp.ne.s32.totalorder %s37, %s53
    %p55 = scmp.eq.s32.totalorder %s15, 0
    %p56 = por %p54, %p55
    %s57 = ssub.s32 %s16, %s28
    %p58 = scmp.eq.s32.totalorder %s57, 0
    %s60 = sadd.s32 %s59, 1
    %s61 = scalar_select %p58, %s59, %s60
    %p64 = pneg %p58
    %p65 = scmp.eq.s32.totalorder %s9, 5
    %p66 = por %p64, %p65
    %p67 = scmp.ne.s32.totalorder %s59, %s62
    %p68 = scmp.eq.s32.totalorder %s9, 0
    %p69 = por %p67, %p68
    %p70 = scmp.ne.s32.totalorder %s59, %s62
    %p71 = scmp.eq.s32.totalorder %s14, 5
    %p72 = por %p70, %p71
    %p73 = scmp.ne.s32.totalorder %s62, %s63
    %p74 = scmp.eq.s32.totalorder %s14, 0
    %p75 = por %p73, %p74
    %p76 = scmp.ne.s32.totalorder %s62, %s63
    %p77 = scmp.eq.s32.totalorder %s15, 5
    %p78 = por %p76, %p77
    %p80 = scmp.ne.s32.totalorder %s63, %s79
    %p81 = scmp.eq.s32.totalorder %s15, 0
    %p82 = por %p80, %p81
    %s83 = ssub.s32 %s16, %s28
    %p84 = scmp.eq.s32.totalorder %s83, 0
    %s86 = sadd.s32 %s85, 1
    %s87 = scalar_select %p84, %s85, %s86
    %p90 = pneg %p84
    %p91 = scmp.eq.s32.totalorder %s9, 5
    %p92 = por %p90, %p91
    %p93 = scmp.ne.s32.totalorder %s85, %s88
    %p94 = scmp.eq.s32.totalorder %s9, 0
    %p95 = por %p93, %p94
    %p96 = scmp.ne.s32.totalorder %s85, %s88
    %p97 = scmp.eq.s32.totalorder %s14, 5
    %p98 = por %p96, %p97
    %p99 = scmp.ne.s32.totalorder %s88, %s89
    %p100 = scmp.eq.s32.totalorder %s14, 0
    %p101 = por %p99, %p100
    %p102 = scmp.ne.s32.totalorder %s88, %s89
    %p103 = scmp.eq.s32.totalorder %s15, 5
    %p104 = por %p102, %p103
    %p106 = scmp.ne.s32.totalorder %s89, %s105
    %p107 = scmp.eq.s32.totalorder %s15, 0
    %p108 = por %p106, %p107
    %s109 = ssub.s32 %s16, %s28
    %s110 = ssub.s32 %s17, %s24
    %s111 = sor.u32 %s109, %s110
    %p112 = scmp.eq.s32.totalorder %s111, 0
    %s114 = sadd.s32 %s113, 1
    %s115 = scalar_select %p112, %s113, %s114
    %p118 = pneg %p112
    %p119 = scmp.eq.s32.totalorder %s9, 5
    %p120 = por %p118, %p119
    %p121 = scmp.ne.s32.totalorder %s113, %s116
    %p122 = scmp.eq.s32.totalorder %s9, 0
    %p123 = por %p121, %p122
    %p124 = scmp.ne.s32.totalorder %s113, %s116
    %p125 = scmp.eq.s32.totalorder %s14, 5
    %p126 = por %p124, %p125
    %p127 = scmp.ne.s32.totalorder %s116, %s117
    %p128 = scmp.eq.s32.totalorder %s14, 0
    %p129 = por %p127, %p128
    %p130 = scmp.ne.s32.totalorder %s116, %s117
    %p131 = scmp.eq.s32.totalorder %s15, 5
    %p132 = por %p130, %p131
    %p134 = scmp.ne.s32.totalorder %s117, %s133
    %p135 = scmp.eq.s32.totalorder %s15, 0
    %p136 = por %p134, %p135
    %p137 = scmp.le.s32.totalorder 1, %s9
    %p138 = scmp.lt.s32.totalorder %s9, 7
    %p139 = pnand %p137, %p138
    %p140 = pneg %p139
    // Predicated region
    $region9: #{gcnnet_forward.6} parent=5 // pred_check
      _
    $region10: #{gcnnet_forward.6} parent=5 // pred_check_branch
      %142 = sbr.rel (%p139) target = $region12
    $region11: #{gcnnet_forward.6} parent=5 // pred_region
      %s143 = ssub.s32 %s9, 1
    $region12: #{gcnnet_forward.6} parent=5 // pred_fallthru
      _
    %p144 = scmp.lt.s32.totalorder %s9, 6
    // Predicated region
    $region13: #{gcnnet_forward.6} parent=5 // pred_check
      %p145 = pneg %p144
    $region14: #{gcnnet_forward.6} parent=5 // pred_check_branch
      %147 = sbr.rel (%p145) target = $region16
    $region15: #{gcnnet_forward.6} parent=5 // pred_region
      // Predicated region
      $region17: #{gcnnet_forward.6} parent=15 // pred_check
        %p148 = pneg %p43
      $region18: #{gcnnet_forward.6} parent=15 // pred_check_branch
        %150 = sbr.rel (%p148) target = $region20
      $region19: #{gcnnet_forward.6} parent=15 // pred_region
        %s151 = smul.u32 16, %s17
        %p152 = scmp.lt.s32.totalorder %s16, 1
        %s153 = scalar_select %p152, %s16, 1
        %p154 = scmp.lt.s32.totalorder %s151, 47
        %s155 = scalar_select %p154, %s151, 47
        %s156 = smul.addr %s153, 48
        %s157 = sadd.s32 %s155, %s156
        %s158 = smul.addr %s157, 8
        %s159 = scalar_lea.vmem %s0, %s158
        %s160 = smul.u32 16, %s17
      $region20: #{gcnnet_forward.6} parent=15 // pred_fallthru
        _
      // Predicated region
      $region21: #{gcnnet_forward.6} parent=15 // pred_check
        %p161 = pneg %p69
      $region22: #{gcnnet_forward.6} parent=15 // pred_check_branch
        %163 = sbr.rel (%p161) target = $region24
      $region23: #{gcnnet_forward.6} parent=15 // pred_region
        %p164 = scmp.lt.s32.totalorder %s16, 1
        %s165 = scalar_select %p164, %s16, 1
        %s166 = smul.addr %s165, 2
        %s167 = smul.addr %s166, 8
        %s168 = scalar_lea.vmem %s1, %s167
      $region24: #{gcnnet_forward.6} parent=15 // pred_fallthru
        _
      // Predicated region
      $region25: #{gcnnet_forward.6} parent=15 // pred_check
        %p169 = pneg %p95
      $region26: #{gcnnet_forward.6} parent=15 // pred_check_branch
        %171 = sbr.rel (%p169) target = $region28
      $region27: #{gcnnet_forward.6} parent=15 // pred_region
        %p172 = scmp.lt.s32.totalorder %s16, 1
        %s173 = scalar_select %p172, %s16, 1
        %s174 = scalar_lea.vmem %s2, %s173
      $region28: #{gcnnet_forward.6} parent=15 // pred_fallthru
        _
    $region16: #{gcnnet_forward.6} parent=5 // pred_fallthru
      _
    %p175 = scmp.le.s32.totalorder 1, %s9
    %p176 = scmp.lt.s32.totalorder %s9, 7
    %p177 = pnand %p175, %p176
    %p178 = pneg %p177
    // Predicated region
    $region29: #{gcnnet_forward.6} parent=5 // pred_check
      _
    $region30: #{gcnnet_forward.6} parent=5 // pred_check_branch
      %180 = sbr.rel (%p177) target = $region32
    $region31: #{gcnnet_forward.6} parent=5 // pred_region
      %s181 = ssub.s32 %s9, 1
      %s182 = smul.u32 16, %s19
      %p183 = scmp.lt.s32.totalorder %s18, 1
      %s184 = scalar_select %p183, %s18, 1
      %p185 = scmp.lt.s32.totalorder %s182, 47
      %s186 = scalar_select %p185, %s182, 47
      %s187 = smul.addr %s184, 48
      %s188 = sadd.s32 %s186, %s187
      %s189 = smul.addr %s188, 8
      %s190 = scalar_lea.vmem %s0, %s189
      %p191 = pneg %p49
      %p192 = pneg %p46
      %p193 = scmp.lt.s32.totalorder %s18, 1
      %s194 = scalar_select %p193, %s18, 1
      %s195 = smul.addr %s194, 2
      %s196 = smul.addr %s195, 8
      %s197 = scalar_lea.vmem %s1, %s196
      %p198 = pneg %p75
      %p199 = pneg %p72
      %p200 = scmp.lt.s32.totalorder %s18, 1
      %s201 = scalar_select %p200, %s18, 1
      %s202 = scalar_lea.vmem %s2, %s201
      %p203 = pneg %p101
      %p204 = pneg %p98
      %p205 = pneg %p129
      %p206 = pneg %p126
      %s207 = smul.u32 16, %s19
      %p208 = scmp.lt.s32.totalorder %s18, 1
      %s209 = scalar_select %p208, %s18, 1
      %p210 = scmp.lt.s32.totalorder %s207, 47
      %s211 = scalar_select %p210, %s207, 47
      %s212 = smul.addr %s209, 48
      %s213 = sadd.s32 %s211, %s212
      %s214 = smul.addr %s213, 4
      %s215 = scalar_lea.vmem %s3, %s214
      %s216 = smul.u32 16, %s19
      %p217 = scmp.lt.s32.totalorder %s18, 1
      %s218 = scalar_select %p217, %s18, 1
      %p219 = scmp.lt.s32.totalorder %s216, 47
      %s220 = scalar_select %p219, %s216, 47
      %s221 = smul.addr %s218, 48
      %s222 = sadd.s32 %s220, %s221
      %s223 = smul.addr %s222, 8
      %s224 = scalar_lea.vmem %s0, %s223
      %s225 = smul.u32 16, %s19
      %p226 = scmp.lt.s32.totalorder %s18, 1
      %s227 = scalar_select %p226, %s18, 1
      %s228 = smul.addr %s227, 2
      %s229 = smul.addr %s228, 8
      %s230 = scalar_lea.vmem %s1, %s229
      %p231 = scmp.lt.s32.totalorder %s18, 1
      %s232 = scalar_select %p231, %s18, 1
      %s233 = scalar_lea.vmem %s2, %s232
      %s234 = smul.u32 16, %s19
      %p235 = scmp.lt.s32.totalorder %s18, 1
      %s236 = scalar_select %p235, %s18, 1
      %p237 = scmp.lt.s32.totalorder %s234, 47
      %s238 = scalar_select %p237, %s234, 47
      %s239 = smul.addr %s236, 48
      %s240 = sadd.s32 %s238, %s239
      %s241 = smul.addr %s240, 4
      %s242 = scalar_lea.vmem %s3, %s241
      %s243 = smul.u32 16, %s19
      %v244 = vld [vmem:[%s224] sm:$0xff]
      %v245 = vld [vmem:[%s224 + $0x8] sm:$0xff]
      %v246 = vld [vmem:[%s224 + $0x10] sm:$0xff]
      %v247 = vld [vmem:[%s224 + $0x18] sm:$0xff]
      %v248 = vld [vmem:[%s224 + $0x20] sm:$0xff]
      %v249 = vld [vmem:[%s224 + $0x28] sm:$0xff]
      %v250 = vld [vmem:[%s224 + $0x30] sm:$0xff]
      %v251 = vld [vmem:[%s224 + $0x38] sm:$0xff]
      %v252 = vld [vmem:[%s224 + $0x40] sm:$0xff]
      %v253 = vld [vmem:[%s224 + $0x48] sm:$0xff]
      %v254 = vld [vmem:[%s224 + $0x50] sm:$0xff]
      %v255 = vld [vmem:[%s224 + $0x58] sm:$0xff]
      %v256 = vld [vmem:[%s224 + $0x60] sm:$0xff]
      %v257 = vld [vmem:[%s224 + $0x68] sm:$0xff]
      %v258 = vld [vmem:[%s224 + $0x70] sm:$0xff]
      %v259 = vld [vmem:[%s224 + $0x78] sm:$0xff]
      %v260 = vld [vmem:[%s230] sm:$0xff]
      %v261 = vld [vmem:[%s230 + $0x8] sm:$0xff]
      %v262 = vld [vmem:[%s233] sm:$0x1]
      %v264 = vlaneseq
      %v265 = vshrl.u32 %v264, 7
      %v266 = vsub.s32 0, %v265
      %v267 = vrot.slane %v262, %v266
      %vm269 = vcmask 130048
      %v271 = vsel %vm269, %v244, 0
      %v274 = vsel %vm269, %v245, 0
      %v277 = vsel %vm269, %v246, 0
      %v280 = vsel %vm269, %v247, 0
      %v283 = vsel %vm269, %v248, 0
      %v286 = vsel %vm269, %v249, 0
      %v289 = vsel %vm269, %v250, 0
      %v292 = vsel %vm269, %v251, 0
      %v295 = vsel %vm269, %v252, 0
      %v298 = vsel %vm269, %v253, 0
      %v301 = vsel %vm269, %v254, 0
      %v304 = vsel %vm269, %v255, 0
      %v307 = vsel %vm269, %v256, 0
      %v310 = vsel %vm269, %v257, 0
      %v313 = vsel %vm269, %v258, 0
      %v316 = vsel %vm269, %v259, 0
      %318 = vmatprep.subr.mxu0 0.0
      %319 = vmatpush1.msra.mxu0 %v260
      %320 = vmatprep.subr.mxu0 0.0
      %321 = vmatpush1.msra.mxu0 %v261
      %322 = vmatprep.subr.mxu0 0.0
      %323 = vmatpush1.msra.mxu0 0.0
      %324 = vmatprep.subr.mxu0 0.0
      %325 = vmatpush1.msra.mxu0 0.0
      %326 = vmatprep.subr.mxu0 0.0
      %327 = vmatpush1.msra.mxu0 0.0
      %328 = vmatprep.subr.mxu0 0.0
      %329 = vmatpush1.msra.mxu0 0.0
      %330 = vmatprep.subr.mxu0 0.0
      %331 = vmatpush1.msra.mxu0 0.0
      %332 = vmatprep.subr.mxu0 0.0
      %333 = vmatpush1.msra.mxu0 0.0
      %334 = vmatprep.subr.mxu0 0.0
      %335 = vmatpush1.msra.mxu0 0.0
      %336 = vmatprep.subr.mxu0 0.0
      %337 = vmatpush1.msra.mxu0 0.0
      %338 = vmatprep.subr.mxu0 0.0
      %339 = vmatpush1.msra.mxu0 0.0
      %340 = vmatprep.subr.mxu0 0.0
      %341 = vmatpush1.msra.mxu0 0.0
      %342 = vmatprep.subr.mxu0 0.0
      %343 = vmatpush1.msra.mxu0 0.0
      %344 = vmatprep.subr.mxu0 0.0
      %345 = vmatpush1.msra.mxu0 0.0
      %346 = vmatprep.subr.mxu0 0.0
      %347 = vmatpush1.msra.mxu0 0.0
      %348 = vmatprep.subr.mxu0 0.0
      %349 = vmatpush1.msra.mxu0 0.0
      %350 = vmatprep.subr.mxu0 0.0
      %351 = vmatpush1.msra.mxu0 0.0
      %352 = vmatprep.subr.mxu0 0.0
      %353 = vmatpush1.msra.mxu0 0.0
      %354 = vmatprep.subr.mxu0 0.0
      %355 = vmatpush1.msra.mxu0 0.0
      %356 = vmatprep.subr.mxu0 0.0
      %357 = vmatpush1.msra.mxu0 0.0
      %358 = vmatprep.subr.mxu0 0.0
      %359 = vmatpush1.msra.mxu0 0.0
      %360 = vmatprep.subr.mxu0 0.0
      %361 = vmatpush1.msra.mxu0 0.0
      %362 = vmatprep.subr.mxu0 0.0
      %363 = vmatpush1.msra.mxu0 0.0
      %364 = vmatprep.subr.mxu0 0.0
      %365 = vmatpush1.msra.mxu0 0.0
      %366 = vmatprep.subr.mxu0 0.0
      %367 = vmatpush1.msra.mxu0 0.0
      %368 = vmatprep.subr.mxu0 0.0
      %369 = vmatpush1.msra.mxu0 0.0
      %370 = vmatprep.subr.mxu0 0.0
      %371 = vmatpush1.msra.mxu0 0.0
      %372 = vmatprep.subr.mxu0 0.0
      %373 = vmatpush1.msra.mxu0 0.0
      %374 = vmatprep.subr.mxu0 0.0
      %375 = vmatpush1.msra.mxu0 0.0
      %376 = vmatprep.subr.mxu0 0.0
      %377 = vmatpush1.msra.mxu0 0.0
      %378 = vmatprep.subr.mxu0 0.0
      %379 = vmatpush1.msra.mxu0 0.0
      %380 = vmatprep.subr.mxu0 0.0
      %381 = vmatpush1.msra.mxu0 0.0
      %382 = vmatprep.mubr.f32.mxu0 0.0
      %383 = vmatmul.mubr.f32.gmra.mrb[0].mxu0 %v271
      %v384 = vpop.f32.mrb[0].mxu0
      %v385 = vadd.f32 %v267, %v384
      %v386 = vpop.f32.mrb[0].mxu0
      %387 = vmatprep.mubr.f32.mxu0 0.0
      %388 = vmatmul.mubr.f32.gmra.mrb[0].mxu0 %v274
      %v389 = vpop.f32.mrb[0].mxu0
      %v390 = vadd.f32 %v267, %v389
      %v391 = vpop.f32.mrb[0].mxu0
      %392 = vmatprep.mubr.f32.mxu0 0.0
      %393 = vmatmul.mubr.f32.gmra.mrb[0].mxu0 %v277
      %v394 = vpop.f32.mrb[0].mxu0
      %v395 = vadd.f32 %v267, %v394
      %v396 = vpop.f32.mrb[0].mxu0
      %397 = vmatprep.mubr.f32.mxu0 0.0
      %398 = vmatmul.mubr.f32.gmra.mrb[0].mxu0 %v280
      %v399 = vpop.f32.mrb[0].mxu0
      %v400 = vadd.f32 %v267, %v399
      %v401 = vpop.f32.mrb[0].mxu0
      %402 = vmatprep.mubr.f32.mxu0 0.0
      %403 = vmatmul.mubr.f32.gmra.mrb[0].mxu0 %v283
      %v404 = vpop.f32.mrb[0].mxu0
      %v405 = vadd.f32 %v267, %v404
      %v406 = vpop.f32.mrb[0].mxu0
      %407 = vmatprep.mubr.f32.mxu0 0.0
      %408 = vmatmul.mubr.f32.gmra.mrb[0].mxu0 %v286
      %v409 = vpop.f32.mrb[0].mxu0
      %v410 = vadd.f32 %v267, %v409
      %v411 = vpop.f32.mrb[0].mxu0
      %412 = vmatprep.mubr.f32.mxu0 0.0
      %413 = vmatmul.mubr.f32.gmra.mrb[0].mxu0 %v289
      %v414 = vpop.f32.mrb[0].mxu0
      %v415 = vadd.f32 %v267, %v414
      %v416 = vpop.f32.mrb[0].mxu0
      %417 = vmatprep.mubr.f32.mxu0 0.0
      %418 = vmatmul.mubr.f32.gmra.mrb[0].mxu0 %v292
      %v419 = vpop.f32.mrb[0].mxu0
      %v420 = vadd.f32 %v267, %v419
      %v421 = vpop.f32.mrb[0].mxu0
      %422 = vmatprep.mubr.f32.mxu0 0.0
      %423 = vmatmul.mubr.f32.gmra.mrb[0].mxu0 %v295
      %v424 = vpop.f32.mrb[0].mxu0
      %v425 = vadd.f32 %v267, %v424
      %v426 = vpop.f32.mrb[0].mxu0
      %427 = vmatprep.mubr.f32.mxu0 0.0
      %428 = vmatmul.mubr.f32.gmra.mrb[0].mxu0 %v298
      %v429 = vpop.f32.mrb[0].mxu0
      %v430 = vadd.f32 %v267, %v429
      %v431 = vpop.f32.mrb[0].mxu0
      %432 = vmatprep.mubr.f32.mxu0 0.0
      %433 = vmatmul.mubr.f32.gmra.mrb[0].mxu0 %v301
      %v434 = vpop.f32.mrb[0].mxu0
      %v435 = vadd.f32 %v267, %v434
      %v436 = vpop.f32.mrb[0].mxu0
      %437 = vmatprep.mubr.f32.mxu0 0.0
      %438 = vmatmul.mubr.f32.gmra.mrb[0].mxu0 %v304
      %v439 = vpop.f32.mrb[0].mxu0
      %v440 = vadd.f32 %v267, %v439
      %v441 = vpop.f32.mrb[0].mxu0
      %442 = vmatprep.mubr.f32.mxu0 0.0
      %443 = vmatmul.mubr.f32.gmra.mrb[0].mxu0 %v307
      %v444 = vpop.f32.mrb[0].mxu0
      %v445 = vadd.f32 %v267, %v444
      %v446 = vpop.f32.mrb[0].mxu0
      %447 = vmatprep.mubr.f32.mxu0 0.0
      %448 = vmatmul.mubr.f32.gmra.mrb[0].mxu0 %v310
      %v449 = vpop.f32.mrb[0].mxu0
      %v450 = vadd.f32 %v267, %v449
      %v451 = vpop.f32.mrb[0].mxu0
      %452 = vmatprep.mubr.f32.mxu0 0.0
      %453 = vmatmul.mubr.f32.gmra.mrb[0].mxu0 %v313
      %v454 = vpop.f32.mrb[0].mxu0
      %v455 = vadd.f32 %v267, %v454
      %v456 = vpop.f32.mrb[0].mxu0
      %457 = vmatprep.mubr.f32.mxu0 0.0
      %458 = vmatmul.mubr.f32.gmra.mrb[0].mxu0 %v316
      %v459 = vpop.f32.mrb[0].mxu0
      %v460 = vadd.f32 %v267, %v459
      %v461 = vpop.f32.mrb[0].mxu0
      %462 = vdwg.mxu0
      %v463 = vpack.c.bf16 %v390, %v385
      %v464 = vpack.c.bf16 %v400, %v395
      %v465 = vpack.c.bf16 %v410, %v405
      %v466 = vpack.c.bf16 %v420, %v415
      %v467 = vpack.c.bf16 %v430, %v425
      %v468 = vpack.c.bf16 %v440, %v435
      %v469 = vpack.c.bf16 %v450, %v445
      %v470 = vpack.c.bf16 %v460, %v455
      %v479 = vunpack.c.l.b16 %v463
      %v480 = vunpack.c.h.b16 %v463
      %v481 = vunpack.c.l.b16 %v464
      %v482 = vunpack.c.h.b16 %v464
      %v483 = vunpack.c.l.b16 %v465
      %v484 = vunpack.c.h.b16 %v465
      %v485 = vunpack.c.l.b16 %v466
      %v486 = vunpack.c.h.b16 %v466
      %v487 = vunpack.c.l.b16 %v467
      %v488 = vunpack.c.h.b16 %v467
      %v489 = vunpack.c.l.b16 %v468
      %v490 = vunpack.c.h.b16 %v468
      %v491 = vunpack.c.l.b16 %v469
      %v492 = vunpack.c.h.b16 %v469
      %v493 = vunpack.c.l.b16 %v470
      %v494 = vunpack.c.h.b16 %v470
      %v495 = vpack.c.b16 %v479, %v479
      %v496 = vpack.c.b16 %v480, %v480
      %v497 = vpack.c.b16 %v481, %v481
      %v498 = vpack.c.b16 %v482, %v482
      %v499 = vpack.c.b16 %v483, %v483
      %v500 = vpack.c.b16 %v484, %v484
      %v501 = vpack.c.b16 %v485, %v485
      %v502 = vpack.c.b16 %v486, %v486
      %v503 = vpack.c.b16 %v487, %v487
      %v504 = vpack.c.b16 %v488, %v488
      %v505 = vpack.c.b16 %v489, %v489
      %v506 = vpack.c.b16 %v490, %v490
      %v507 = vpack.c.b16 %v491, %v491
      %v508 = vpack.c.b16 %v492, %v492
      %v509 = vpack.c.b16 %v493, %v493
      %v510 = vpack.c.b16 %v494, %v494
      %vm527 = vcmask 60416
      %528 = vst.msk [vmem:[%s242] sm:$0xf] %vm527, %v495
      %529 = vst.msk [vmem:[%s242 + $0x4] sm:$0xf] %vm527, %v496
      %530 = vst.msk [vmem:[%s242 + $0x8] sm:$0xf] %vm527, %v497
      %531 = vst.msk [vmem:[%s242 + $0xc] sm:$0xf] %vm527, %v498
      %532 = vst.msk [vmem:[%s242 + $0x10] sm:$0xf] %vm527, %v499
      %533 = vst.msk [vmem:[%s242 + $0x14] sm:$0xf] %vm527, %v500
      %534 = vst.msk [vmem:[%s242 + $0x18] sm:$0xf] %vm527, %v501
      %535 = vst.msk [vmem:[%s242 + $0x1c] sm:$0xf] %vm527, %v502
      %536 = vst.msk [vmem:[%s242 + $0x20] sm:$0xf] %vm527, %v503
      %537 = vst.msk [vmem:[%s242 + $0x24] sm:$0xf] %vm527, %v504
      %538 = vst.msk [vmem:[%s242 + $0x28] sm:$0xf] %vm527, %v505
      %539 = vst.msk [vmem:[%s242 + $0x2c] sm:$0xf] %vm527, %v506
      %540 = vst.msk [vmem:[%s242 + $0x30] sm:$0xf] %vm527, %v507
      %541 = vst.msk [vmem:[%s242 + $0x34] sm:$0xf] %vm527, %v508
      %542 = vst.msk [vmem:[%s242 + $0x38] sm:$0xf] %vm527, %v509
      %543 = vst.msk [vmem:[%s242 + $0x3c] sm:$0xf] %vm527, %v510
      %s544 = smul.u32 16, %s19
      %p545 = scmp.lt.s32.totalorder %s18, 1
      %s546 = scalar_select %p545, %s18, 1
      %p547 = scmp.lt.s32.totalorder %s544, 47
      %s548 = scalar_select %p547, %s544, 47
      %s549 = smul.addr %s546, 48
      %s550 = sadd.s32 %s548, %s549
      %s551 = smul.addr %s550, 4
      %s552 = scalar_lea.vmem %s3, %s551
      // Predicated region
      $region33: #{gcnnet_forward.6} parent=31 // pred_check
        %p553 = pneg %p126
      $region34: #{gcnnet_forward.6} parent=31 // pred_check_branch
        %555 = sbr.rel (%p553) target = $region36
      $region35: #{gcnnet_forward.6} parent=31 // pred_region
        %s556 = smul.u32 16, %s19
      $region36: #{gcnnet_forward.6} parent=31 // pred_fallthru
        _
    $region32: #{gcnnet_forward.6} parent=5 // pred_fallthru
      _
    %p557 = scmp.le.s32.totalorder 2, %s9
    // Predicated region
    $region37: #{gcnnet_forward.6} parent=5 // pred_check
      %p558 = pneg %p557
    $region38: #{gcnnet_forward.6} parent=5 // pred_check_branch
      %560 = sbr.rel (%p558) target = $region40
    $region39: #{gcnnet_forward.6} parent=5 // pred_region
      %s561 = ssub.s32 %s9, 2
      // Predicated region
      $region41: #{gcnnet_forward.6} parent=39 // pred_check
        %p562 = pneg %p132
      $region42: #{gcnnet_forward.6} parent=39 // pred_check_branch
        %564 = sbr.rel (%p562) target = $region44
      $region43: #{gcnnet_forward.6} parent=39 // pred_region
        %s565 = smul.u32 16, %s21
        %p566 = scmp.lt.s32.totalorder %s20, 1
        %s567 = scalar_select %p566, %s20, 1
        %p568 = scmp.lt.s32.totalorder %s565, 47
        %s569 = scalar_select %p568, %s565, 47
        %s570 = smul.addr %s567, 48
        %s571 = sadd.s32 %s569, %s570
        %s572 = smul.addr %s571, 4
        %s573 = scalar_lea.vmem %s3, %s572
      $region44: #{gcnnet_forward.6} parent=39 // pred_fallthru
        _
    $region40: #{gcnnet_forward.6} parent=5 // pred_fallthru
      _
  $region6: #{gcnnet_forward.6} parent=0 // loop_footer
    %s13 = sadd.s32 1, %s9
  $region7: #{gcnnet_forward.6} parent=0 // loop_footer_branch
    %8 = sbr.rel target = $region3
  $region8: #{gcnnet_forward.6} parent=0 // loop_exit
    _

// kernel: gcnnet_forward.5
$region0: #{gcnnet_forward.5}
  #allocation0 [shape = 'u32[]', space=smem, size = 0x4, offset = 0x4, fixed_abs, tag = 'smem constant byte address 0x4 - core index']
  #allocation1 [shape = 'u32[144,128]{1,0:T(1,128)}', space=vmem, size = 0x12000, scoped, tag = 'internal scratch']
  #allocation2 [shape = 'f32[128,1]{1,0:T(8,128)}', space=vmem, size = 0x10000, scoped, tag = 'scratch operand']
  #allocation3 [shape = 'f32[128,1]{1,0:T(8,128)}', space=vmem, size = 0x10000, scoped, tag = 'scratch operand']
  #allocation4 [shape = 'f32[128,16]{1,0:T(8,128)}', space=vmem, size = 0x10000, scoped, tag = 'scratch operand']
  #allocation5 [shape = 'f32[128,16]{1,0:T(8,128)}', space=vmem, size = 0x10000, scoped, tag = 'scratch operand']
  #allocation6 [shape = 's32[1]{0}', space=sflag, size = 0x4, scoped, tag = 'scoped memory for gcnnet_forward.5']
  #allocation7 [shape = 'u8[512]{0}', space=smem, size = 0x200, scoped, tag = 'prefetched SMEM operand 0']
  #allocation8 [shape = 'u8[512]{0}', space=smem, size = 0x200, scoped, tag = 'prefetched SMEM operand 1']
  #allocation9 [shape = 'u8[512]{0}', space=smem, size = 0x200, scoped, tag = 'prefetched SMEM operand 2']
  #allocation10 [shape = 'u8[512]{0}', space=smem, size = 0x200, scoped, tag = 'prefetched SMEM operand 3']
  #allocation11 [shape = 'u8[512]{0}', space=smem, size = 0x200, scoped, tag = 'prefetched SMEM operand 4']
  %s0 = inlined_call_operand.vmem [shape: s32[18], index: 0, kind: input, shape index: {}]
  %s1 = inlined_call_operand.vmem [shape: s32[18], index: 1, kind: input, shape index: {}]
  %s2 = inlined_call_operand.vmem [shape: s32[18], index: 2, kind: input, shape index: {}]
  %s3 = inlined_call_operand.vmem [shape: s32[18], index: 3, kind: input, shape index: {}]
  %s4 = inlined_call_operand.vmem [shape: s32[18], index: 4, kind: input, shape index: {}]
  %s5 = inlined_call_operand.vmem [shape: bf16[2,384,384], index: 5, kind: input, shape index: {}]
  %s6 = inlined_call_operand.vmem [shape: bf16[2,384,16], index: 6, kind: input, shape index: {}]
  %s7 = inlined_call_operand.vmem [shape: f32[2,384,16], index: 7, kind: output, shape index: {}]
  %s8 = sld [smem:[#allocation0]]
  $region90: #{gcnnet_forward.5} parent=0
    _
  %s10 = ssub.s32 1, %s8
  %s11 = scalar_select 0, %s10, %s8
  %s12 = sshll.u32 %s0, 4
  %s13 = int_to_ptr.vmem [resolvable:$true] %s12
  %15 = dma.vmem_to_smem %s13, 16, [#allocation7], [#allocation6]
  %s16 = sshll.u32 %s1, 4
  %s17 = int_to_ptr.vmem [resolvable:$true] %s16
  %19 = dma.vmem_to_smem %s17, 16, [#allocation8], [#allocation6]
  %s20 = sshll.u32 %s2, 4
  %s21 = int_to_ptr.vmem [resolvable:$true] %s20
  %23 = dma.vmem_to_smem %s21, 16, [#allocation9], [#allocation6]
  %s24 = sshll.u32 %s3, 4
  %s25 = int_to_ptr.vmem [resolvable:$true] %s24
  %27 = dma.vmem_to_smem %s25, 16, [#allocation10], [#allocation6]
  %s28 = sshll.u32 %s4, 4
  %s29 = int_to_ptr.vmem [resolvable:$true] %s28
  %31 = dma.vmem_to_smem %s29, 16, [#allocation11], [#allocation6]
  %32 = dma.done [#allocation6], 80
  %33 = sfence
  $region1: #{gcnnet_forward.5} parent=0
    #allocation12 [shape = 'u8[65536]{0}', space=vmem, size = 0x10000, scoped, tag = 'input window, operand 5']
    loop: start=0, step=1, limit=20
    $region2: #{gcnnet_forward.5} parent=1 // loop_pre_header
      _
    $region3: #{gcnnet_forward.5} parent=1 // loop_header
      %s35 = sphi 0, %s39
      %p36 = scmp.ge.s32.totalorder %s35, 20
      %s55 = sphi 0, %s57
      %s58 = sphi 0, %s55
      %s59 = sphi 0, %s58
      %s75 = sphi 0, %s59
      %s83 = sphi 0, %s85
      %s86 = sphi 0, %s83
      %s87 = sphi 0, %s86
      %s103 = sphi 0, %s87
      %s115 = sphi 0, %s117
      %s118 = sphi 0, %s115
      %s119 = sphi 0, %s118
      %s135 = sphi 0, %s119
    $region4: #{gcnnet_forward.5} parent=1 // loop_header_branch
      %38 = sbr.rel (%p36) target = $region8
    $region5: #{gcnnet_forward.5} parent=1 // loop_body
      %s40 = ssub.s32 %s35, 1
      %s41 = ssub.s32 %s35, 2
      %s42 = sadd.s32 %s35, 1
      %s43 = sld [smem:[#allocation8 + %s35]]
      %s44 = sld [smem:[#allocation7 + %s35]]
      %s45 = sld [smem:[#allocation9 + %s35]]
      %s46 = sld [smem:[#allocation8 + %s42]]
      %s47 = sld [smem:[#allocation7 + %s42]]
      %s48 = sld [smem:[#allocation9 + %s42]]
      %s49 = ssub.s32 %s43, %s46
      %s50 = ssub.s32 %s44, %s47
      %s51 = sor.u32 %s49, %s50
      %s52 = ssub.s32 %s45, %s48
      %s53 = sor.u32 %s51, %s52
      %p54 = scmp.eq.s32.totalorder %s53, 0
      %s56 = sadd.s32 %s55, 1
      %s57 = scalar_select %p54, %s55, %s56
      %p60 = pneg %p54
      %p61 = scmp.eq.s32.totalorder %s35, 17
      %p62 = por %p60, %p61
      %p63 = scmp.ne.s32.totalorder %s55, %s58
      %p64 = scmp.eq.s32.totalorder %s35, 0
      %p65 = por %p63, %p64
      %p66 = scmp.ne.s32.totalorder %s55, %s58
      %p67 = scmp.eq.s32.totalorder %s40, 17
      %p68 = por %p66, %p67
      %p69 = scmp.ne.s32.totalorder %s58, %s59
      %p70 = scmp.eq.s32.totalorder %s40, 0
      %p71 = por %p69, %p70
      %p72 = scmp.ne.s32.totalorder %s58, %s59
      %p73 = scmp.eq.s32.totalorder %s41, 17
      %p74 = por %p72, %p73
      %p76 = scmp.ne.s32.totalorder %s59, %s75
      %p77 = scmp.eq.s32.totalorder %s41, 0
      %p78 = por %p76, %p77
      %s79 = sld [smem:[#allocation8 + %s35]]
      %s80 = sld [smem:[#allocation8 + %s42]]
      %s81 = ssub.s32 %s79, %s80
      %p82 = scmp.eq.s32.totalorder %s81, 0
      %s84 = sadd.s32 %s83, 1
      %s85 = scalar_select %p82, %s83, %s84
      %p88 = pneg %p82
      %p89 = scmp.eq.s32.totalorder %s35, 17
      %p90 = por %p88, %p89
      %p91 = scmp.ne.s32.totalorder %s83, %s86
      %p92 = scmp.eq.s32.totalorder %s35, 0
      %p93 = por %p91, %p92
      %p94 = scmp.ne.s32.totalorder %s83, %s86
      %p95 = scmp.eq.s32.totalorder %s40, 17
      %p96 = por %p94, %p95
      %p97 = scmp.ne.s32.totalorder %s86, %s87
      %p98 = scmp.eq.s32.totalorder %s40, 0
      %p99 = por %p97, %p98
      %p100 = scmp.ne.s32.totalorder %s86, %s87
      %p101 = scmp.eq.s32.totalorder %s41, 17
      %p102 = por %p100, %p101
      %p104 = scmp.ne.s32.totalorder %s87, %s103
      %p105 = scmp.eq.s32.totalorder %s41, 0
      %p106 = por %p104, %p105
      %s107 = sld [smem:[#allocation8 + %s35]]
      %s108 = sld [smem:[#allocation7 + %s35]]
      %s109 = sld [smem:[#allocation8 + %s42]]
      %s110 = sld [smem:[#allocation7 + %s42]]
      %s111 = ssub.s32 %s107, %s109
      %s112 = ssub.s32 %s108, %s110
      %s113 = sor.u32 %s111, %s112
      %p114 = scmp.eq.s32.totalorder %s113, 0
      %s116 = sadd.s32 %s115, 1
      %s117 = scalar_select %p114, %s115, %s116
      %p120 = pneg %p114
      %p121 = scmp.eq.s32.totalorder %s35, 17
      %p122 = por %p120, %p121
      %p123 = scmp.ne.s32.totalorder %s115, %s118
      %p124 = scmp.eq.s32.totalorder %s35, 0
      %p125 = por %p123, %p124
      %p126 = scmp.ne.s32.totalorder %s115, %s118
      %p127 = scmp.eq.s32.totalorder %s40, 17
      %p128 = por %p126, %p127
      %p129 = scmp.ne.s32.totalorder %s118, %s119
      %p130 = scmp.eq.s32.totalorder %s40, 0
      %p131 = por %p129, %p130
      %p132 = scmp.ne.s32.totalorder %s118, %s119
      %p133 = scmp.eq.s32.totalorder %s41, 17
      %p134 = por %p132, %p133
      %p136 = scmp.ne.s32.totalorder %s119, %s135
      %p137 = scmp.eq.s32.totalorder %s41, 0
      %p138 = por %p136, %p137
      %p139 = scmp.le.s32.totalorder 1, %s35
      %p140 = scmp.lt.s32.totalorder %s35, 19
      %p141 = pnand %p139, %p140
      %p142 = pneg %p141
      // Predicated region
      $region9: #{gcnnet_forward.5} parent=5 // pred_check
        _
      $region10: #{gcnnet_forward.5} parent=5 // pred_check_branch
        %144 = sbr.rel (%p141) target = $region12
      $region11: #{gcnnet_forward.5} parent=5 // pred_region
        %s145 = ssub.s32 %s35, 1
      $region12: #{gcnnet_forward.5} parent=5 // pred_fallthru
        _
      %p146 = scmp.lt.s32.totalorder %s35, 18
      // Predicated region
      $region13: #{gcnnet_forward.5} parent=5 // pred_check
        %p147 = pneg %p146
      $region14: #{gcnnet_forward.5} parent=5 // pred_check_branch
        %149 = sbr.rel (%p147) target = $region16
      $region15: #{gcnnet_forward.5} parent=5 // pred_region
        // Predicated region
        $region17: #{gcnnet_forward.5} parent=15 // pred_check
          %p150 = pneg %p65
        $region18: #{gcnnet_forward.5} parent=15 // pred_check_branch
          %152 = sbr.rel (%p150) target = $region20
        $region19: #{gcnnet_forward.5} parent=15 // pred_region
          %s153 = sand.u32 %s55, 1
          %s154 = sand.u32 %s55, 1
          %s155 = smul.addr %s154, 64
          %s156 = scalar_lea.vmem [#allocation12], %s155
          %s157 = sld [smem:[#allocation8 + %s35]]
          %s158 = sld [smem:[#allocation7 + %s35]]
          %s159 = sld [smem:[#allocation9 + %s35]]
          %s160 = smul.u32 16, %s158
          %s161 = smul.addr %s160, 3
          %s162 = sadd.s32 %s159, %s161
          %s163 = smul.addr %s157, 144
          %s164 = sadd.s32 %s162, %s163
          %s165 = smul.addr %s164, 4
          %s166 = scalar_lea.vmem %s5, %s165
          // Predicated region
          $region21: #{gcnnet_forward.5} parent=19 // pred_check
            _
          $region22: #{gcnnet_forward.5} parent=19 // pred_check_branch
            %168 = sbr.rel (0) target = $region24
          $region23: #{gcnnet_forward.5} parent=19 // pred_region
            // Predicated region
            $region25: #{gcnnet_forward.5} parent=23 // pred_check
              _
            $region26: #{gcnnet_forward.5} parent=23 // pred_check_branch
              %170 = sbr.rel target = $region28
            $region27: #{gcnnet_forward.5} parent=23 // pred_region
              // Predicated region
              $region40: #{gcnnet_forward.5} parent=27 // pred_check
                _
              $region41: #{gcnnet_forward.5} parent=27 // pred_check_branch
                %215 = sbr.rel (0) target = $region43
              $region42: #{gcnnet_forward.5} parent=27 // pred_region
                loop: start=0, step=1, limit=1
                $region44: #{gcnnet_forward.5} parent=42 // loop_pre_header
                  _
                $region45: #{gcnnet_forward.5} parent=42 // loop_header
                  %s217 = sphi 0, %s221
                  %p218 = scmp.ge.s32.totalorder %s217, 1
                  %s222 = sphi %s166, %s166
                  %s223 = sphi %s156, %s156
                $region46: #{gcnnet_forward.5} parent=42 // loop_header_branch
                  %220 = sbr.rel (%p218) target = $region50
                $region47: #{gcnnet_forward.5} parent=42 // loop_body
                  _
                $region48: #{gcnnet_forward.5} parent=42 // loop_footer
                  %s221 = sadd.s32 1, %s217
                $region49: #{gcnnet_forward.5} parent=42 // loop_footer_branch
                  %216 = sbr.rel target = $region45
                $region50: #{gcnnet_forward.5} parent=42 // loop_exit
                  _
                loop: start=0, step=1, limit=1
                $region51: #{gcnnet_forward.5} parent=42 // loop_pre_header
                  _
                $region52: #{gcnnet_forward.5} parent=42 // loop_header
                  %s226 = sphi 0, %s230
                  %p227 = scmp.ge.s32.totalorder %s226, 1
                  %s231 = sphi %s166, %s166
                  %s232 = sphi %s156, %s156
                $region53: #{gcnnet_forward.5} parent=42 // loop_header_branch
                  %229 = sbr.rel (%p227) target = $region57
                $region54: #{gcnnet_forward.5} parent=42 // loop_body
                  %v233 = vld [vmem:[%s231] sm:$0xf]
                  %234 = vst [vmem:[%s232] sm:$0xf] %v233
                  %v235 = vld [vmem:[%s231 + $0xc] sm:$0xf]
                  %236 = vst [vmem:[%s232 + $0x4] sm:$0xf] %v235
                  %v237 = vld [vmem:[%s231 + $0x18] sm:$0xf]
                  %238 = vst [vmem:[%s232 + $0x8] sm:$0xf] %v237
                  %v239 = vld [vmem:[%s231 + $0x24] sm:$0xf]
                  %240 = vst [vmem:[%s232 + $0xc] sm:$0xf] %v239
                  %v241 = vld [vmem:[%s231 + $0x30] sm:$0xf]
                  %242 = vst [vmem:[%s232 + $0x10] sm:$0xf] %v241
                  %v243 = vld [vmem:[%s231 + $0x3c] sm:$0xf]
                  %244 = vst [vmem:[%s232 + $0x14] sm:$0xf] %v243
                  %v245 = vld [vmem:[%s231 + $0x48] sm:$0xf]
                  %246 = vst [vmem:[%s232 + $0x18] sm:$0xf] %v245
                  %v247 = vld [vmem:[%s231 + $0x54] sm:$0xf]
                  %248 = vst [vmem:[%s232 + $0x1c] sm:$0xf] %v247
                  %v249 = vld [vmem:[%s231 + $0x60] sm:$0xf]
                  %250 = vst [vmem:[%s232 + $0x20] sm:$0xf] %v249
                  %v251 = vld [vmem:[%s231 + $0x6c] sm:$0xf]
                  %252 = vst [vmem:[%s232 + $0x24] sm:$0xf] %v251
                  %v253 = vld [vmem:[%s231 + $0x78] sm:$0xf]
                  %254 = vst [vmem:[%s232 + $0x28] sm:$0xf] %v253
                  %v255 = vld [vmem:[%s231 + $0x84] sm:$0xf]
                  %256 = vst [vmem:[%s232 + $0x2c] sm:$0xf] %v255
                  %v257 = vld [vmem:[%s231 + $0x90] sm:$0xf]
                  %258 = vst [vmem:[%s232 + $0x30] sm:$0xf] %v257
                  %v259 = vld [vmem:[%s231 + $0x9c] sm:$0xf]
                  %260 = vst [vmem:[%s232 + $0x34] sm:$0xf] %v259
                  %v261 = vld [vmem:[%s231 + $0xa8] sm:$0xf]
                  %262 = vst [vmem:[%s232 + $0x38] sm:$0xf] %v261
                  %v263 = vld [vmem:[%s231 + $0xb4] sm:$0xf]
                  %264 = vst [vmem:[%s232 + $0x3c] sm:$0xf] %v263
                $region55: #{gcnnet_forward.5} parent=42 // loop_footer
                  %s230 = sadd.s32 1, %s226
                $region56: #{gcnnet_forward.5} parent=42 // loop_footer_branch
                  %225 = sbr.rel target = $region52
                $region57: #{gcnnet_forward.5} parent=42 // loop_exit
                  _
              $region43: #{gcnnet_forward.5} parent=27 // pred_fallthru
                _
            $region28: #{gcnnet_forward.5} parent=23 // pred_fallthru
              _
            // Predicated region
            $region29: #{gcnnet_forward.5} parent=23 // pred_check
              _
            $region30: #{gcnnet_forward.5} parent=23 // pred_check_branch
              %172 = sbr.rel (0) target = $region32
            $region31: #{gcnnet_forward.5} parent=23 // pred_region
              loop: start=0, step=1, limit=1
              $region33: #{gcnnet_forward.5} parent=31 // loop_pre_header
                _
              $region34: #{gcnnet_forward.5} parent=31 // loop_header
                %s175 = sphi 0, %s179
                %p176 = scmp.ge.s32.totalorder %s175, 1
                %s180 = sphi %s166, %s166
                %s181 = sphi %s156, %s156
              $region35: #{gcnnet_forward.5} parent=31 // loop_header_branch
                %178 = sbr.rel (%p176) target = $region39
              $region36: #{gcnnet_forward.5} parent=31 // loop_body
                %v182 = vld [vmem:[%s180] sm:$0xf]
                %183 = vst [vmem:[%s181] sm:$0xf] %v182
                %v184 = vld [vmem:[%s180 + $0xc] sm:$0xf]
                %185 = vst [vmem:[%s181 + $0x4] sm:$0xf] %v184
                %v186 = vld [vmem:[%s180 + $0x18] sm:$0xf]
                %187 = vst [vmem:[%s181 + $0x8] sm:$0xf] %v186
                %v188 = vld [vmem:[%s180 + $0x24] sm:$0xf]
                %189 = vst [vmem:[%s181 + $0xc] sm:$0xf] %v188
                %v190 = vld [vmem:[%s180 + $0x30] sm:$0xf]
                %191 = vst [vmem:[%s181 + $0x10] sm:$0xf] %v190
                %v192 = vld [vmem:[%s180 + $0x3c] sm:$0xf]
                %193 = vst [vmem:[%s181 + $0x14] sm:$0xf] %v192
                %v194 = vld [vmem:[%s180 + $0x48] sm:$0xf]
                %195 = vst [vmem:[%s181 + $0x18] sm:$0xf] %v194
                %v196 = vld [vmem:[%s180 + $0x54] sm:$0xf]
                %197 = vst [vmem:[%s181 + $0x1c] sm:$0xf] %v196
                %v198 = vld [vmem:[%s180 + $0x60] sm:$0xf]
                %199 = vst [vmem:[%s181 + $0x20] sm:$0xf] %v198
                %v200 = vld [vmem:[%s180 + $0x6c] sm:$0xf]
                %201 = vst [vmem:[%s181 + $0x24] sm:$0xf] %v200
                %v202 = vld [vmem:[%s180 + $0x78] sm:$0xf]
                %203 = vst [vmem:[%s181 + $0x28] sm:$0xf] %v202
                %v204 = vld [vmem:[%s180 + $0x84] sm:$0xf]
                %205 = vst [vmem:[%s181 + $0x2c] sm:$0xf] %v204
                %v206 = vld [vmem:[%s180 + $0x90] sm:$0xf]
                %207 = vst [vmem:[%s181 + $0x30] sm:$0xf] %v206
                %v208 = vld [vmem:[%s180 + $0x9c] sm:$0xf]
                %209 = vst [vmem:[%s181 + $0x34] sm:$0xf] %v208
                %v210 = vld [vmem:[%s180 + $0xa8] sm:$0xf]
                %211 = vst [vmem:[%s181 + $0x38] sm:$0xf] %v210
                %v212 = vld [vmem:[%s180 + $0xb4] sm:$0xf]
                %213 = vst [vmem:[%s181 + $0x3c] sm:$0xf] %v212
              $region37: #{gcnnet_forward.5} parent=31 // loop_footer
                %s179 = sadd.s32 1, %s175
              $region38: #{gcnnet_forward.5} parent=31 // loop_footer_branch
                %174 = sbr.rel target = $region34
              $region39: #{gcnnet_forward.5} parent=31 // loop_exit
                _
            $region32: #{gcnnet_forward.5} parent=23 // pred_fallthru
              _
          $region24: #{gcnnet_forward.5} parent=19 // pred_fallthru
            _
          %265 = vnop
        $region20: #{gcnnet_forward.5} parent=15 // pred_fallthru
          _
        // Predicated region
        $region58: #{gcnnet_forward.5} parent=15 // pred_check
          %p266 = pneg %p93
        $region59: #{gcnnet_forward.5} parent=15 // pred_check_branch
          %268 = sbr.rel (%p266) target = $region61
        $region60: #{gcnnet_forward.5} parent=15 // pred_region
          %s269 = sld [smem:[#allocation8 + %s35]]
          %p270 = scmp.lt.s32.totalorder %s269, 1
          %s271 = scalar_select %p270, %s269, 1
          %s272 = smul.addr %s271, 48
          %s273 = smul.addr %s272, 4
          %s274 = scalar_lea.vmem %s6, %s273
          %s275 = sld [smem:[#allocation8 + %s35]]
        $region61: #{gcnnet_forward.5} parent=15 // pred_fallthru
          _
      $region16: #{gcnnet_forward.5} parent=5 // pred_fallthru
        _
      %p276 = scmp.le.s32.totalorder 1, %s35
      %p277 = scmp.lt.s32.totalorder %s35, 19
      %p278 = pnand %p276, %p277
      %p279 = pneg %p278
      // Predicated region
      $region62: #{gcnnet_forward.5} parent=5 // pred_check
        _
      $region63: #{gcnnet_forward.5} parent=5 // pred_check_branch
        %281 = sbr.rel (%p278) target = $region65
      $region64: #{gcnnet_forward.5} parent=5 // pred_region
        %s282 = ssub.s32 %s35, 1
        %s283 = sand.u32 %s58, 1
        %s284 = sand.u32 %s58, 1
        %s285 = smul.addr %s284, 64
        %s286 = scalar_lea.vmem [#allocation12], %s285
        // Predicated region
        $region66: #{gcnnet_forward.5} parent=64 // pred_check
          %p287 = pneg %p71
        $region67: #{gcnnet_forward.5} parent=64 // pred_check_branch
          %289 = sbr.rel (%p287) target = $region69
        $region68: #{gcnnet_forward.5} parent=64 // pred_region
          _
        $region69: #{gcnnet_forward.5} parent=64 // pred_fallthru
          _
        %s290 = sand.u32 %s58, 1
        %s291 = sand.u32 %s58, 1
        %s292 = smul.addr %s291, 64
        %s293 = scalar_lea.vmem [#allocation12], %s292
        %p294 = pneg %p71
        %p295 = pneg %p68
        %s296 = sld [smem:[#allocation8 + %s40]]
        %p297 = scmp.lt.s32.totalorder %s296, 1
        %s298 = scalar_select %p297, %s296, 1
        %s299 = smul.addr %s298, 48
        %s300 = smul.addr %s299, 4
        %s301 = scalar_lea.vmem %s6, %s300
        %p302 = pneg %p99
        %p303 = pneg %p96
        %p304 = pneg %p131
        %p305 = pneg %p128
        %s306 = sld [smem:[#allocation8 + %s40]]
        %s307 = sld [smem:[#allocation7 + %s40]]
        %s308 = smul.u32 16, %s307
        %p309 = scmp.lt.s32.totalorder %s306, 1
        %s310 = scalar_select %p309, %s306, 1
        %p311 = scmp.lt.s32.totalorder %s308, 47
        %s312 = scalar_select %p311, %s308, 47
        %s313 = smul.addr %s310, 48
        %s314 = sadd.s32 %s312, %s313
        %s315 = smul.addr %s314, 8
        %s316 = scalar_lea.vmem %s7, %s315
        %s317 = sld [smem:[#allocation8 + %s40]]
        %s318 = sld [smem:[#allocation7 + %s40]]
        %s319 = sld [smem:[#allocation9 + %s40]]
        %s320 = smul.u32 16, %s318
        %s321 = sld [smem:[#allocation8 + %s40]]
        %p322 = scmp.lt.s32.totalorder %s321, 1
        %s323 = scalar_select %p322, %s321, 1
        %s324 = smul.addr %s323, 48
        %s325 = smul.addr %s324, 4
        %s326 = scalar_lea.vmem %s6, %s325
        %s327 = sld [smem:[#allocation8 + %s40]]
        %s328 = sld [smem:[#allocation8 + %s40]]
        %s329 = sld [smem:[#allocation7 + %s40]]
        %s330 = smul.u32 16, %s329
        %p331 = scmp.lt.s32.totalorder %s328, 1
        %s332 = scalar_select %p331, %s328, 1
        %p333 = scmp.lt.s32.totalorder %s330, 47
        %s334 = scalar_select %p333, %s330, 47
        %s335 = smul.addr %s332, 48
        %s336 = sadd.s32 %s334, %s335
        %s337 = smul.addr %s336, 8
        %s338 = scalar_lea.vmem %s7, %s337
        %s339 = sld [smem:[#allocation8 + %s40]]
        %s340 = sld [smem:[#allocation7 + %s40]]
        %s341 = smul.u32 16, %s340
        %s343 = sld [smem:[#allocation10 + %s40]]
        %p344 = scmp.eq.s32.totalorder %s343, 1
        %s345 = sld [smem:[#allocation11 + %s40]]
        %p346 = scmp.eq.s32.totalorder %s345, 1
        %s347 = sld [smem:[#allocation9 + %s40]]
        // Predicated region
        $region70: #{gcnnet_forward.5} parent=64 // pred_check
          %p348 = pneg %p344
        $region71: #{gcnnet_forward.5} parent=64 // pred_check_branch
          %350 = sbr.rel (%p348) target = $region73
        $region72: #{gcnnet_forward.5} parent=64 // pred_region
          %vm351 = vcmask 7168
          %352 = vst.msk [vmem:[#allocation2] sm:$0xff] %vm351, -inf
          %353 = vst.msk [vmem:[#allocation2 + $0x8] sm:$0xff] %vm351, -inf
          %354 = vst.msk [vmem:[#allocation2 + $0x10] sm:$0xff] %vm351, -inf
          %355 = vst.msk [vmem:[#allocation2 + $0x18] sm:$0xff] %vm351, -inf
          %356 = vst.msk [vmem:[#allocation2 + $0x20] sm:$0xff] %vm351, -inf
          %357 = vst.msk [vmem:[#allocation2 + $0x28] sm:$0xff] %vm351, -inf
          %358 = vst.msk [vmem:[#allocation2 + $0x30] sm:$0xff] %vm351, -inf
          %359 = vst.msk [vmem:[#allocation2 + $0x38] sm:$0xff] %vm351, -inf
          %360 = vst.msk [vmem:[#allocation2 + $0x40] sm:$0xff] %vm351, -inf
          %361 = vst.msk [vmem:[#allocation2 + $0x48] sm:$0xff] %vm351, -inf
          %362 = vst.msk [vmem:[#allocation2 + $0x50] sm:$0xff] %vm351, -inf
          %363 = vst.msk [vmem:[#allocation2 + $0x58] sm:$0xff] %vm351, -inf
          %364 = vst.msk [vmem:[#allocation2 + $0x60] sm:$0xff] %vm351, -inf
          %365 = vst.msk [vmem:[#allocation2 + $0x68] sm:$0xff] %vm351, -inf
          %366 = vst.msk [vmem:[#allocation2 + $0x70] sm:$0xff] %vm351, -inf
          %367 = vst.msk [vmem:[#allocation2 + $0x78] sm:$0xff] %vm351, -inf
          %368 = vst.msk [vmem:[#allocation3] sm:$0xff] %vm351, 0.0
          %369 = vst.msk [vmem:[#allocation3 + $0x8] sm:$0xff] %vm351, 0.0
          %370 = vst.msk [vmem:[#allocation3 + $0x10] sm:$0xff] %vm351, 0.0
          %371 = vst.msk [vmem:[#allocation3 + $0x18] sm:$0xff] %vm351, 0.0
          %372 = vst.msk [vmem:[#allocation3 + $0x20] sm:$0xff] %vm351, 0.0
          %373 = vst.msk [vmem:[#allocation3 + $0x28] sm:$0xff] %vm351, 0.0
          %374 = vst.msk [vmem:[#allocation3 + $0x30] sm:$0xff] %vm351, 0.0
          %375 = vst.msk [vmem:[#allocation3 + $0x38] sm:$0xff] %vm351, 0.0
          %376 = vst.msk [vmem:[#allocation3 + $0x40] sm:$0xff] %vm351, 0.0
          %377 = vst.msk [vmem:[#allocation3 + $0x48] sm:$0xff] %vm351, 0.0
          %378 = vst.msk [vmem:[#allocation3 + $0x50] sm:$0xff] %vm351, 0.0
          %379 = vst.msk [vmem:[#allocation3 + $0x58] sm:$0xff] %vm351, 0.0
          %380 = vst.msk [vmem:[#allocation3 + $0x60] sm:$0xff] %vm351, 0.0
          %381 = vst.msk [vmem:[#allocation3 + $0x68] sm:$0xff] %vm351, 0.0
          %382 = vst.msk [vmem:[#allocation3 + $0x70] sm:$0xff] %vm351, 0.0
          %383 = vst.msk [vmem:[#allocation3 + $0x78] sm:$0xff] %vm351, 0.0
          %vm384 = vcmask 130048
          %385 = vst.msk [vmem:[#allocation4] sm:$0xff] %vm384, 0.0
          %386 = vst.msk [vmem:[#allocation4 + $0x8] sm:$0xff] %vm384, 0.0
          %387 = vst.msk [vmem:[#allocation4 + $0x10] sm:$0xff] %vm384, 0.0
          %388 = vst.msk [vmem:[#allocation4 + $0x18] sm:$0xff] %vm384, 0.0
          %389 = vst.msk [vmem:[#allocation4 + $0x20] sm:$0xff] %vm384, 0.0
          %390 = vst.msk [vmem:[#allocation4 + $0x28] sm:$0xff] %vm384, 0.0
          %391 = vst.msk [vmem:[#allocation4 + $0x30] sm:$0xff] %vm384, 0.0
          %392 = vst.msk [vmem:[#allocation4 + $0x38] sm:$0xff] %vm384, 0.0
          %393 = vst.msk [vmem:[#allocation4 + $0x40] sm:$0xff] %vm384, 0.0
          %394 = vst.msk [vmem:[#allocation4 + $0x48] sm:$0xff] %vm384, 0.0
          %395 = vst.msk [vmem:[#allocation4 + $0x50] sm:$0xff] %vm384, 0.0
          %396 = vst.msk [vmem:[#allocation4 + $0x58] sm:$0xff] %vm384, 0.0
          %397 = vst.msk [vmem:[#allocation4 + $0x60] sm:$0xff] %vm384, 0.0
          %398 = vst.msk [vmem:[#allocation4 + $0x68] sm:$0xff] %vm384, 0.0
          %399 = vst.msk [vmem:[#allocation4 + $0x70] sm:$0xff] %vm384, 0.0
          %400 = vst.msk [vmem:[#allocation4 + $0x78] sm:$0xff] %vm384, 0.0
        $region73: #{gcnnet_forward.5} parent=64 // pred_fallthru
          _
        %v401 = vld [vmem:[%s286] sm:$0xf]
        %v402 = vld [vmem:[%s286 + $0x4] sm:$0xf]
        %v403 = vld [vmem:[%s286 + $0x8] sm:$0xf]
        %v404 = vld [vmem:[%s286 + $0xc] sm:$0xf]
        %v405 = vld [vmem:[%s286 + $0x10] sm:$0xf]
        %v406 = vld [vmem:[%s286 + $0x14] sm:$0xf]
        %v407 = vld [vmem:[%s286 + $0x18] sm:$0xf]
        %v408 = vld [vmem:[%s286 + $0x1c] sm:$0xf]
        %v409 = vld [vmem:[%s286 + $0x20] sm:$0xf]
        %v410 = vld [vmem:[%s286 + $0x24] sm:$0xf]
        %v411 = vld [vmem:[%s286 + $0x28] sm:$0xf]
        %v412 = vld [vmem:[%s286 + $0x2c] sm:$0xf]
        %v413 = vld [vmem:[%s286 + $0x30] sm:$0xf]
        %v414 = vld [vmem:[%s286 + $0x34] sm:$0xf]
        %v415 = vld [vmem:[%s286 + $0x38] sm:$0xf]
        %v416 = vld [vmem:[%s286 + $0x3c] sm:$0xf]
        %v417 = vunpack.c.l.bf16 %v401
        %v418 = vunpack.c.l.bf16 %v402
        %v419 = vunpack.c.l.bf16 %v403
        %v420 = vunpack.c.l.bf16 %v404
        %v421 = vunpack.c.l.bf16 %v405
        %v422 = vunpack.c.l.bf16 %v406
        %v423 = vunpack.c.l.bf16 %v407
        %v424 = vunpack.c.l.bf16 %v408
        %v425 = vunpack.c.l.bf16 %v409
        %v426 = vunpack.c.l.bf16 %v410
        %v427 = vunpack.c.l.bf16 %v411
        %v428 = vunpack.c.l.bf16 %v412
        %v429 = vunpack.c.l.bf16 %v413
        %v430 = vunpack.c.l.bf16 %v414
        %v431 = vunpack.c.l.bf16 %v415
        %v432 = vunpack.c.l.bf16 %v416
        %v433 = vld [vmem:[#allocation2] sm:$0xff]
        %v434 = vld [vmem:[#allocation2 + $0x8] sm:$0xff]
        %v435 = vld [vmem:[#allocation2 + $0x10] sm:$0xff]
        %v436 = vld [vmem:[#allocation2 + $0x18] sm:$0xff]
        %v437 = vld [vmem:[#allocation2 + $0x20] sm:$0xff]
        %v438 = vld [vmem:[#allocation2 + $0x28] sm:$0xff]
        %v439 = vld [vmem:[#allocation2 + $0x30] sm:$0xff]
        %v440 = vld [vmem:[#allocation2 + $0x38] sm:$0xff]
        %v441 = vld [vmem:[#allocation2 + $0x40] sm:$0xff]
        %v442 = vld [vmem:[#allocation2 + $0x48] sm:$0xff]
        %v443 = vld [vmem:[#allocation2 + $0x50] sm:$0xff]
        %v444 = vld [vmem:[#allocation2 + $0x58] sm:$0xff]
        %v445 = vld [vmem:[#allocation2 + $0x60] sm:$0xff]
        %v446 = vld [vmem:[#allocation2 + $0x68] sm:$0xff]
        %v447 = vld [vmem:[#allocation2 + $0x70] sm:$0xff]
        %v448 = vld [vmem:[#allocation2 + $0x78] sm:$0xff]
        %449 = vmax.xlane.f32.xlu0 %v417
        %v450 = vpop.xlane.xlu0 %449
        %451 = vmax.xlane.f32.xlu0 %v418
        %v452 = vpop.xlane.xlu0 %451
        %453 = vmax.xlane.f32.xlu0 %v419
        %v454 = vpop.xlane.xlu0 %453
        %455 = vmax.xlane.f32.xlu0 %v420
        %v456 = vpop.xlane.xlu0 %455
        %457 = vmax.xlane.f32.xlu0 %v421
        %v458 = vpop.xlane.xlu0 %457
        %459 = vmax.xlane.f32.xlu0 %v422
        %v460 = vpop.xlane.xlu0 %459
        %461 = vmax.xlane.f32.xlu0 %v423
        %v462 = vpop.xlane.xlu0 %461
        %463 = vmax.xlane.f32.xlu0 %v424
        %v464 = vpop.xlane.xlu0 %463
        %465 = vmax.xlane.f32.xlu0 %v425
        %v466 = vpop.xlane.xlu0 %465
        %467 = vmax.xlane.f32.xlu0 %v426
        %v468 = vpop.xlane.xlu0 %467
        %469 = vmax.xlane.f32.xlu0 %v427
        %v470 = vpop.xlane.xlu0 %469
        %471 = vmax.xlane.f32.xlu0 %v428
        %v472 = vpop.xlane.xlu0 %471
        %473 = vmax.xlane.f32.xlu0 %v429
        %v474 = vpop.xlane.xlu0 %473
        %475 = vmax.xlane.f32.xlu0 %v430
        %v476 = vpop.xlane.xlu0 %475
        %477 = vmax.xlane.f32.xlu0 %v431
        %v478 = vpop.xlane.xlu0 %477
        %479 = vmax.xlane.f32.xlu0 %v432
        %v480 = vpop.xlane.xlu0 %479
        %v481 = vmax.f32 %v433, %v450
        %v482 = vmax.f32 %v434, %v452
        %v483 = vmax.f32 %v435, %v454
        %v484 = vmax.f32 %v436, %v456
        %v485 = vmax.f32 %v437, %v458
        %v486 = vmax.f32 %v438, %v460
        %v487 = vmax.f32 %v439, %v462
        %v488 = vmax.f32 %v440, %v464
        %v489 = vmax.f32 %v441, %v466
        %v490 = vmax.f32 %v442, %v468
        %v491 = vmax.f32 %v443, %v470
        %v492 = vmax.f32 %v444, %v472
        %v493 = vmax.f32 %v445, %v474
        %v494 = vmax.f32 %v446, %v476
        %v495 = vmax.f32 %v447, %v478
        %v496 = vmax.f32 %v448, %v480
        %v497 = vsub.f32 %v433, %v481
        %v498 = vsub.f32 %v434, %v482
        %v499 = vsub.f32 %v435, %v483
        %v500 = vsub.f32 %v436, %v484
        %v501 = vsub.f32 %v437, %v485
        %v502 = vsub.f32 %v438, %v486
        %v503 = vsub.f32 %v439, %v487
        %v504 = vsub.f32 %v440, %v488
        %v505 = vsub.f32 %v441, %v489
        %v506 = vsub.f32 %v442, %v490
        %v507 = vsub.f32 %v443, %v491
        %v508 = vsub.f32 %v444, %v492
        %v509 = vsub.f32 %v445, %v493
        %v510 = vsub.f32 %v446, %v494
        %v511 = vsub.f32 %v447, %v495
        %v512 = vsub.f32 %v448, %v496
        %v513 = vmul.f32 %v497, 1.442695
        %v514 = vpow.pop %v513
        %v515 = vmul.f32 %v498, 1.442695
        %v516 = vpow.pop %v515
        %v517 = vmul.f32 %v499, 1.442695
        %v518 = vpow.pop %v517
        %v519 = vmul.f32 %v500, 1.442695
        %v520 = vpow.pop %v519
        %v521 = vmul.f32 %v501, 1.442695
        %v522 = vpow.pop %v521
        %v523 = vmul.f32 %v502, 1.442695
        %v524 = vpow.pop %v523
        %v525 = vmul.f32 %v503, 1.442695
        %v526 = vpow.pop %v525
        %v527 = vmul.f32 %v504, 1.442695
        %v528 = vpow.pop %v527
        %v529 = vmul.f32 %v505, 1.442695
        %v530 = vpow.pop %v529
        %v531 = vmul.f32 %v506, 1.442695
        %v532 = vpow.pop %v531
        %v533 = vmul.f32 %v507, 1.442695
        %v534 = vpow.pop %v533
        %v535 = vmul.f32 %v508, 1.442695
        %v536 = vpow.pop %v535
        %v537 = vmul.f32 %v509, 1.442695
        %v538 = vpow.pop %v537
        %v539 = vmul.f32 %v510, 1.442695
        %v540 = vpow.pop %v539
        %v541 = vmul.f32 %v511, 1.442695
        %v542 = vpow.pop %v541
        %v543 = vmul.f32 %v512, 1.442695
        %v544 = vpow.pop %v543
        %546 = vset.pattern.permute.xlu0 0
        %547 = vperm.xlu0 %546, %v481
        %v548 = vpop.permute.xlu0 %547
        %551 = vset.pattern.permute.xlu0 0
        %552 = vperm.xlu0 %551, %v482
        %v553 = vpop.permute.xlu0 %552
        %556 = vset.pattern.permute.xlu0 0
        %557 = vperm.xlu0 %556, %v483
        %v558 = vpop.permute.xlu0 %557
        %561 = vset.pattern.permute.xlu0 0
        %562 = vperm.xlu0 %561, %v484
        %v563 = vpop.permute.xlu0 %562
        %566 = vset.pattern.permute.xlu0 0
        %567 = vperm.xlu0 %566, %v485
        %v568 = vpop.permute.xlu0 %567
        %571 = vset.pattern.permute.xlu0 0
        %572 = vperm.xlu0 %571, %v486
        %v573 = vpop.permute.xlu0 %572
        %576 = vset.pattern.permute.xlu0 0
        %577 = vperm.xlu0 %576, %v487
        %v578 = vpop.permute.xlu0 %577
        %581 = vset.pattern.permute.xlu0 0
        %582 = vperm.xlu0 %581, %v488
        %v583 = vpop.permute.xlu0 %582
        %586 = vset.pattern.permute.xlu0 0
        %587 = vperm.xlu0 %586, %v489
        %v588 = vpop.permute.xlu0 %587
        %591 = vset.pattern.permute.xlu0 0
        %592 = vperm.xlu0 %591, %v490
        %v593 = vpop.permute.xlu0 %592
        %596 = vset.pattern.permute.xlu0 0
        %597 = vperm.xlu0 %596, %v491
        %v598 = vpop.permute.xlu0 %597
        %601 = vset.pattern.permute.xlu0 0
        %602 = vperm.xlu0 %601, %v492
        %v603 = vpop.permute.xlu0 %602
        %606 = vset.pattern.permute.xlu0 0
        %607 = vperm.xlu0 %606, %v493
        %v608 = vpop.permute.xlu0 %607
        %611 = vset.pattern.permute.xlu0 0
        %612 = vperm.xlu0 %611, %v494
        %v613 = vpop.permute.xlu0 %612
        %616 = vset.pattern.permute.xlu0 0
        %617 = vperm.xlu0 %616, %v495
        %v618 = vpop.permute.xlu0 %617
        %621 = vset.pattern.permute.xlu0 0
        %622 = vperm.xlu0 %621, %v496
        %v623 = vpop.permute.xlu0 %622
        %v625 = vsub.f32 %v417, %v548
        %v626 = vsub.f32 %v418, %v553
        %v627 = vsub.f32 %v419, %v558
        %v628 = vsub.f32 %v420, %v563
        %v629 = vsub.f32 %v421, %v568
        %v630 = vsub.f32 %v422, %v573
        %v631 = vsub.f32 %v423, %v578
        %v632 = vsub.f32 %v424, %v583
        %v633 = vsub.f32 %v425, %v588
        %v634 = vsub.f32 %v426, %v593
        %v635 = vsub.f32 %v427, %v598
        %v636 = vsub.f32 %v428, %v603
        %v637 = vsub.f32 %v429, %v608
        %v638 = vsub.f32 %v430, %v613
        %v639 = vsub.f32 %v431, %v618
        %v640 = vsub.f32 %v432, %v623
        %v641 = vmul.f32 %v625, 1.442695
        %v642 = vpow.pop %v641
        %v643 = vmul.f32 %v626, 1.442695
        %v644 = vpow.pop %v643
        %v645 = vmul.f32 %v627, 1.442695
        %v646 = vpow.pop %v645
        %v647 = vmul.f32 %v628, 1.442695
        %v648 = vpow.pop %v647
        %v649 = vmul.f32 %v629, 1.442695
        %v650 = vpow.pop %v649
        %v651 = vmul.f32 %v630, 1.442695
        %v652 = vpow.pop %v651
        %v653 = vmul.f32 %v631, 1.442695
        %v654 = vpow.pop %v653
        %v655 = vmul.f32 %v632, 1.442695
        %v656 = vpow.pop %v655
        %v657 = vmul.f32 %v633, 1.442695
        %v658 = vpow.pop %v657
        %v659 = vmul.f32 %v634, 1.442695
        %v660 = vpow.pop %v659
        %v661 = vmul.f32 %v635, 1.442695
        %v662 = vpow.pop %v661
        %v663 = vmul.f32 %v636, 1.442695
        %v664 = vpow.pop %v663
        %v665 = vmul.f32 %v637, 1.442695
        %v666 = vpow.pop %v665
        %v667 = vmul.f32 %v638, 1.442695
        %v668 = vpow.pop %v667
        %v669 = vmul.f32 %v639, 1.442695
        %v670 = vpow.pop %v669
        %v671 = vmul.f32 %v640, 1.442695
        %v672 = vpow.pop %v671
        %v673 = vld [vmem:[#allocation3] sm:$0xff]
        %v674 = vld [vmem:[#allocation3 + $0x8] sm:$0xff]
        %v675 = vld [vmem:[#allocation3 + $0x10] sm:$0xff]
        %v676 = vld [vmem:[#allocation3 + $0x18] sm:$0xff]
        %v677 = vld [vmem:[#allocation3 + $0x20] sm:$0xff]
        %v678 = vld [vmem:[#allocation3 + $0x28] sm:$0xff]
        %v679 = vld [vmem:[#allocation3 + $0x30] sm:$0xff]
        %v680 = vld [vmem:[#allocation3 + $0x38] sm:$0xff]
        %v681 = vld [vmem:[#allocation3 + $0x40] sm:$0xff]
        %v682 = vld [vmem:[#allocation3 + $0x48] sm:$0xff]
        %v683 = vld [vmem:[#allocation3 + $0x50] sm:$0xff]
        %v684 = vld [vmem:[#allocation3 + $0x58] sm:$0xff]
        %v685 = vld [vmem:[#allocation3 + $0x60] sm:$0xff]
        %v686 = vld [vmem:[#allocation3 + $0x68] sm:$0xff]
        %v687 = vld [vmem:[#allocation3 + $0x70] sm:$0xff]
        %v688 = vld [vmem:[#allocation3 + $0x78] sm:$0xff]
        %v689 = vmul.f32 %v514, %v673
        %v690 = vmul.f32 %v516, %v674
        %v691 = vmul.f32 %v518, %v675
        %v692 = vmul.f32 %v520, %v676
        %v693 = vmul.f32 %v522, %v677
        %v694 = vmul.f32 %v524, %v678
        %v695 = vmul.f32 %v526, %v679
        %v696 = vmul.f32 %v528, %v680
        %v697 = vmul.f32 %v530, %v681
        %v698 = vmul.f32 %v532, %v682
        %v699 = vmul.f32 %v534, %v683
        %v700 = vmul.f32 %v536, %v684
        %v701 = vmul.f32 %v538, %v685
        %v702 = vmul.f32 %v540, %v686
        %v703 = vmul.f32 %v542, %v687
        %v704 = vmul.f32 %v544, %v688
        %705 = vadd.xlane.f32.xlu0 %v642
        %v706 = vpop.xlane.xlu0 %705
        %707 = vadd.xlane.f32.xlu0 %v644
        %v708 = vpop.xlane.xlu0 %707
        %709 = vadd.xlane.f32.xlu0 %v646
        %v710 = vpop.xlane.xlu0 %709
        %711 = vadd.xlane.f32.xlu0 %v648
        %v712 = vpop.xlane.xlu0 %711
        %713 = vadd.xlane.f32.xlu0 %v650
        %v714 = vpop.xlane.xlu0 %713
        %715 = vadd.xlane.f32.xlu0 %v652
        %v716 = vpop.xlane.xlu0 %715
        %717 = vadd.xlane.f32.xlu0 %v654
        %v718 = vpop.xlane.xlu0 %717
        %719 = vadd.xlane.f32.xlu0 %v656
        %v720 = vpop.xlane.xlu0 %719
        %721 = vadd.xlane.f32.xlu0 %v658
        %v722 = vpop.xlane.xlu0 %721
        %723 = vadd.xlane.f32.xlu0 %v660
        %v724 = vpop.xlane.xlu0 %723
        %725 = vadd.xlane.f32.xlu0 %v662
        %v726 = vpop.xlane.xlu0 %725
        %727 = vadd.xlane.f32.xlu0 %v664
        %v728 = vpop.xlane.xlu0 %727
        %729 = vadd.xlane.f32.xlu0 %v666
        %v730 = vpop.xlane.xlu0 %729
        %731 = vadd.xlane.f32.xlu0 %v668
        %v732 = vpop.xlane.xlu0 %731
        %733 = vadd.xlane.f32.xlu0 %v670
        %v734 = vpop.xlane.xlu0 %733
        %735 = vadd.xlane.f32.xlu0 %v672
        %v736 = vpop.xlane.xlu0 %735
        %v737 = vadd.f32 %v689, %v706
        %v738 = vadd.f32 %v690, %v708
        %v739 = vadd.f32 %v691, %v710
        %v740 = vadd.f32 %v692, %v712
        %v741 = vadd.f32 %v693, %v714
        %v742 = vadd.f32 %v694, %v716
        %v743 = vadd.f32 %v695, %v718
        %v744 = vadd.f32 %v696, %v720
        %v745 = vadd.f32 %v697, %v722
        %v746 = vadd.f32 %v698, %v724
        %v747 = vadd.f32 %v699, %v726
        %v748 = vadd.f32 %v700, %v728
        %v749 = vadd.f32 %v701, %v730
        %v750 = vadd.f32 %v702, %v732
        %v751 = vadd.f32 %v703, %v734
        %v752 = vadd.f32 %v704, %v736
        %vm753 = vcmask 7168
        %754 = vst.msk [vmem:[#allocation3] sm:$0xff] %vm753, %v737
        %755 = vst.msk [vmem:[#allocation3 + $0x8] sm:$0xff] %vm753, %v738
        %756 = vst.msk [vmem:[#allocation3 + $0x10] sm:$0xff] %vm753, %v739
        %757 = vst.msk [vmem:[#allocation3 + $0x18] sm:$0xff] %vm753, %v740
        %758 = vst.msk [vmem:[#allocation3 + $0x20] sm:$0xff] %vm753, %v741
        %759 = vst.msk [vmem:[#allocation3 + $0x28] sm:$0xff] %vm753, %v742
        %760 = vst.msk [vmem:[#allocation3 + $0x30] sm:$0xff] %vm753, %v743
        %761 = vst.msk [vmem:[#allocation3 + $0x38] sm:$0xff] %vm753, %v744
        %762 = vst.msk [vmem:[#allocation3 + $0x40] sm:$0xff] %vm753, %v745
        %763 = vst.msk [vmem:[#allocation3 + $0x48] sm:$0xff] %vm753, %v746
        %764 = vst.msk [vmem:[#allocation3 + $0x50] sm:$0xff] %vm753, %v747
        %765 = vst.msk [vmem:[#allocation3 + $0x58] sm:$0xff] %vm753, %v748
        %766 = vst.msk [vmem:[#allocation3 + $0x60] sm:$0xff] %vm753, %v749
        %767 = vst.msk [vmem:[#allocation3 + $0x68] sm:$0xff] %vm753, %v750
        %768 = vst.msk [vmem:[#allocation3 + $0x70] sm:$0xff] %vm753, %v751
        %769 = vst.msk [vmem:[#allocation3 + $0x78] sm:$0xff] %vm753, %v752
        %s770 = smul.u32 %s347, 128
        %s771 = sshra.s32 %s770, 3
        %s772 = sand.u32 %s770, 7
        %s773 = smul.addr %s771, 4
        %s774 = scalar_lea.vmem %s326, %s773
        %v775 = vld [vmem:[%s774] sm:$0xf]
        %v776 = vld [vmem:[%s774 + $0x4] sm:$0xf]
        %v777 = vld [vmem:[%s774 + $0x8] sm:$0xf]
        %v778 = vld [vmem:[%s774 + $0xc] sm:$0xf]
        %v779 = vld [vmem:[%s774 + $0x10] sm:$0xf]
        %v780 = vld [vmem:[%s774 + $0x14] sm:$0xf]
        %v781 = vld [vmem:[%s774 + $0x18] sm:$0xf]
        %v782 = vld [vmem:[%s774 + $0x1c] sm:$0xf]
        %v783 = vld [vmem:[%s774 + $0x20] sm:$0xf]
        %v784 = vld [vmem:[%s774 + $0x24] sm:$0xf]
        %v785 = vld [vmem:[%s774 + $0x28] sm:$0xf]
        %v786 = vld [vmem:[%s774 + $0x2c] sm:$0xf]
        %v787 = vld [vmem:[%s774 + $0x30] sm:$0xf]
        %v788 = vld [vmem:[%s774 + $0x34] sm:$0xf]
        %v789 = vld [vmem:[%s774 + $0x38] sm:$0xf]
        %v790 = vld [vmem:[%s774 + $0x3c] sm:$0xf]
        %v791 = vld [vmem:[#allocation4] sm:$0xff]
        %v792 = vld [vmem:[#allocation4 + $0x8] sm:$0xff]
        %v793 = vld [vmem:[#allocation4 + $0x10] sm:$0xff]
        %v794 = vld [vmem:[#allocation4 + $0x18] sm:$0xff]
        %v795 = vld [vmem:[#allocation4 + $0x20] sm:$0xff]
        %v796 = vld [vmem:[#allocation4 + $0x28] sm:$0xff]
        %v797 = vld [vmem:[#allocation4 + $0x30] sm:$0xff]
        %v798 = vld [vmem:[#allocation4 + $0x38] sm:$0xff]
        %v799 = vld [vmem:[#allocation4 + $0x40] sm:$0xff]
        %v800 = vld [vmem:[#allocation4 + $0x48] sm:$0xff]
        %v801 = vld [vmem:[#allocation4 + $0x50] sm:$0xff]
        %v802 = vld [vmem:[#allocation4 + $0x58] sm:$0xff]
        %v803 = vld [vmem:[#allocation4 + $0x60] sm:$0xff]
        %v804 = vld [vmem:[#allocation4 + $0x68] sm:$0xff]
        %v805 = vld [vmem:[#allocation4 + $0x70] sm:$0xff]
        %v806 = vld [vmem:[#allocation4 + $0x78] sm:$0xff]
        %808 = vset.pattern.permute.xlu0 0
        %809 = vperm.xlu0 %808, %v514
        %v810 = vpop.permute.xlu0 %809
        %813 = vset.pattern.permute.xlu0 0
        %814 = vperm.xlu0 %813, %v516
        %v815 = vpop.permute.xlu0 %814
        %818 = vset.pattern.permute.xlu0 0
        %819 = vperm.xlu0 %818, %v518
        %v820 = vpop.permute.xlu0 %819
        %823 = vset.pattern.permute.xlu0 0
        %824 = vperm.xlu0 %823, %v520
        %v825 = vpop.permute.xlu0 %824
        %828 = vset.pattern.permute.xlu0 0
        %829 = vperm.xlu0 %828, %v522
        %v830 = vpop.permute.xlu0 %829
        %833 = vset.pattern.permute.xlu0 0
        %834 = vperm.xlu0 %833, %v524
        %v835 = vpop.permute.xlu0 %834
        %838 = vset.pattern.permute.xlu0 0
        %839 = vperm.xlu0 %838, %v526
        %v840 = vpop.permute.xlu0 %839
        %843 = vset.pattern.permute.xlu0 0
        %844 = vperm.xlu0 %843, %v528
        %v845 = vpop.permute.xlu0 %844
        %848 = vset.pattern.permute.xlu0 0
        %849 = vperm.xlu0 %848, %v530
        %v850 = vpop.permute.xlu0 %849
        %853 = vset.pattern.permute.xlu0 0
        %854 = vperm.xlu0 %853, %v532
        %v855 = vpop.permute.xlu0 %854
        %858 = vset.pattern.permute.xlu0 0
        %859 = vperm.xlu0 %858, %v534
        %v860 = vpop.permute.xlu0 %859
        %863 = vset.pattern.permute.xlu0 0
        %864 = vperm.xlu0 %863, %v536
        %v865 = vpop.permute.xlu0 %864
        %868 = vset.pattern.permute.xlu0 0
        %869 = vperm.xlu0 %868, %v538
        %v870 = vpop.permute.xlu0 %869
        %873 = vset.pattern.permute.xlu0 0
        %874 = vperm.xlu0 %873, %v540
        %v875 = vpop.permute.xlu0 %874
        %878 = vset.pattern.permute.xlu0 0
        %879 = vperm.xlu0 %878, %v542
        %v880 = vpop.permute.xlu0 %879
        %883 = vset.pattern.permute.xlu0 0
        %884 = vperm.xlu0 %883, %v544
        %v885 = vpop.permute.xlu0 %884
        %v887 = vmul.f32 %v810, %v791
        %v888 = vmul.f32 %v815, %v792
        %v889 = vmul.f32 %v820, %v793
        %v890 = vmul.f32 %v825, %v794
        %v891 = vmul.f32 %v830, %v795
        %v892 = vmul.f32 %v835, %v796
        %v893 = vmul.f32 %v840, %v797
        %v894 = vmul.f32 %v845, %v798
        %v895 = vmul.f32 %v850, %v799
        %v896 = vmul.f32 %v855, %v800
        %v897 = vmul.f32 %v860, %v801
        %v898 = vmul.f32 %v865, %v802
        %v899 = vmul.f32 %v870, %v803
        %v900 = vmul.f32 %v875, %v804
        %v901 = vmul.f32 %v880, %v805
        %v902 = vmul.f32 %v885, %v806
        %v903 = vpack.c.bf16 %v644, %v642
        %v904 = vpack.c.bf16 %v648, %v646
        %v905 = vpack.c.bf16 %v652, %v650
        %v906 = vpack.c.bf16 %v656, %v654
        %v907 = vpack.c.bf16 %v660, %v658
        %v908 = vpack.c.bf16 %v664, %v662
        %v909 = vpack.c.bf16 %v668, %v666
        %v910 = vpack.c.bf16 %v672, %v670
        %v927 = vunpack.c.l.b16 %v775
        %v928 = vunpack.c.l.b16 %v776
        %v929 = vunpack.c.l.b16 %v777
        %v930 = vunpack.c.l.b16 %v778
        %v931 = vunpack.c.l.b16 %v779
        %v932 = vunpack.c.l.b16 %v780
        %v933 = vunpack.c.l.b16 %v781
        %v934 = vunpack.c.l.b16 %v782
        %v935 = vunpack.c.l.b16 %v783
        %v936 = vunpack.c.l.b16 %v784
        %v937 = vunpack.c.l.b16 %v785
        %v938 = vunpack.c.l.b16 %v786
        %v939 = vunpack.c.l.b16 %v787
        %v940 = vunpack.c.l.b16 %v788
        %v941 = vunpack.c.l.b16 %v789
        %v942 = vunpack.c.l.b16 %v790
        %v943 = vpack.c.b16 %v928, %v927
        %v944 = vpack.c.b16 %v930, %v929
        %v945 = vpack.c.b16 %v932, %v931
        %v946 = vpack.c.b16 %v934, %v933
        %v947 = vpack.c.b16 %v936, %v935
        %v948 = vpack.c.b16 %v938, %v937
        %v949 = vpack.c.b16 %v940, %v939
        %v950 = vpack.c.b16 %v942, %v941
        %959 = vmatprep.subr.bf16.mxu0 0
        %960 = vmatpush1.bf16.msra.mxu0 %v943
        %961 = vmatprep.subr.bf16.mxu0 0
        %962 = vmatpush1.bf16.msra.mxu0 %v944
        %963 = vmatprep.subr.bf16.mxu0 0
        %964 = vmatpush1.bf16.msra.mxu0 %v945
        %965 = vmatprep.subr.bf16.mxu0 0
        %966 = vmatpush1.bf16.msra.mxu0 %v946
        %967 = vmatprep.subr.bf16.mxu0 0
        %968 = vmatpush1.bf16.msra.mxu0 %v947
        %969 = vmatprep.subr.bf16.mxu0 0
        %970 = vmatpush1.bf16.msra.mxu0 %v948
        %971 = vmatprep.subr.bf16.mxu0 0
        %972 = vmatpush1.bf16.msra.mxu0 %v949
        %973 = vmatprep.subr.bf16.mxu0 0
        %974 = vmatpush1.bf16.msra.mxu0 %v950
        %975 = vmatprep.subr.bf16.mxu0 0
        %976 = vmatpush1.bf16.msra.mxu0 0
        %977 = vmatprep.subr.bf16.mxu0 0
        %978 = vmatpush1.bf16.msra.mxu0 0
        %979 = vmatprep.subr.bf16.mxu0 0
        %980 = vmatpush1.bf16.msra.mxu0 0
        %981 = vmatprep.subr.bf16.mxu0 0
        %982 = vmatpush1.bf16.msra.mxu0 0
        %983 = vmatprep.subr.bf16.mxu0 0
        %984 = vmatpush1.bf16.msra.mxu0 0
        %985 = vmatprep.subr.bf16.mxu0 0
        %986 = vmatpush1.bf16.msra.mxu0 0
        %987 = vmatprep.subr.bf16.mxu0 0
        %988 = vmatpush1.bf16.msra.mxu0 0
        %989 = vmatprep.subr.bf16.mxu0 0
        %990 = vmatpush1.bf16.msra.mxu0 0
        %991 = vmatprep.mubr.bf16.mxu0 0
        %992 = vmatmul.mubr.bf16.gmra.mrb[0].mxu0 %v903
        %v993 = vpop.f32.mrb[0].mxu0
        %v994 = vadd.f32 0.0, %v993
        %v995 = vpop.f32.mrb[0].mxu0
        %v996 = vpop.f32.mrb[0].mxu0
        %v997 = vadd.f32 0.0, %v996
        %v998 = vpop.f32.mrb[0].mxu0
        %999 = vmatprep.mubr.bf16.mxu0 0
        %1000 = vmatmul.mubr.bf16.gmra.mrb[0].mxu0 %v904
        %v1001 = vpop.f32.mrb[0].mxu0
        %v1002 = vadd.f32 0.0, %v1001
        %v1003 = vpop.f32.mrb[0].mxu0
        %v1004 = vpop.f32.mrb[0].mxu0
        %v1005 = vadd.f32 0.0, %v1004
        %v1006 = vpop.f32.mrb[0].mxu0
        %1007 = vmatprep.mubr.bf16.mxu0 0
        %1008 = vmatmul.mubr.bf16.gmra.mrb[0].mxu0 %v905
        %v1009 = vpop.f32.mrb[0].mxu0
        %v1010 = vadd.f32 0.0, %v1009
        %v1011 = vpop.f32.mrb[0].mxu0
        %v1012 = vpop.f32.mrb[0].mxu0
        %v1013 = vadd.f32 0.0, %v1012
        %v1014 = vpop.f32.mrb[0].mxu0
        %1015 = vmatprep.mubr.bf16.mxu0 0
        %1016 = vmatmul.mubr.bf16.gmra.mrb[0].mxu0 %v906
        %v1017 = vpop.f32.mrb[0].mxu0
        %v1018 = vadd.f32 0.0, %v1017
        %v1019 = vpop.f32.mrb[0].mxu0
        %v1020 = vpop.f32.mrb[0].mxu0
        %v1021 = vadd.f32 0.0, %v1020
        %v1022 = vpop.f32.mrb[0].mxu0
        %1023 = vmatprep.mubr.bf16.mxu0 0
        %1024 = vmatmul.mubr.bf16.gmra.mrb[0].mxu0 %v907
        %v1025 = vpop.f32.mrb[0].mxu0
        %v1026 = vadd.f32 0.0, %v1025
        %v1027 = vpop.f32.mrb[0].mxu0
        %v1028 = vpop.f32.mrb[0].mxu0
        %v1029 = vadd.f32 0.0, %v1028
        %v1030 = vpop.f32.mrb[0].mxu0
        %1031 = vmatprep.mubr.bf16.mxu0 0
        %1032 = vmatmul.mubr.bf16.gmra.mrb[0].mxu0 %v908
        %v1033 = vpop.f32.mrb[0].mxu0
        %v1034 = vadd.f32 0.0, %v1033
        %v1035 = vpop.f32.mrb[0].mxu0
        %v1036 = vpop.f32.mrb[0].mxu0
        %v1037 = vadd.f32 0.0, %v1036
        %v1038 = vpop.f32.mrb[0].mxu0
        %1039 = vmatprep.mubr.bf16.mxu0 0
        %1040 = vmatmul.mubr.bf16.gmra.mrb[0].mxu0 %v909
        %v1041 = vpop.f32.mrb[0].mxu0
        %v1042 = vadd.f32 0.0, %v1041
        %v1043 = vpop.f32.mrb[0].mxu0
        %v1044 = vpop.f32.mrb[0].mxu0
        %v1045 = vadd.f32 0.0, %v1044
        %v1046 = vpop.f32.mrb[0].mxu0
        %1047 = vmatprep.mubr.bf16.mxu0 0
        %1048 = vmatmul.mubr.bf16.gmra.mrb[0].mxu0 %v910
        %v1049 = vpop.f32.mrb[0].mxu0
        %v1050 = vadd.f32 0.0, %v1049
        %v1051 = vpop.f32.mrb[0].mxu0
        %v1052 = vpop.f32.mrb[0].mxu0
        %v1053 = vadd.f32 0.0, %v1052
        %v1054 = vpop.f32.mrb[0].mxu0
        %1055 = vdwg.mxu0
        %v1056 = vadd.f32 %v887, %v994
        %v1057 = vadd.f32 %v888, %v997
        %v1058 = vadd.f32 %v889, %v1002
        %v1059 = vadd.f32 %v890, %v1005
        %v1060 = vadd.f32 %v891, %v1010
        %v1061 = vadd.f32 %v892, %v1013
        %v1062 = vadd.f32 %v893, %v1018
        %v1063 = vadd.f32 %v894, %v1021
        %v1064 = vadd.f32 %v895, %v1026
        %v1065 = vadd.f32 %v896, %v1029
        %v1066 = vadd.f32 %v897, %v1034
        %v1067 = vadd.f32 %v898, %v1037
        %v1068 = vadd.f32 %v899, %v1042
        %v1069 = vadd.f32 %v900, %v1045
        %v1070 = vadd.f32 %v901, %v1050
        %v1071 = vadd.f32 %v902, %v1053
        %vm1072 = vcmask 130048
        %1073 = vst.msk [vmem:[#allocation4] sm:$0xff] %vm1072, %v1056
        %1074 = vst.msk [vmem:[#allocation4 + $0x8] sm:$0xff] %vm1072, %v1057
        %1075 = vst.msk [vmem:[#allocation4 + $0x10] sm:$0xff] %vm1072, %v1058
        %1076 = vst.msk [vmem:[#allocation4 + $0x18] sm:$0xff] %vm1072, %v1059
        %1077 = vst.msk [vmem:[#allocation4 + $0x20] sm:$0xff] %vm1072, %v1060
        %1078 = vst.msk [vmem:[#allocation4 + $0x28] sm:$0xff] %vm1072, %v1061
        %1079 = vst.msk [vmem:[#allocation4 + $0x30] sm:$0xff] %vm1072, %v1062
        %1080 = vst.msk [vmem:[#allocation4 + $0x38] sm:$0xff] %vm1072, %v1063
        %1081 = vst.msk [vmem:[#allocation4 + $0x40] sm:$0xff] %vm1072, %v1064
        %1082 = vst.msk [vmem:[#allocation4 + $0x48] sm:$0xff] %vm1072, %v1065
        %1083 = vst.msk [vmem:[#allocation4 + $0x50] sm:$0xff] %vm1072, %v1066
        %1084 = vst.msk [vmem:[#allocation4 + $0x58] sm:$0xff] %vm1072, %v1067
        %1085 = vst.msk [vmem:[#allocation4 + $0x60] sm:$0xff] %vm1072, %v1068
        %1086 = vst.msk [vmem:[#allocation4 + $0x68] sm:$0xff] %vm1072, %v1069
        %1087 = vst.msk [vmem:[#allocation4 + $0x70] sm:$0xff] %vm1072, %v1070
        %1088 = vst.msk [vmem:[#allocation4 + $0x78] sm:$0xff] %vm1072, %v1071
        %1089 = vst.msk [vmem:[#allocation2] sm:$0xff] %vm753, %v481
        %1090 = vst.msk [vmem:[#allocation2 + $0x8] sm:$0xff] %vm753, %v482
        %1091 = vst.msk [vmem:[#allocation2 + $0x10] sm:$0xff] %vm753, %v483
        %1092 = vst.msk [vmem:[#allocation2 + $0x18] sm:$0xff] %vm753, %v484
        %1093 = vst.msk [vmem:[#allocation2 + $0x20] sm:$0xff] %vm753, %v485
        %1094 = vst.msk [vmem:[#allocation2 + $0x28] sm:$0xff] %vm753, %v486
        %1095 = vst.msk [vmem:[#allocation2 + $0x30] sm:$0xff] %vm753, %v487
        %1096 = vst.msk [vmem:[#allocation2 + $0x38] sm:$0xff] %vm753, %v488
        %1097 = vst.msk [vmem:[#allocation2 + $0x40] sm:$0xff] %vm753, %v489
        %1098 = vst.msk [vmem:[#allocation2 + $0x48] sm:$0xff] %vm753, %v490
        %1099 = vst.msk [vmem:[#allocation2 + $0x50] sm:$0xff] %vm753, %v491
        %1100 = vst.msk [vmem:[#allocation2 + $0x58] sm:$0xff] %vm753, %v492
        %1101 = vst.msk [vmem:[#allocation2 + $0x60] sm:$0xff] %vm753, %v493
        %1102 = vst.msk [vmem:[#allocation2 + $0x68] sm:$0xff] %vm753, %v494
        %1103 = vst.msk [vmem:[#allocation2 + $0x70] sm:$0xff] %vm753, %v495
        %1104 = vst.msk [vmem:[#allocation2 + $0x78] sm:$0xff] %vm753, %v496
        // Predicated region
        $region74: #{gcnnet_forward.5} parent=64 // pred_check
          %p1105 = pneg %p346
        $region75: #{gcnnet_forward.5} parent=64 // pred_check_branch
          %1107 = sbr.rel (%p1105) target = $region77
        $region76: #{gcnnet_forward.5} parent=64 // pred_region
          %v1108 = vld [vmem:[#allocation4] sm:$0xff]
          %v1109 = vld [vmem:[#allocation4 + $0x8] sm:$0xff]
          %v1110 = vld [vmem:[#allocation4 + $0x10] sm:$0xff]
          %v1111 = vld [vmem:[#allocation4 + $0x18] sm:$0xff]
          %v1112 = vld [vmem:[#allocation4 + $0x20] sm:$0xff]
          %v1113 = vld [vmem:[#allocation4 + $0x28] sm:$0xff]
          %v1114 = vld [vmem:[#allocation4 + $0x30] sm:$0xff]
          %v1115 = vld [vmem:[#allocation4 + $0x38] sm:$0xff]
          %v1116 = vld [vmem:[#allocation4 + $0x40] sm:$0xff]
          %v1117 = vld [vmem:[#allocation4 + $0x48] sm:$0xff]
          %v1118 = vld [vmem:[#allocation4 + $0x50] sm:$0xff]
          %v1119 = vld [vmem:[#allocation4 + $0x58] sm:$0xff]
          %v1120 = vld [vmem:[#allocation4 + $0x60] sm:$0xff]
          %v1121 = vld [vmem:[#allocation4 + $0x68] sm:$0xff]
          %v1122 = vld [vmem:[#allocation4 + $0x70] sm:$0xff]
          %v1123 = vld [vmem:[#allocation4 + $0x78] sm:$0xff]
          %v1124 = vld [vmem:[#allocation3] sm:$0xff]
          %v1125 = vld [vmem:[#allocation3 + $0x8] sm:$0xff]
          %v1126 = vld [vmem:[#allocation3 + $0x10] sm:$0xff]
          %v1127 = vld [vmem:[#allocation3 + $0x18] sm:$0xff]
          %v1128 = vld [vmem:[#allocation3 + $0x20] sm:$0xff]
          %v1129 = vld [vmem:[#allocation3 + $0x28] sm:$0xff]
          %v1130 = vld [vmem:[#allocation3 + $0x30] sm:$0xff]
          %v1131 = vld [vmem:[#allocation3 + $0x38] sm:$0xff]
          %v1132 = vld [vmem:[#allocation3 + $0x40] sm:$0xff]
          %v1133 = vld [vmem:[#allocation3 + $0x48] sm:$0xff]
          %v1134 = vld [vmem:[#allocation3 + $0x50] sm:$0xff]
          %v1135 = vld [vmem:[#allocation3 + $0x58] sm:$0xff]
          %v1136 = vld [vmem:[#allocation3 + $0x60] sm:$0xff]
          %v1137 = vld [vmem:[#allocation3 + $0x68] sm:$0xff]
          %v1138 = vld [vmem:[#allocation3 + $0x70] sm:$0xff]
          %v1139 = vld [vmem:[#allocation3 + $0x78] sm:$0xff]
          %v1140 = vrcp.pop %v1124
          %v1141 = vrcp.pop %v1125
          %v1142 = vrcp.pop %v1126
          %v1143 = vrcp.pop %v1127
          %v1144 = vrcp.pop %v1128
          %v1145 = vrcp.pop %v1129
          %v1146 = vrcp.pop %v1130
          %v1147 = vrcp.pop %v1131
          %v1148 = vrcp.pop %v1132
          %v1149 = vrcp.pop %v1133
          %v1150 = vrcp.pop %v1134
          %v1151 = vrcp.pop %v1135
          %v1152 = vrcp.pop %v1136
          %v1153 = vrcp.pop %v1137
          %v1154 = vrcp.pop %v1138
          %v1155 = vrcp.pop %v1139
          %1157 = vset.pattern.permute.xlu0 0
          %1158 = vperm.xlu0 %1157, %v1140
          %v1159 = vpop.permute.xlu0 %1158
          %1162 = vset.pattern.permute.xlu0 0
          %1163 = vperm.xlu0 %1162, %v1141
          %v1164 = vpop.permute.xlu0 %1163
          %1167 = vset.pattern.permute.xlu0 0
          %1168 = vperm.xlu0 %1167, %v1142
          %v1169 = vpop.permute.xlu0 %1168
          %1172 = vset.pattern.permute.xlu0 0
          %1173 = vperm.xlu0 %1172, %v1143
          %v1174 = vpop.permute.xlu0 %1173
          %1177 = vset.pattern.permute.xlu0 0
          %1178 = vperm.xlu0 %1177, %v1144
          %v1179 = vpop.permute.xlu0 %1178
          %1182 = vset.pattern.permute.xlu0 0
          %1183 = vperm.xlu0 %1182, %v1145
          %v1184 = vpop.permute.xlu0 %1183
          %1187 = vset.pattern.permute.xlu0 0
          %1188 = vperm.xlu0 %1187, %v1146
          %v1189 = vpop.permute.xlu0 %1188
          %1192 = vset.pattern.permute.xlu0 0
          %1193 = vperm.xlu0 %1192, %v1147
          %v1194 = vpop.permute.xlu0 %1193
          %1197 = vset.pattern.permute.xlu0 0
          %1198 = vperm.xlu0 %1197, %v1148
          %v1199 = vpop.permute.xlu0 %1198
          %1202 = vset.pattern.permute.xlu0 0
          %1203 = vperm.xlu0 %1202, %v1149
          %v1204 = vpop.permute.xlu0 %1203
          %1207 = vset.pattern.permute.xlu0 0
          %1208 = vperm.xlu0 %1207, %v1150
          %v1209 = vpop.permute.xlu0 %1208
          %1212 = vset.pattern.permute.xlu0 0
          %1213 = vperm.xlu0 %1212, %v1151
          %v1214 = vpop.permute.xlu0 %1213
          %1217 = vset.pattern.permute.xlu0 0
          %1218 = vperm.xlu0 %1217, %v1152
          %v1219 = vpop.permute.xlu0 %1218
          %1222 = vset.pattern.permute.xlu0 0
          %1223 = vperm.xlu0 %1222, %v1153
          %v1224 = vpop.permute.xlu0 %1223
          %1227 = vset.pattern.permute.xlu0 0
          %1228 = vperm.xlu0 %1227, %v1154
          %v1229 = vpop.permute.xlu0 %1228
          %1232 = vset.pattern.permute.xlu0 0
          %1233 = vperm.xlu0 %1232, %v1155
          %v1234 = vpop.permute.xlu0 %1233
          %v1236 = vmul.f32 %v1108, %v1159
          %v1237 = vmul.f32 %v1109, %v1164
          %v1238 = vmul.f32 %v1110, %v1169
          %v1239 = vmul.f32 %v1111, %v1174
          %v1240 = vmul.f32 %v1112, %v1179
          %v1241 = vmul.f32 %v1113, %v1184
          %v1242 = vmul.f32 %v1114, %v1189
          %v1243 = vmul.f32 %v1115, %v1194
          %v1244 = vmul.f32 %v1116, %v1199
          %v1245 = vmul.f32 %v1117, %v1204
          %v1246 = vmul.f32 %v1118, %v1209
          %v1247 = vmul.f32 %v1119, %v1214
          %v1248 = vmul.f32 %v1120, %v1219
          %v1249 = vmul.f32 %v1121, %v1224
          %v1250 = vmul.f32 %v1122, %v1229
          %v1251 = vmul.f32 %v1123, %v1234
          %vm1252 = vcmp.gt.f32.partialorder %v1236, 0.0
          %vm1253 = vcmp.gt.f32.partialorder %v1237, 0.0
          %vm1254 = vcmp.gt.f32.partialorder %v1238, 0.0
          %vm1255 = vcmp.gt.f32.partialorder %v1239, 0.0
          %vm1256 = vcmp.gt.f32.partialorder %v1240, 0.0
          %vm1257 = vcmp.gt.f32.partialorder %v1241, 0.0
          %vm1258 = vcmp.gt.f32.partialorder %v1242, 0.0
          %vm1259 = vcmp.gt.f32.partialorder %v1243, 0.0
          %vm1260 = vcmp.gt.f32.partialorder %v1244, 0.0
          %vm1261 = vcmp.gt.f32.partialorder %v1245, 0.0
          %vm1262 = vcmp.gt.f32.partialorder %v1246, 0.0
          %vm1263 = vcmp.gt.f32.partialorder %v1247, 0.0
          %vm1264 = vcmp.gt.f32.partialorder %v1248, 0.0
          %vm1265 = vcmp.gt.f32.partialorder %v1249, 0.0
          %vm1266 = vcmp.gt.f32.partialorder %v1250, 0.0
          %vm1267 = vcmp.gt.f32.partialorder %v1251, 0.0
          %v1268 = vmin.f32 %v1236, 0.0
          %v1269 = vmin.f32 %v1237, 0.0
          %v1270 = vmin.f32 %v1238, 0.0
          %v1271 = vmin.f32 %v1239, 0.0
          %v1272 = vmin.f32 %v1240, 0.0
          %v1273 = vmin.f32 %v1241, 0.0
          %v1274 = vmin.f32 %v1242, 0.0
          %v1275 = vmin.f32 %v1243, 0.0
          %v1276 = vmin.f32 %v1244, 0.0
          %v1277 = vmin.f32 %v1245, 0.0
          %v1278 = vmin.f32 %v1246, 0.0
          %v1279 = vmin.f32 %v1247, 0.0
          %v1280 = vmin.f32 %v1248, 0.0
          %v1281 = vmin.f32 %v1249, 0.0
          %v1282 = vmin.f32 %v1250, 0.0
          %v1283 = vmin.f32 %v1251, 0.0
          %v1284 = vmul.f32 %v1268, 1.442695
          %v1285 = vpow.pop %v1284
          %v1286 = vmul.f32 %v1269, 1.442695
          %v1287 = vpow.pop %v1286
          %v1288 = vmul.f32 %v1270, 1.442695
          %v1289 = vpow.pop %v1288
          %v1290 = vmul.f32 %v1271, 1.442695
          %v1291 = vpow.pop %v1290
          %v1292 = vmul.f32 %v1272, 1.442695
          %v1293 = vpow.pop %v1292
          %v1294 = vmul.f32 %v1273, 1.442695
          %v1295 = vpow.pop %v1294
          %v1296 = vmul.f32 %v1274, 1.442695
          %v1297 = vpow.pop %v1296
          %v1298 = vmul.f32 %v1275, 1.442695
          %v1299 = vpow.pop %v1298
          %v1300 = vmul.f32 %v1276, 1.442695
          %v1301 = vpow.pop %v1300
          %v1302 = vmul.f32 %v1277, 1.442695
          %v1303 = vpow.pop %v1302
          %v1304 = vmul.f32 %v1278, 1.442695
          %v1305 = vpow.pop %v1304
          %v1306 = vmul.f32 %v1279, 1.442695
          %v1307 = vpow.pop %v1306
          %v1308 = vmul.f32 %v1280, 1.442695
          %v1309 = vpow.pop %v1308
          %v1310 = vmul.f32 %v1281, 1.442695
          %v1311 = vpow.pop %v1310
          %v1312 = vmul.f32 %v1282, 1.442695
          %v1313 = vpow.pop %v1312
          %v1314 = vmul.f32 %v1283, 1.442695
          %v1315 = vpow.pop %v1314
          %v1316 = vsub.f32 %v1285, 1.0
          %v1317 = vsub.f32 %v1287, 1.0
          %v1318 = vsub.f32 %v1289, 1.0
          %v1319 = vsub.f32 %v1291, 1.0
          %v1320 = vsub.f32 %v1293, 1.0
          %v1321 = vsub.f32 %v1295, 1.0
          %v1322 = vsub.f32 %v1297, 1.0
          %v1323 = vsub.f32 %v1299, 1.0
          %v1324 = vsub.f32 %v1301, 1.0
          %v1325 = vsub.f32 %v1303, 1.0
          %v1326 = vsub.f32 %v1305, 1.0
          %v1327 = vsub.f32 %v1307, 1.0
          %v1328 = vsub.f32 %v1309, 1.0
          %v1329 = vsub.f32 %v1311, 1.0
          %v1330 = vsub.f32 %v1313, 1.0
          %v1331 = vsub.f32 %v1315, 1.0
          %v1332 = vsel %vm1252, %v1236, %v1316
          %v1333 = vsel %vm1253, %v1237, %v1317
          %v1334 = vsel %vm1254, %v1238, %v1318
          %v1335 = vsel %vm1255, %v1239, %v1319
          %v1336 = vsel %vm1256, %v1240, %v1320
          %v1337 = vsel %vm1257, %v1241, %v1321
          %v1338 = vsel %vm1258, %v1242, %v1322
          %v1339 = vsel %vm1259, %v1243, %v1323
          %v1340 = vsel %vm1260, %v1244, %v1324
          %v1341 = vsel %vm1261, %v1245, %v1325
          %v1342 = vsel %vm1262, %v1246, %v1326
          %v1343 = vsel %vm1263, %v1247, %v1327
          %v1344 = vsel %vm1264, %v1248, %v1328
          %v1345 = vsel %vm1265, %v1249, %v1329
          %v1346 = vsel %vm1266, %v1250, %v1330
          %v1347 = vsel %vm1267, %v1251, %v1331
          %1348 = vst.msk [vmem:[%s338] sm:$0xff] %vm1072, %v1332
          %1349 = vst.msk [vmem:[%s338 + $0x8] sm:$0xff] %vm1072, %v1333
          %1350 = vst.msk [vmem:[%s338 + $0x10] sm:$0xff] %vm1072, %v1334
          %1351 = vst.msk [vmem:[%s338 + $0x18] sm:$0xff] %vm1072, %v1335
          %1352 = vst.msk [vmem:[%s338 + $0x20] sm:$0xff] %vm1072, %v1336
          %1353 = vst.msk [vmem:[%s338 + $0x28] sm:$0xff] %vm1072, %v1337
          %1354 = vst.msk [vmem:[%s338 + $0x30] sm:$0xff] %vm1072, %v1338
          %1355 = vst.msk [vmem:[%s338 + $0x38] sm:$0xff] %vm1072, %v1339
          %1356 = vst.msk [vmem:[%s338 + $0x40] sm:$0xff] %vm1072, %v1340
          %1357 = vst.msk [vmem:[%s338 + $0x48] sm:$0xff] %vm1072, %v1341
          %1358 = vst.msk [vmem:[%s338 + $0x50] sm:$0xff] %vm1072, %v1342
          %1359 = vst.msk [vmem:[%s338 + $0x58] sm:$0xff] %vm1072, %v1343
          %1360 = vst.msk [vmem:[%s338 + $0x60] sm:$0xff] %vm1072, %v1344
          %1361 = vst.msk [vmem:[%s338 + $0x68] sm:$0xff] %vm1072, %v1345
          %1362 = vst.msk [vmem:[%s338 + $0x70] sm:$0xff] %vm1072, %v1346
          %1363 = vst.msk [vmem:[%s338 + $0x78] sm:$0xff] %vm1072, %v1347
        $region77: #{gcnnet_forward.5} parent=64 // pred_fallthru
          _
        %s1364 = sld [smem:[#allocation8 + %s40]]
        %s1365 = sld [smem:[#allocation7 + %s40]]
        %s1366 = smul.u32 16, %s1365
        %p1367 = scmp.lt.s32.totalorder %s1364, 1
        %s1368 = scalar_select %p1367, %s1364, 1
        %p1369 = scmp.lt.s32.totalorder %s1366, 47
        %s1370 = scalar_select %p1369, %s1366, 47
        %s1371 = smul.addr %s1368, 48
        %s1372 = sadd.s32 %s1370, %s1371
        %s1373 = smul.addr %s1372, 8
        %s1374 = scalar_lea.vmem %s7, %s1373
        // Predicated region
        $region78: #{gcnnet_forward.5} parent=64 // pred_check
          %p1375 = pneg %p128
        $region79: #{gcnnet_forward.5} parent=64 // pred_check_branch
          %1377 = sbr.rel (%p1375) target = $region81
        $region80: #{gcnnet_forward.5} parent=64 // pred_region
          %s1378 = sld [smem:[#allocation8 + %s40]]
          %s1379 = sld [smem:[#allocation7 + %s40]]
          %s1380 = smul.u32 16, %s1379
        $region81: #{gcnnet_forward.5} parent=64 // pred_fallthru
          _
      $region65: #{gcnnet_forward.5} parent=5 // pred_fallthru
        _
      %p1381 = scmp.le.s32.totalorder 2, %s35
      // Predicated region
      $region82: #{gcnnet_forward.5} parent=5 // pred_check
        %p1382 = pneg %p1381
      $region83: #{gcnnet_forward.5} parent=5 // pred_check_branch
        %1384 = sbr.rel (%p1382) target = $region85
      $region84: #{gcnnet_forward.5} parent=5 // pred_region
        %s1385 = ssub.s32 %s35, 2
        // Predicated region
        $region86: #{gcnnet_forward.5} parent=84 // pred_check
          %p1386 = pneg %p134
        $region87: #{gcnnet_forward.5} parent=84 // pred_check_branch
          %1388 = sbr.rel (%p1386) target = $region89
        $region88: #{gcnnet_forward.5} parent=84 // pred_region
          %s1389 = sld [smem:[#allocation8 + %s41]]
          %s1390 = sld [smem:[#allocation7 + %s41]]
          %s1391 = smul.u32 16, %s1390
          %p1392 = scmp.lt.s32.totalorder %s1389, 1
          %s1393 = scalar_select %p1392, %s1389, 1
          %p1394 = scmp.lt.s32.totalorder %s1391, 47
          %s1395 = scalar_select %p1394, %s1391, 47
          %s1396 = smul.addr %s1393, 48
          %s1397 = sadd.s32 %s1395, %s1396
          %s1398 = smul.addr %s1397, 8
          %s1399 = scalar_lea.vmem %s7, %s1398
        $region89: #{gcnnet_forward.5} parent=84 // pred_fallthru
          _
      $region85: #{gcnnet_forward.5} parent=5 // pred_fallthru
        _
    $region6: #{gcnnet_forward.5} parent=1 // loop_footer
      %s39 = sadd.s32 1, %s35
    $region7: #{gcnnet_forward.5} parent=1 // loop_footer_branch
      %34 = sbr.rel target = $region3
    $region8: #{gcnnet_forward.5} parent=1 // loop_exit
      _

// kernel: gcnnet_forward.7
$region0: #{gcnnet_forward.7}
  #allocation0 [shape = 'u32[]', space=smem, size = 0x4, offset = 0x4, fixed_abs, tag = 'smem constant byte address 0x4 - core index']
  #allocation1 [shape = 'u32[144,128]{1,0:T(1,128)}', space=vmem, size = 0x12000, scoped, tag = 'internal scratch']
  #allocation2 [shape = 'f32[128,1]{1,0:T(8,128)}', space=vmem, size = 0x10000, scoped, tag = 'scratch operand']
  #allocation3 [shape = 'f32[128,1]{1,0:T(8,128)}', space=vmem, size = 0x10000, scoped, tag = 'scratch operand']
  #allocation4 [shape = 'f32[128,8]{1,0:T(8,128)}', space=vmem, size = 0x10000, scoped, tag = 'scratch operand']
  #allocation5 [shape = 'f32[128,8]{1,0:T(8,128)}', space=vmem, size = 0x10000, scoped, tag = 'scratch operand']
  #allocation6 [shape = 's32[1]{0}', space=sflag, size = 0x4, scoped, tag = 'scoped memory for gcnnet_forward.7']
  #allocation7 [shape = 'u8[512]{0}', space=smem, size = 0x200, scoped, tag = 'prefetched SMEM operand 0']
  #allocation8 [shape = 'u8[512]{0}', space=smem, size = 0x200, scoped, tag = 'prefetched SMEM operand 1']
  #allocation9 [shape = 'u8[512]{0}', space=smem, size = 0x200, scoped, tag = 'prefetched SMEM operand 2']
  #allocation10 [shape = 'u8[512]{0}', space=smem, size = 0x200, scoped, tag = 'prefetched SMEM operand 3']
  #allocation11 [shape = 'u8[512]{0}', space=smem, size = 0x200, scoped, tag = 'prefetched SMEM operand 4']
  %s0 = inlined_call_operand.vmem [shape: s32[18], index: 0, kind: input, shape index: {}]
  %s1 = inlined_call_operand.vmem [shape: s32[18], index: 1, kind: input, shape index: {}]
  %s2 = inlined_call_operand.vmem [shape: s32[18], index: 2, kind: input, shape index: {}]
  %s3 = inlined_call_operand.vmem [shape: s32[18], index: 3, kind: input, shape index: {}]
  %s4 = inlined_call_operand.vmem [shape: s32[18], index: 4, kind: input, shape index: {}]
  %s5 = inlined_call_operand.vmem [shape: bf16[2,384,384], index: 5, kind: input, shape index: {}]
  %s6 = inlined_call_operand.vmem [shape: bf16[2,384,8], index: 6, kind: input, shape index: {}]
  %s7 = inlined_call_operand.vmem [shape: f32[384,8], index: 7, kind: output, shape index: {}]
  %s8 = sld [smem:[#allocation0]]
  $region102: #{gcnnet_forward.7} parent=0
    _
  %s10 = ssub.s32 1, %s8
  %s11 = scalar_select 0, %s10, %s8
  %s12 = sshll.u32 %s0, 4
  %s13 = int_to_ptr.vmem [resolvable:$true] %s12
  %15 = dma.vmem_to_smem %s13, 16, [#allocation7], [#allocation6]
  %s16 = sshll.u32 %s1, 4
  %s17 = int_to_ptr.vmem [resolvable:$true] %s16
  %19 = dma.vmem_to_smem %s17, 16, [#allocation8], [#allocation6]
  %s20 = sshll.u32 %s2, 4
  %s21 = int_to_ptr.vmem [resolvable:$true] %s20
  %23 = dma.vmem_to_smem %s21, 16, [#allocation9], [#allocation6]
  %s24 = sshll.u32 %s3, 4
  %s25 = int_to_ptr.vmem [resolvable:$true] %s24
  %27 = dma.vmem_to_smem %s25, 16, [#allocation10], [#allocation6]
  %s28 = sshll.u32 %s4, 4
  %s29 = int_to_ptr.vmem [resolvable:$true] %s28
  %31 = dma.vmem_to_smem %s29, 16, [#allocation11], [#allocation6]
  %32 = dma.done [#allocation6], 80
  %33 = sfence
  $region1: #{gcnnet_forward.7} parent=0
    #allocation12 [shape = 'u8[65536]{0}', space=vmem, size = 0x10000, scoped, tag = 'input window, operand 5']
    loop: start=0, step=1, limit=20
    $region2: #{gcnnet_forward.7} parent=1 // loop_pre_header
      _
    $region3: #{gcnnet_forward.7} parent=1 // loop_header
      %s35 = sphi 0, %s39
      %p36 = scmp.ge.s32.totalorder %s35, 20
      %s55 = sphi 0, %s57
      %s58 = sphi 0, %s55
      %s59 = sphi 0, %s58
      %s75 = sphi 0, %s59
      %s83 = sphi 0, %s85
      %s86 = sphi 0, %s83
      %s87 = sphi 0, %s86
      %s103 = sphi 0, %s87
      %s111 = sphi 0, %s113
      %s114 = sphi 0, %s111
      %s115 = sphi 0, %s114
      %s131 = sphi 0, %s115
    $region4: #{gcnnet_forward.7} parent=1 // loop_header_branch
      %38 = sbr.rel (%p36) target = $region8
    $region5: #{gcnnet_forward.7} parent=1 // loop_body
      %s40 = ssub.s32 %s35, 1
      %s41 = ssub.s32 %s35, 2
      %s42 = sadd.s32 %s35, 1
      %s43 = sld [smem:[#allocation8 + %s35]]
      %s44 = sld [smem:[#allocation7 + %s35]]
      %s45 = sld [smem:[#allocation9 + %s35]]
      %s46 = sld [smem:[#allocation8 + %s42]]
      %s47 = sld [smem:[#allocation7 + %s42]]
      %s48 = sld [smem:[#allocation9 + %s42]]
      %s49 = ssub.s32 %s43, %s46
      %s50 = ssub.s32 %s44, %s47
      %s51 = sor.u32 %s49, %s50
      %s52 = ssub.s32 %s45, %s48
      %s53 = sor.u32 %s51, %s52
      %p54 = scmp.eq.s32.totalorder %s53, 0
      %s56 = sadd.s32 %s55, 1
      %s57 = scalar_select %p54, %s55, %s56
      %p60 = pneg %p54
      %p61 = scmp.eq.s32.totalorder %s35, 17
      %p62 = por %p60, %p61
      %p63 = scmp.ne.s32.totalorder %s55, %s58
      %p64 = scmp.eq.s32.totalorder %s35, 0
      %p65 = por %p63, %p64
      %p66 = scmp.ne.s32.totalorder %s55, %s58
      %p67 = scmp.eq.s32.totalorder %s40, 17
      %p68 = por %p66, %p67
      %p69 = scmp.ne.s32.totalorder %s58, %s59
      %p70 = scmp.eq.s32.totalorder %s40, 0
      %p71 = por %p69, %p70
      %p72 = scmp.ne.s32.totalorder %s58, %s59
      %p73 = scmp.eq.s32.totalorder %s41, 17
      %p74 = por %p72, %p73
      %p76 = scmp.ne.s32.totalorder %s59, %s75
      %p77 = scmp.eq.s32.totalorder %s41, 0
      %p78 = por %p76, %p77
      %s79 = sld [smem:[#allocation8 + %s35]]
      %s80 = sld [smem:[#allocation8 + %s42]]
      %s81 = ssub.s32 %s79, %s80
      %p82 = scmp.eq.s32.totalorder %s81, 0
      %s84 = sadd.s32 %s83, 1
      %s85 = scalar_select %p82, %s83, %s84
      %p88 = pneg %p82
      %p89 = scmp.eq.s32.totalorder %s35, 17
      %p90 = por %p88, %p89
      %p91 = scmp.ne.s32.totalorder %s83, %s86
      %p92 = scmp.eq.s32.totalorder %s35, 0
      %p93 = por %p91, %p92
      %p94 = scmp.ne.s32.totalorder %s83, %s86
      %p95 = scmp.eq.s32.totalorder %s40, 17
      %p96 = por %p94, %p95
      %p97 = scmp.ne.s32.totalorder %s86, %s87
      %p98 = scmp.eq.s32.totalorder %s40, 0
      %p99 = por %p97, %p98
      %p100 = scmp.ne.s32.totalorder %s86, %s87
      %p101 = scmp.eq.s32.totalorder %s41, 17
      %p102 = por %p100, %p101
      %p104 = scmp.ne.s32.totalorder %s87, %s103
      %p105 = scmp.eq.s32.totalorder %s41, 0
      %p106 = por %p104, %p105
      %s107 = sld [smem:[#allocation7 + %s35]]
      %s108 = sld [smem:[#allocation7 + %s42]]
      %s109 = ssub.s32 %s107, %s108
      %p110 = scmp.eq.s32.totalorder %s109, 0
      %s112 = sadd.s32 %s111, 1
      %s113 = scalar_select %p110, %s111, %s112
      %p116 = pneg %p110
      %p117 = scmp.eq.s32.totalorder %s35, 17
      %p118 = por %p116, %p117
      %p119 = scmp.ne.s32.totalorder %s111, %s114
      %p120 = scmp.eq.s32.totalorder %s35, 0
      %p121 = por %p119, %p120
      %p122 = scmp.ne.s32.totalorder %s111, %s114
      %p123 = scmp.eq.s32.totalorder %s40, 17
      %p124 = por %p122, %p123
      %p125 = scmp.ne.s32.totalorder %s114, %s115
      %p126 = scmp.eq.s32.totalorder %s40, 0
      %p127 = por %p125, %p126
      %p128 = scmp.ne.s32.totalorder %s114, %s115
      %p129 = scmp.eq.s32.totalorder %s41, 17
      %p130 = por %p128, %p129
      %p132 = scmp.ne.s32.totalorder %s115, %s131
      %p133 = scmp.eq.s32.totalorder %s41, 0
      %p134 = por %p132, %p133
      %p135 = scmp.le.s32.totalorder 1, %s35
      %p136 = scmp.lt.s32.totalorder %s35, 19
      %p137 = pnand %p135, %p136
      %p138 = pneg %p137
      // Predicated region
      $region9: #{gcnnet_forward.7} parent=5 // pred_check
        _
      $region10: #{gcnnet_forward.7} parent=5 // pred_check_branch
        %140 = sbr.rel (%p137) target = $region12
      $region11: #{gcnnet_forward.7} parent=5 // pred_region
        %s141 = ssub.s32 %s35, 1
      $region12: #{gcnnet_forward.7} parent=5 // pred_fallthru
        _
      %p142 = scmp.lt.s32.totalorder %s35, 18
      // Predicated region
      $region13: #{gcnnet_forward.7} parent=5 // pred_check
        %p143 = pneg %p142
      $region14: #{gcnnet_forward.7} parent=5 // pred_check_branch
        %145 = sbr.rel (%p143) target = $region16
      $region15: #{gcnnet_forward.7} parent=5 // pred_region
        // Predicated region
        $region17: #{gcnnet_forward.7} parent=15 // pred_check
          %p146 = pneg %p65
        $region18: #{gcnnet_forward.7} parent=15 // pred_check_branch
          %148 = sbr.rel (%p146) target = $region20
        $region19: #{gcnnet_forward.7} parent=15 // pred_region
          %s149 = sand.u32 %s55, 1
          %s150 = sand.u32 %s55, 1
          %s151 = smul.addr %s150, 64
          %s152 = scalar_lea.vmem [#allocation12], %s151
          %s153 = sld [smem:[#allocation8 + %s35]]
          %s154 = sld [smem:[#allocation7 + %s35]]
          %s155 = sld [smem:[#allocation9 + %s35]]
          %s156 = smul.u32 16, %s154
          %s157 = smul.addr %s156, 3
          %s158 = sadd.s32 %s155, %s157
          %s159 = smul.addr %s153, 144
          %s160 = sadd.s32 %s158, %s159
          %s161 = smul.addr %s160, 4
          %s162 = scalar_lea.vmem %s5, %s161
          // Predicated region
          $region21: #{gcnnet_forward.7} parent=19 // pred_check
            _
          $region22: #{gcnnet_forward.7} parent=19 // pred_check_branch
            %164 = sbr.rel (0) target = $region24
          $region23: #{gcnnet_forward.7} parent=19 // pred_region
            // Predicated region
            $region25: #{gcnnet_forward.7} parent=23 // pred_check
              _
            $region26: #{gcnnet_forward.7} parent=23 // pred_check_branch
              %166 = sbr.rel target = $region28
            $region27: #{gcnnet_forward.7} parent=23 // pred_region
              // Predicated region
              $region40: #{gcnnet_forward.7} parent=27 // pred_check
                _
              $region41: #{gcnnet_forward.7} parent=27 // pred_check_branch
                %211 = sbr.rel (0) target = $region43
              $region42: #{gcnnet_forward.7} parent=27 // pred_region
                loop: start=0, step=1, limit=1
                $region44: #{gcnnet_forward.7} parent=42 // loop_pre_header
                  _
                $region45: #{gcnnet_forward.7} parent=42 // loop_header
                  %s213 = sphi 0, %s217
                  %p214 = scmp.ge.s32.totalorder %s213, 1
                  %s218 = sphi %s162, %s162
                  %s219 = sphi %s152, %s152
                $region46: #{gcnnet_forward.7} parent=42 // loop_header_branch
                  %216 = sbr.rel (%p214) target = $region50
                $region47: #{gcnnet_forward.7} parent=42 // loop_body
                  _
                $region48: #{gcnnet_forward.7} parent=42 // loop_footer
                  %s217 = sadd.s32 1, %s213
                $region49: #{gcnnet_forward.7} parent=42 // loop_footer_branch
                  %212 = sbr.rel target = $region45
                $region50: #{gcnnet_forward.7} parent=42 // loop_exit
                  _
                loop: start=0, step=1, limit=1
                $region51: #{gcnnet_forward.7} parent=42 // loop_pre_header
                  _
                $region52: #{gcnnet_forward.7} parent=42 // loop_header
                  %s222 = sphi 0, %s226
                  %p223 = scmp.ge.s32.totalorder %s222, 1
                  %s227 = sphi %s162, %s162
                  %s228 = sphi %s152, %s152
                $region53: #{gcnnet_forward.7} parent=42 // loop_header_branch
                  %225 = sbr.rel (%p223) target = $region57
                $region54: #{gcnnet_forward.7} parent=42 // loop_body
                  %v229 = vld [vmem:[%s227] sm:$0xf]
                  %230 = vst [vmem:[%s228] sm:$0xf] %v229
                  %v231 = vld [vmem:[%s227 + $0xc] sm:$0xf]
                  %232 = vst [vmem:[%s228 + $0x4] sm:$0xf] %v231
                  %v233 = vld [vmem:[%s227 + $0x18] sm:$0xf]
                  %234 = vst [vmem:[%s228 + $0x8] sm:$0xf] %v233
                  %v235 = vld [vmem:[%s227 + $0x24] sm:$0xf]
                  %236 = vst [vmem:[%s228 + $0xc] sm:$0xf] %v235
                  %v237 = vld [vmem:[%s227 + $0x30] sm:$0xf]
                  %238 = vst [vmem:[%s228 + $0x10] sm:$0xf] %v237
                  %v239 = vld [vmem:[%s227 + $0x3c] sm:$0xf]
                  %240 = vst [vmem:[%s228 + $0x14] sm:$0xf] %v239
                  %v241 = vld [vmem:[%s227 + $0x48] sm:$0xf]
                  %242 = vst [vmem:[%s228 + $0x18] sm:$0xf] %v241
                  %v243 = vld [vmem:[%s227 + $0x54] sm:$0xf]
                  %244 = vst [vmem:[%s228 + $0x1c] sm:$0xf] %v243
                  %v245 = vld [vmem:[%s227 + $0x60] sm:$0xf]
                  %246 = vst [vmem:[%s228 + $0x20] sm:$0xf] %v245
                  %v247 = vld [vmem:[%s227 + $0x6c] sm:$0xf]
                  %248 = vst [vmem:[%s228 + $0x24] sm:$0xf] %v247
                  %v249 = vld [vmem:[%s227 + $0x78] sm:$0xf]
                  %250 = vst [vmem:[%s228 + $0x28] sm:$0xf] %v249
                  %v251 = vld [vmem:[%s227 + $0x84] sm:$0xf]
                  %252 = vst [vmem:[%s228 + $0x2c] sm:$0xf] %v251
                  %v253 = vld [vmem:[%s227 + $0x90] sm:$0xf]
                  %254 = vst [vmem:[%s228 + $0x30] sm:$0xf] %v253
                  %v255 = vld [vmem:[%s227 + $0x9c] sm:$0xf]
                  %256 = vst [vmem:[%s228 + $0x34] sm:$0xf] %v255
                  %v257 = vld [vmem:[%s227 + $0xa8] sm:$0xf]
                  %258 = vst [vmem:[%s228 + $0x38] sm:$0xf] %v257
                  %v259 = vld [vmem:[%s227 + $0xb4] sm:$0xf]
                  %260 = vst [vmem:[%s228 + $0x3c] sm:$0xf] %v259
                $region55: #{gcnnet_forward.7} parent=42 // loop_footer
                  %s226 = sadd.s32 1, %s222
                $region56: #{gcnnet_forward.7} parent=42 // loop_footer_branch
                  %221 = sbr.rel target = $region52
                $region57: #{gcnnet_forward.7} parent=42 // loop_exit
                  _
              $region43: #{gcnnet_forward.7} parent=27 // pred_fallthru
                _
            $region28: #{gcnnet_forward.7} parent=23 // pred_fallthru
              _
            // Predicated region
            $region29: #{gcnnet_forward.7} parent=23 // pred_check
              _
            $region30: #{gcnnet_forward.7} parent=23 // pred_check_branch
              %168 = sbr.rel (0) target = $region32
            $region31: #{gcnnet_forward.7} parent=23 // pred_region
              loop: start=0, step=1, limit=1
              $region33: #{gcnnet_forward.7} parent=31 // loop_pre_header
                _
              $region34: #{gcnnet_forward.7} parent=31 // loop_header
                %s171 = sphi 0, %s175
                %p172 = scmp.ge.s32.totalorder %s171, 1
                %s176 = sphi %s162, %s162
                %s177 = sphi %s152, %s152
              $region35: #{gcnnet_forward.7} parent=31 // loop_header_branch
                %174 = sbr.rel (%p172) target = $region39
              $region36: #{gcnnet_forward.7} parent=31 // loop_body
                %v178 = vld [vmem:[%s176] sm:$0xf]
                %179 = vst [vmem:[%s177] sm:$0xf] %v178
                %v180 = vld [vmem:[%s176 + $0xc] sm:$0xf]
                %181 = vst [vmem:[%s177 + $0x4] sm:$0xf] %v180
                %v182 = vld [vmem:[%s176 + $0x18] sm:$0xf]
                %183 = vst [vmem:[%s177 + $0x8] sm:$0xf] %v182
                %v184 = vld [vmem:[%s176 + $0x24] sm:$0xf]
                %185 = vst [vmem:[%s177 + $0xc] sm:$0xf] %v184
                %v186 = vld [vmem:[%s176 + $0x30] sm:$0xf]
                %187 = vst [vmem:[%s177 + $0x10] sm:$0xf] %v186
                %v188 = vld [vmem:[%s176 + $0x3c] sm:$0xf]
                %189 = vst [vmem:[%s177 + $0x14] sm:$0xf] %v188
                %v190 = vld [vmem:[%s176 + $0x48] sm:$0xf]
                %191 = vst [vmem:[%s177 + $0x18] sm:$0xf] %v190
                %v192 = vld [vmem:[%s176 + $0x54] sm:$0xf]
                %193 = vst [vmem:[%s177 + $0x1c] sm:$0xf] %v192
                %v194 = vld [vmem:[%s176 + $0x60] sm:$0xf]
                %195 = vst [vmem:[%s177 + $0x20] sm:$0xf] %v194
                %v196 = vld [vmem:[%s176 + $0x6c] sm:$0xf]
                %197 = vst [vmem:[%s177 + $0x24] sm:$0xf] %v196
                %v198 = vld [vmem:[%s176 + $0x78] sm:$0xf]
                %199 = vst [vmem:[%s177 + $0x28] sm:$0xf] %v198
                %v200 = vld [vmem:[%s176 + $0x84] sm:$0xf]
                %201 = vst [vmem:[%s177 + $0x2c] sm:$0xf] %v200
                %v202 = vld [vmem:[%s176 + $0x90] sm:$0xf]
                %203 = vst [vmem:[%s177 + $0x30] sm:$0xf] %v202
                %v204 = vld [vmem:[%s176 + $0x9c] sm:$0xf]
                %205 = vst [vmem:[%s177 + $0x34] sm:$0xf] %v204
                %v206 = vld [vmem:[%s176 + $0xa8] sm:$0xf]
                %207 = vst [vmem:[%s177 + $0x38] sm:$0xf] %v206
                %v208 = vld [vmem:[%s176 + $0xb4] sm:$0xf]
                %209 = vst [vmem:[%s177 + $0x3c] sm:$0xf] %v208
              $region37: #{gcnnet_forward.7} parent=31 // loop_footer
                %s175 = sadd.s32 1, %s171
              $region38: #{gcnnet_forward.7} parent=31 // loop_footer_branch
                %170 = sbr.rel target = $region34
              $region39: #{gcnnet_forward.7} parent=31 // loop_exit
                _
            $region32: #{gcnnet_forward.7} parent=23 // pred_fallthru
              _
          $region24: #{gcnnet_forward.7} parent=19 // pred_fallthru
            _
          %261 = vnop
        $region20: #{gcnnet_forward.7} parent=15 // pred_fallthru
          _
        // Predicated region
        $region58: #{gcnnet_forward.7} parent=15 // pred_check
          %p262 = pneg %p93
        $region59: #{gcnnet_forward.7} parent=15 // pred_check_branch
          %264 = sbr.rel (%p262) target = $region61
        $region60: #{gcnnet_forward.7} parent=15 // pred_region
          %s265 = sld [smem:[#allocation8 + %s35]]
          %p266 = scmp.lt.s32.totalorder %s265, 1
          %s267 = scalar_select %p266, %s265, 1
          %s268 = smul.addr %s267, 48
          %s269 = smul.addr %s268, 4
          %s270 = scalar_lea.vmem %s6, %s269
          %s271 = sld [smem:[#allocation8 + %s35]]
        $region61: #{gcnnet_forward.7} parent=15 // pred_fallthru
          _
      $region16: #{gcnnet_forward.7} parent=5 // pred_fallthru
        _
      %p272 = scmp.le.s32.totalorder 1, %s35
      %p273 = scmp.lt.s32.totalorder %s35, 19
      %p274 = pnand %p272, %p273
      %p275 = pneg %p274
      // Predicated region
      $region62: #{gcnnet_forward.7} parent=5 // pred_check
        _
      $region63: #{gcnnet_forward.7} parent=5 // pred_check_branch
        %277 = sbr.rel (%p274) target = $region65
      $region64: #{gcnnet_forward.7} parent=5 // pred_region
        %s278 = ssub.s32 %s35, 1
        %s279 = sand.u32 %s58, 1
        %s280 = sand.u32 %s58, 1
        %s281 = smul.addr %s280, 64
        %s282 = scalar_lea.vmem [#allocation12], %s281
        // Predicated region
        $region66: #{gcnnet_forward.7} parent=64 // pred_check
          %p283 = pneg %p71
        $region67: #{gcnnet_forward.7} parent=64 // pred_check_branch
          %285 = sbr.rel (%p283) target = $region69
        $region68: #{gcnnet_forward.7} parent=64 // pred_region
          _
        $region69: #{gcnnet_forward.7} parent=64 // pred_fallthru
          _
        %s286 = sand.u32 %s58, 1
        %s287 = sand.u32 %s58, 1
        %s288 = smul.addr %s287, 64
        %s289 = scalar_lea.vmem [#allocation12], %s288
        %p290 = pneg %p71
        %p291 = pneg %p68
        %s292 = sld [smem:[#allocation8 + %s40]]
        %p293 = scmp.lt.s32.totalorder %s292, 1
        %s294 = scalar_select %p293, %s292, 1
        %s295 = smul.addr %s294, 48
        %s296 = smul.addr %s295, 4
        %s297 = scalar_lea.vmem %s6, %s296
        %p298 = pneg %p99
        %p299 = pneg %p96
        %p300 = pneg %p127
        %p301 = pneg %p124
        %s302 = sld [smem:[#allocation7 + %s40]]
        %s303 = smul.u32 16, %s302
        %p304 = scmp.lt.s32.totalorder %s303, 47
        %s305 = scalar_select %p304, %s303, 47
        %s306 = smul.addr %s305, 8
        %s307 = scalar_lea.vmem %s7, %s306
        %s308 = sld [smem:[#allocation8 + %s40]]
        %s309 = sld [smem:[#allocation7 + %s40]]
        %s310 = sld [smem:[#allocation9 + %s40]]
        %s311 = smul.u32 16, %s309
        %s312 = sld [smem:[#allocation8 + %s40]]
        %p313 = scmp.lt.s32.totalorder %s312, 1
        %s314 = scalar_select %p313, %s312, 1
        %s315 = smul.addr %s314, 48
        %s316 = smul.addr %s315, 4
        %s317 = scalar_lea.vmem %s6, %s316
        %s318 = sld [smem:[#allocation8 + %s40]]
        %s319 = sld [smem:[#allocation7 + %s40]]
        %s320 = smul.u32 16, %s319
        %p321 = scmp.lt.s32.totalorder %s320, 47
        %s322 = scalar_select %p321, %s320, 47
        %s323 = smul.addr %s322, 8
        %s324 = scalar_lea.vmem %s7, %s323
        %s325 = sld [smem:[#allocation7 + %s40]]
        %s326 = smul.u32 16, %s325
        %s328 = sld [smem:[#allocation10 + %s40]]
        %p329 = scmp.eq.s32.totalorder %s328, 1
        %s330 = sld [smem:[#allocation11 + %s40]]
        %p331 = scmp.eq.s32.totalorder %s330, 1
        %s332 = sld [smem:[#allocation8 + %s40]]
        %s333 = sld [smem:[#allocation9 + %s40]]
        // Predicated region
        $region70: #{gcnnet_forward.7} parent=64 // pred_check
          %p334 = pneg %p329
        $region71: #{gcnnet_forward.7} parent=64 // pred_check_branch
          %336 = sbr.rel (%p334) target = $region73
        $region72: #{gcnnet_forward.7} parent=64 // pred_region
          %vm337 = vcmask 7168
          %338 = vst.msk [vmem:[#allocation2] sm:$0xff] %vm337, -inf
          %339 = vst.msk [vmem:[#allocation2 + $0x8] sm:$0xff] %vm337, -inf
          %340 = vst.msk [vmem:[#allocation2 + $0x10] sm:$0xff] %vm337, -inf
          %341 = vst.msk [vmem:[#allocation2 + $0x18] sm:$0xff] %vm337, -inf
          %342 = vst.msk [vmem:[#allocation2 + $0x20] sm:$0xff] %vm337, -inf
          %343 = vst.msk [vmem:[#allocation2 + $0x28] sm:$0xff] %vm337, -inf
          %344 = vst.msk [vmem:[#allocation2 + $0x30] sm:$0xff] %vm337, -inf
          %345 = vst.msk [vmem:[#allocation2 + $0x38] sm:$0xff] %vm337, -inf
          %346 = vst.msk [vmem:[#allocation2 + $0x40] sm:$0xff] %vm337, -inf
          %347 = vst.msk [vmem:[#allocation2 + $0x48] sm:$0xff] %vm337, -inf
          %348 = vst.msk [vmem:[#allocation2 + $0x50] sm:$0xff] %vm337, -inf
          %349 = vst.msk [vmem:[#allocation2 + $0x58] sm:$0xff] %vm337, -inf
          %350 = vst.msk [vmem:[#allocation2 + $0x60] sm:$0xff] %vm337, -inf
          %351 = vst.msk [vmem:[#allocation2 + $0x68] sm:$0xff] %vm337, -inf
          %352 = vst.msk [vmem:[#allocation2 + $0x70] sm:$0xff] %vm337, -inf
          %353 = vst.msk [vmem:[#allocation2 + $0x78] sm:$0xff] %vm337, -inf
          %354 = vst.msk [vmem:[#allocation3] sm:$0xff] %vm337, 0.0
          %355 = vst.msk [vmem:[#allocation3 + $0x8] sm:$0xff] %vm337, 0.0
          %356 = vst.msk [vmem:[#allocation3 + $0x10] sm:$0xff] %vm337, 0.0
          %357 = vst.msk [vmem:[#allocation3 + $0x18] sm:$0xff] %vm337, 0.0
          %358 = vst.msk [vmem:[#allocation3 + $0x20] sm:$0xff] %vm337, 0.0
          %359 = vst.msk [vmem:[#allocation3 + $0x28] sm:$0xff] %vm337, 0.0
          %360 = vst.msk [vmem:[#allocation3 + $0x30] sm:$0xff] %vm337, 0.0
          %361 = vst.msk [vmem:[#allocation3 + $0x38] sm:$0xff] %vm337, 0.0
          %362 = vst.msk [vmem:[#allocation3 + $0x40] sm:$0xff] %vm337, 0.0
          %363 = vst.msk [vmem:[#allocation3 + $0x48] sm:$0xff] %vm337, 0.0
          %364 = vst.msk [vmem:[#allocation3 + $0x50] sm:$0xff] %vm337, 0.0
          %365 = vst.msk [vmem:[#allocation3 + $0x58] sm:$0xff] %vm337, 0.0
          %366 = vst.msk [vmem:[#allocation3 + $0x60] sm:$0xff] %vm337, 0.0
          %367 = vst.msk [vmem:[#allocation3 + $0x68] sm:$0xff] %vm337, 0.0
          %368 = vst.msk [vmem:[#allocation3 + $0x70] sm:$0xff] %vm337, 0.0
          %369 = vst.msk [vmem:[#allocation3 + $0x78] sm:$0xff] %vm337, 0.0
          %vm370 = vcmask 64512
          %371 = vst.msk [vmem:[#allocation4] sm:$0xff] %vm370, 0.0
          %372 = vst.msk [vmem:[#allocation4 + $0x8] sm:$0xff] %vm370, 0.0
          %373 = vst.msk [vmem:[#allocation4 + $0x10] sm:$0xff] %vm370, 0.0
          %374 = vst.msk [vmem:[#allocation4 + $0x18] sm:$0xff] %vm370, 0.0
          %375 = vst.msk [vmem:[#allocation4 + $0x20] sm:$0xff] %vm370, 0.0
          %376 = vst.msk [vmem:[#allocation4 + $0x28] sm:$0xff] %vm370, 0.0
          %377 = vst.msk [vmem:[#allocation4 + $0x30] sm:$0xff] %vm370, 0.0
          %378 = vst.msk [vmem:[#allocation4 + $0x38] sm:$0xff] %vm370, 0.0
          %379 = vst.msk [vmem:[#allocation4 + $0x40] sm:$0xff] %vm370, 0.0
          %380 = vst.msk [vmem:[#allocation4 + $0x48] sm:$0xff] %vm370, 0.0
          %381 = vst.msk [vmem:[#allocation4 + $0x50] sm:$0xff] %vm370, 0.0
          %382 = vst.msk [vmem:[#allocation4 + $0x58] sm:$0xff] %vm370, 0.0
          %383 = vst.msk [vmem:[#allocation4 + $0x60] sm:$0xff] %vm370, 0.0
          %384 = vst.msk [vmem:[#allocation4 + $0x68] sm:$0xff] %vm370, 0.0
          %385 = vst.msk [vmem:[#allocation4 + $0x70] sm:$0xff] %vm370, 0.0
          %386 = vst.msk [vmem:[#allocation4 + $0x78] sm:$0xff] %vm370, 0.0
        $region73: #{gcnnet_forward.7} parent=64 // pred_fallthru
          _
        %v387 = vld [vmem:[%s282] sm:$0xf]
        %v388 = vld [vmem:[%s282 + $0x4] sm:$0xf]
        %v389 = vld [vmem:[%s282 + $0x8] sm:$0xf]
        %v390 = vld [vmem:[%s282 + $0xc] sm:$0xf]
        %v391 = vld [vmem:[%s282 + $0x10] sm:$0xf]
        %v392 = vld [vmem:[%s282 + $0x14] sm:$0xf]
        %v393 = vld [vmem:[%s282 + $0x18] sm:$0xf]
        %v394 = vld [vmem:[%s282 + $0x1c] sm:$0xf]
        %v395 = vld [vmem:[%s282 + $0x20] sm:$0xf]
        %v396 = vld [vmem:[%s282 + $0x24] sm:$0xf]
        %v397 = vld [vmem:[%s282 + $0x28] sm:$0xf]
        %v398 = vld [vmem:[%s282 + $0x2c] sm:$0xf]
        %v399 = vld [vmem:[%s282 + $0x30] sm:$0xf]
        %v400 = vld [vmem:[%s282 + $0x34] sm:$0xf]
        %v401 = vld [vmem:[%s282 + $0x38] sm:$0xf]
        %v402 = vld [vmem:[%s282 + $0x3c] sm:$0xf]
        %v403 = vunpack.c.l.bf16 %v387
        %v404 = vunpack.c.l.bf16 %v388
        %v405 = vunpack.c.l.bf16 %v389
        %v406 = vunpack.c.l.bf16 %v390
        %v407 = vunpack.c.l.bf16 %v391
        %v408 = vunpack.c.l.bf16 %v392
        %v409 = vunpack.c.l.bf16 %v393
        %v410 = vunpack.c.l.bf16 %v394
        %v411 = vunpack.c.l.bf16 %v395
        %v412 = vunpack.c.l.bf16 %v396
        %v413 = vunpack.c.l.bf16 %v397
        %v414 = vunpack.c.l.bf16 %v398
        %v415 = vunpack.c.l.bf16 %v399
        %v416 = vunpack.c.l.bf16 %v400
        %v417 = vunpack.c.l.bf16 %v401
        %v418 = vunpack.c.l.bf16 %v402
        %v419 = vld [vmem:[#allocation2] sm:$0xff]
        %v420 = vld [vmem:[#allocation2 + $0x8] sm:$0xff]
        %v421 = vld [vmem:[#allocation2 + $0x10] sm:$0xff]
        %v422 = vld [vmem:[#allocation2 + $0x18] sm:$0xff]
        %v423 = vld [vmem:[#allocation2 + $0x20] sm:$0xff]
        %v424 = vld [vmem:[#allocation2 + $0x28] sm:$0xff]
        %v425 = vld [vmem:[#allocation2 + $0x30] sm:$0xff]
        %v426 = vld [vmem:[#allocation2 + $0x38] sm:$0xff]
        %v427 = vld [vmem:[#allocation2 + $0x40] sm:$0xff]
        %v428 = vld [vmem:[#allocation2 + $0x48] sm:$0xff]
        %v429 = vld [vmem:[#allocation2 + $0x50] sm:$0xff]
        %v430 = vld [vmem:[#allocation2 + $0x58] sm:$0xff]
        %v431 = vld [vmem:[#allocation2 + $0x60] sm:$0xff]
        %v432 = vld [vmem:[#allocation2 + $0x68] sm:$0xff]
        %v433 = vld [vmem:[#allocation2 + $0x70] sm:$0xff]
        %v434 = vld [vmem:[#allocation2 + $0x78] sm:$0xff]
        %435 = vmax.xlane.f32.xlu0 %v403
        %v436 = vpop.xlane.xlu0 %435
        %437 = vmax.xlane.f32.xlu0 %v404
        %v438 = vpop.xlane.xlu0 %437
        %439 = vmax.xlane.f32.xlu0 %v405
        %v440 = vpop.xlane.xlu0 %439
        %441 = vmax.xlane.f32.xlu0 %v406
        %v442 = vpop.xlane.xlu0 %441
        %443 = vmax.xlane.f32.xlu0 %v407
        %v444 = vpop.xlane.xlu0 %443
        %445 = vmax.xlane.f32.xlu0 %v408
        %v446 = vpop.xlane.xlu0 %445
        %447 = vmax.xlane.f32.xlu0 %v409
        %v448 = vpop.xlane.xlu0 %447
        %449 = vmax.xlane.f32.xlu0 %v410
        %v450 = vpop.xlane.xlu0 %449
        %451 = vmax.xlane.f32.xlu0 %v411
        %v452 = vpop.xlane.xlu0 %451
        %453 = vmax.xlane.f32.xlu0 %v412
        %v454 = vpop.xlane.xlu0 %453
        %455 = vmax.xlane.f32.xlu0 %v413
        %v456 = vpop.xlane.xlu0 %455
        %457 = vmax.xlane.f32.xlu0 %v414
        %v458 = vpop.xlane.xlu0 %457
        %459 = vmax.xlane.f32.xlu0 %v415
        %v460 = vpop.xlane.xlu0 %459
        %461 = vmax.xlane.f32.xlu0 %v416
        %v462 = vpop.xlane.xlu0 %461
        %463 = vmax.xlane.f32.xlu0 %v417
        %v464 = vpop.xlane.xlu0 %463
        %465 = vmax.xlane.f32.xlu0 %v418
        %v466 = vpop.xlane.xlu0 %465
        %v467 = vmax.f32 %v419, %v436
        %v468 = vmax.f32 %v420, %v438
        %v469 = vmax.f32 %v421, %v440
        %v470 = vmax.f32 %v422, %v442
        %v471 = vmax.f32 %v423, %v444
        %v472 = vmax.f32 %v424, %v446
        %v473 = vmax.f32 %v425, %v448
        %v474 = vmax.f32 %v426, %v450
        %v475 = vmax.f32 %v427, %v452
        %v476 = vmax.f32 %v428, %v454
        %v477 = vmax.f32 %v429, %v456
        %v478 = vmax.f32 %v430, %v458
        %v479 = vmax.f32 %v431, %v460
        %v480 = vmax.f32 %v432, %v462
        %v481 = vmax.f32 %v433, %v464
        %v482 = vmax.f32 %v434, %v466
        %v483 = vsub.f32 %v419, %v467
        %v484 = vsub.f32 %v420, %v468
        %v485 = vsub.f32 %v421, %v469
        %v486 = vsub.f32 %v422, %v470
        %v487 = vsub.f32 %v423, %v471
        %v488 = vsub.f32 %v424, %v472
        %v489 = vsub.f32 %v425, %v473
        %v490 = vsub.f32 %v426, %v474
        %v491 = vsub.f32 %v427, %v475
        %v492 = vsub.f32 %v428, %v476
        %v493 = vsub.f32 %v429, %v477
        %v494 = vsub.f32 %v430, %v478
        %v495 = vsub.f32 %v431, %v479
        %v496 = vsub.f32 %v432, %v480
        %v497 = vsub.f32 %v433, %v481
        %v498 = vsub.f32 %v434, %v482
        %v499 = vmul.f32 %v483, 1.442695
        %v500 = vpow.pop %v499
        %v501 = vmul.f32 %v484, 1.442695
        %v502 = vpow.pop %v501
        %v503 = vmul.f32 %v485, 1.442695
        %v504 = vpow.pop %v503
        %v505 = vmul.f32 %v486, 1.442695
        %v506 = vpow.pop %v505
        %v507 = vmul.f32 %v487, 1.442695
        %v508 = vpow.pop %v507
        %v509 = vmul.f32 %v488, 1.442695
        %v510 = vpow.pop %v509
        %v511 = vmul.f32 %v489, 1.442695
        %v512 = vpow.pop %v511
        %v513 = vmul.f32 %v490, 1.442695
        %v514 = vpow.pop %v513
        %v515 = vmul.f32 %v491, 1.442695
        %v516 = vpow.pop %v515
        %v517 = vmul.f32 %v492, 1.442695
        %v518 = vpow.pop %v517
        %v519 = vmul.f32 %v493, 1.442695
        %v520 = vpow.pop %v519
        %v521 = vmul.f32 %v494, 1.442695
        %v522 = vpow.pop %v521
        %v523 = vmul.f32 %v495, 1.442695
        %v524 = vpow.pop %v523
        %v525 = vmul.f32 %v496, 1.442695
        %v526 = vpow.pop %v525
        %v527 = vmul.f32 %v497, 1.442695
        %v528 = vpow.pop %v527
        %v529 = vmul.f32 %v498, 1.442695
        %v530 = vpow.pop %v529
        %532 = vset.pattern.permute.xlu0 0
        %533 = vperm.xlu0 %532, %v467
        %v534 = vpop.permute.xlu0 %533
        %537 = vset.pattern.permute.xlu0 0
        %538 = vperm.xlu0 %537, %v468
        %v539 = vpop.permute.xlu0 %538
        %542 = vset.pattern.permute.xlu0 0
        %543 = vperm.xlu0 %542, %v469
        %v544 = vpop.permute.xlu0 %543
        %547 = vset.pattern.permute.xlu0 0
        %548 = vperm.xlu0 %547, %v470
        %v549 = vpop.permute.xlu0 %548
        %552 = vset.pattern.permute.xlu0 0
        %553 = vperm.xlu0 %552, %v471
        %v554 = vpop.permute.xlu0 %553
        %557 = vset.pattern.permute.xlu0 0
        %558 = vperm.xlu0 %557, %v472
        %v559 = vpop.permute.xlu0 %558
        %562 = vset.pattern.permute.xlu0 0
        %563 = vperm.xlu0 %562, %v473
        %v564 = vpop.permute.xlu0 %563
        %567 = vset.pattern.permute.xlu0 0
        %568 = vperm.xlu0 %567, %v474
        %v569 = vpop.permute.xlu0 %568
        %572 = vset.pattern.permute.xlu0 0
        %573 = vperm.xlu0 %572, %v475
        %v574 = vpop.permute.xlu0 %573
        %577 = vset.pattern.permute.xlu0 0
        %578 = vperm.xlu0 %577, %v476
        %v579 = vpop.permute.xlu0 %578
        %582 = vset.pattern.permute.xlu0 0
        %583 = vperm.xlu0 %582, %v477
        %v584 = vpop.permute.xlu0 %583
        %587 = vset.pattern.permute.xlu0 0
        %588 = vperm.xlu0 %587, %v478
        %v589 = vpop.permute.xlu0 %588
        %592 = vset.pattern.permute.xlu0 0
        %593 = vperm.xlu0 %592, %v479
        %v594 = vpop.permute.xlu0 %593
        %597 = vset.pattern.permute.xlu0 0
        %598 = vperm.xlu0 %597, %v480
        %v599 = vpop.permute.xlu0 %598
        %602 = vset.pattern.permute.xlu0 0
        %603 = vperm.xlu0 %602, %v481
        %v604 = vpop.permute.xlu0 %603
        %607 = vset.pattern.permute.xlu0 0
        %608 = vperm.xlu0 %607, %v482
        %v609 = vpop.permute.xlu0 %608
        %v611 = vsub.f32 %v403, %v534
        %v612 = vsub.f32 %v404, %v539
        %v613 = vsub.f32 %v405, %v544
        %v614 = vsub.f32 %v406, %v549
        %v615 = vsub.f32 %v407, %v554
        %v616 = vsub.f32 %v408, %v559
        %v617 = vsub.f32 %v409, %v564
        %v618 = vsub.f32 %v410, %v569
        %v619 = vsub.f32 %v411, %v574
        %v620 = vsub.f32 %v412, %v579
        %v621 = vsub.f32 %v413, %v584
        %v622 = vsub.f32 %v414, %v589
        %v623 = vsub.f32 %v415, %v594
        %v624 = vsub.f32 %v416, %v599
        %v625 = vsub.f32 %v417, %v604
        %v626 = vsub.f32 %v418, %v609
        %v627 = vmul.f32 %v611, 1.442695
        %v628 = vpow.pop %v627
        %v629 = vmul.f32 %v612, 1.442695
        %v630 = vpow.pop %v629
        %v631 = vmul.f32 %v613, 1.442695
        %v632 = vpow.pop %v631
        %v633 = vmul.f32 %v614, 1.442695
        %v634 = vpow.pop %v633
        %v635 = vmul.f32 %v615, 1.442695
        %v636 = vpow.pop %v635
        %v637 = vmul.f32 %v616, 1.442695
        %v638 = vpow.pop %v637
        %v639 = vmul.f32 %v617, 1.442695
        %v640 = vpow.pop %v639
        %v641 = vmul.f32 %v618, 1.442695
        %v642 = vpow.pop %v641
        %v643 = vmul.f32 %v619, 1.442695
        %v644 = vpow.pop %v643
        %v645 = vmul.f32 %v620, 1.442695
        %v646 = vpow.pop %v645
        %v647 = vmul.f32 %v621, 1.442695
        %v648 = vpow.pop %v647
        %v649 = vmul.f32 %v622, 1.442695
        %v650 = vpow.pop %v649
        %v651 = vmul.f32 %v623, 1.442695
        %v652 = vpow.pop %v651
        %v653 = vmul.f32 %v624, 1.442695
        %v654 = vpow.pop %v653
        %v655 = vmul.f32 %v625, 1.442695
        %v656 = vpow.pop %v655
        %v657 = vmul.f32 %v626, 1.442695
        %v658 = vpow.pop %v657
        %v659 = vld [vmem:[#allocation3] sm:$0xff]
        %v660 = vld [vmem:[#allocation3 + $0x8] sm:$0xff]
        %v661 = vld [vmem:[#allocation3 + $0x10] sm:$0xff]
        %v662 = vld [vmem:[#allocation3 + $0x18] sm:$0xff]
        %v663 = vld [vmem:[#allocation3 + $0x20] sm:$0xff]
        %v664 = vld [vmem:[#allocation3 + $0x28] sm:$0xff]
        %v665 = vld [vmem:[#allocation3 + $0x30] sm:$0xff]
        %v666 = vld [vmem:[#allocation3 + $0x38] sm:$0xff]
        %v667 = vld [vmem:[#allocation3 + $0x40] sm:$0xff]
        %v668 = vld [vmem:[#allocation3 + $0x48] sm:$0xff]
        %v669 = vld [vmem:[#allocation3 + $0x50] sm:$0xff]
        %v670 = vld [vmem:[#allocation3 + $0x58] sm:$0xff]
        %v671 = vld [vmem:[#allocation3 + $0x60] sm:$0xff]
        %v672 = vld [vmem:[#allocation3 + $0x68] sm:$0xff]
        %v673 = vld [vmem:[#allocation3 + $0x70] sm:$0xff]
        %v674 = vld [vmem:[#allocation3 + $0x78] sm:$0xff]
        %v675 = vmul.f32 %v500, %v659
        %v676 = vmul.f32 %v502, %v660
        %v677 = vmul.f32 %v504, %v661
        %v678 = vmul.f32 %v506, %v662
        %v679 = vmul.f32 %v508, %v663
        %v680 = vmul.f32 %v510, %v664
        %v681 = vmul.f32 %v512, %v665
        %v682 = vmul.f32 %v514, %v666
        %v683 = vmul.f32 %v516, %v667
        %v684 = vmul.f32 %v518, %v668
        %v685 = vmul.f32 %v520, %v669
        %v686 = vmul.f32 %v522, %v670
        %v687 = vmul.f32 %v524, %v671
        %v688 = vmul.f32 %v526, %v672
        %v689 = vmul.f32 %v528, %v673
        %v690 = vmul.f32 %v530, %v674
        %691 = vadd.xlane.f32.xlu0 %v628
        %v692 = vpop.xlane.xlu0 %691
        %693 = vadd.xlane.f32.xlu0 %v630
        %v694 = vpop.xlane.xlu0 %693
        %695 = vadd.xlane.f32.xlu0 %v632
        %v696 = vpop.xlane.xlu0 %695
        %697 = vadd.xlane.f32.xlu0 %v634
        %v698 = vpop.xlane.xlu0 %697
        %699 = vadd.xlane.f32.xlu0 %v636
        %v700 = vpop.xlane.xlu0 %699
        %701 = vadd.xlane.f32.xlu0 %v638
        %v702 = vpop.xlane.xlu0 %701
        %703 = vadd.xlane.f32.xlu0 %v640
        %v704 = vpop.xlane.xlu0 %703
        %705 = vadd.xlane.f32.xlu0 %v642
        %v706 = vpop.xlane.xlu0 %705
        %707 = vadd.xlane.f32.xlu0 %v644
        %v708 = vpop.xlane.xlu0 %707
        %709 = vadd.xlane.f32.xlu0 %v646
        %v710 = vpop.xlane.xlu0 %709
        %711 = vadd.xlane.f32.xlu0 %v648
        %v712 = vpop.xlane.xlu0 %711
        %713 = vadd.xlane.f32.xlu0 %v650
        %v714 = vpop.xlane.xlu0 %713
        %715 = vadd.xlane.f32.xlu0 %v652
        %v716 = vpop.xlane.xlu0 %715
        %717 = vadd.xlane.f32.xlu0 %v654
        %v718 = vpop.xlane.xlu0 %717
        %719 = vadd.xlane.f32.xlu0 %v656
        %v720 = vpop.xlane.xlu0 %719
        %721 = vadd.xlane.f32.xlu0 %v658
        %v722 = vpop.xlane.xlu0 %721
        %v723 = vadd.f32 %v675, %v692
        %v724 = vadd.f32 %v676, %v694
        %v725 = vadd.f32 %v677, %v696
        %v726 = vadd.f32 %v678, %v698
        %v727 = vadd.f32 %v679, %v700
        %v728 = vadd.f32 %v680, %v702
        %v729 = vadd.f32 %v681, %v704
        %v730 = vadd.f32 %v682, %v706
        %v731 = vadd.f32 %v683, %v708
        %v732 = vadd.f32 %v684, %v710
        %v733 = vadd.f32 %v685, %v712
        %v734 = vadd.f32 %v686, %v714
        %v735 = vadd.f32 %v687, %v716
        %v736 = vadd.f32 %v688, %v718
        %v737 = vadd.f32 %v689, %v720
        %v738 = vadd.f32 %v690, %v722
        %vm739 = vcmask 7168
        %740 = vst.msk [vmem:[#allocation3] sm:$0xff] %vm739, %v723
        %741 = vst.msk [vmem:[#allocation3 + $0x8] sm:$0xff] %vm739, %v724
        %742 = vst.msk [vmem:[#allocation3 + $0x10] sm:$0xff] %vm739, %v725
        %743 = vst.msk [vmem:[#allocation3 + $0x18] sm:$0xff] %vm739, %v726
        %744 = vst.msk [vmem:[#allocation3 + $0x20] sm:$0xff] %vm739, %v727
        %745 = vst.msk [vmem:[#allocation3 + $0x28] sm:$0xff] %vm739, %v728
        %746 = vst.msk [vmem:[#allocation3 + $0x30] sm:$0xff] %vm739, %v729
        %747 = vst.msk [vmem:[#allocation3 + $0x38] sm:$0xff] %vm739, %v730
        %748 = vst.msk [vmem:[#allocation3 + $0x40] sm:$0xff] %vm739, %v731
        %749 = vst.msk [vmem:[#allocation3 + $0x48] sm:$0xff] %vm739, %v732
        %750 = vst.msk [vmem:[#allocation3 + $0x50] sm:$0xff] %vm739, %v733
        %751 = vst.msk [vmem:[#allocation3 + $0x58] sm:$0xff] %vm739, %v734
        %752 = vst.msk [vmem:[#allocation3 + $0x60] sm:$0xff] %vm739, %v735
        %753 = vst.msk [vmem:[#allocation3 + $0x68] sm:$0xff] %vm739, %v736
        %754 = vst.msk [vmem:[#allocation3 + $0x70] sm:$0xff] %vm739, %v737
        %755 = vst.msk [vmem:[#allocation3 + $0x78] sm:$0xff] %vm739, %v738
        %s756 = smul.u32 %s333, 128
        %s757 = sshra.s32 %s756, 3
        %s758 = sand.u32 %s756, 7
        %s759 = smul.addr %s757, 4
        %s760 = scalar_lea.vmem %s317, %s759
        %v761 = vld [vmem:[%s760] sm:$0xf]
        %v762 = vld [vmem:[%s760 + $0x4] sm:$0xf]
        %v763 = vld [vmem:[%s760 + $0x8] sm:$0xf]
        %v764 = vld [vmem:[%s760 + $0xc] sm:$0xf]
        %v765 = vld [vmem:[%s760 + $0x10] sm:$0xf]
        %v766 = vld [vmem:[%s760 + $0x14] sm:$0xf]
        %v767 = vld [vmem:[%s760 + $0x18] sm:$0xf]
        %v768 = vld [vmem:[%s760 + $0x1c] sm:$0xf]
        %v769 = vld [vmem:[%s760 + $0x20] sm:$0xf]
        %v770 = vld [vmem:[%s760 + $0x24] sm:$0xf]
        %v771 = vld [vmem:[%s760 + $0x28] sm:$0xf]
        %v772 = vld [vmem:[%s760 + $0x2c] sm:$0xf]
        %v773 = vld [vmem:[%s760 + $0x30] sm:$0xf]
        %v774 = vld [vmem:[%s760 + $0x34] sm:$0xf]
        %v775 = vld [vmem:[%s760 + $0x38] sm:$0xf]
        %v776 = vld [vmem:[%s760 + $0x3c] sm:$0xf]
        %v777 = vld [vmem:[#allocation4] sm:$0xff]
        %v778 = vld [vmem:[#allocation4 + $0x8] sm:$0xff]
        %v779 = vld [vmem:[#allocation4 + $0x10] sm:$0xff]
        %v780 = vld [vmem:[#allocation4 + $0x18] sm:$0xff]
        %v781 = vld [vmem:[#allocation4 + $0x20] sm:$0xff]
        %v782 = vld [vmem:[#allocation4 + $0x28] sm:$0xff]
        %v783 = vld [vmem:[#allocation4 + $0x30] sm:$0xff]
        %v784 = vld [vmem:[#allocation4 + $0x38] sm:$0xff]
        %v785 = vld [vmem:[#allocation4 + $0x40] sm:$0xff]
        %v786 = vld [vmem:[#allocation4 + $0x48] sm:$0xff]
        %v787 = vld [vmem:[#allocation4 + $0x50] sm:$0xff]
        %v788 = vld [vmem:[#allocation4 + $0x58] sm:$0xff]
        %v789 = vld [vmem:[#allocation4 + $0x60] sm:$0xff]
        %v790 = vld [vmem:[#allocation4 + $0x68] sm:$0xff]
        %v791 = vld [vmem:[#allocation4 + $0x70] sm:$0xff]
        %v792 = vld [vmem:[#allocation4 + $0x78] sm:$0xff]
        %794 = vset.pattern.permute.xlu0 0
        %795 = vperm.xlu0 %794, %v500
        %v796 = vpop.permute.xlu0 %795
        %799 = vset.pattern.permute.xlu0 0
        %800 = vperm.xlu0 %799, %v502
        %v801 = vpop.permute.xlu0 %800
        %804 = vset.pattern.permute.xlu0 0
        %805 = vperm.xlu0 %804, %v504
        %v806 = vpop.permute.xlu0 %805
        %809 = vset.pattern.permute.xlu0 0
        %810 = vperm.xlu0 %809, %v506
        %v811 = vpop.permute.xlu0 %810
        %814 = vset.pattern.permute.xlu0 0
        %815 = vperm.xlu0 %814, %v508
        %v816 = vpop.permute.xlu0 %815
        %819 = vset.pattern.permute.xlu0 0
        %820 = vperm.xlu0 %819, %v510
        %v821 = vpop.permute.xlu0 %820
        %824 = vset.pattern.permute.xlu0 0
        %825 = vperm.xlu0 %824, %v512
        %v826 = vpop.permute.xlu0 %825
        %829 = vset.pattern.permute.xlu0 0
        %830 = vperm.xlu0 %829, %v514
        %v831 = vpop.permute.xlu0 %830
        %834 = vset.pattern.permute.xlu0 0
        %835 = vperm.xlu0 %834, %v516
        %v836 = vpop.permute.xlu0 %835
        %839 = vset.pattern.permute.xlu0 0
        %840 = vperm.xlu0 %839, %v518
        %v841 = vpop.permute.xlu0 %840
        %844 = vset.pattern.permute.xlu0 0
        %845 = vperm.xlu0 %844, %v520
        %v846 = vpop.permute.xlu0 %845
        %849 = vset.pattern.permute.xlu0 0
        %850 = vperm.xlu0 %849, %v522
        %v851 = vpop.permute.xlu0 %850
        %854 = vset.pattern.permute.xlu0 0
        %855 = vperm.xlu0 %854, %v524
        %v856 = vpop.permute.xlu0 %855
        %859 = vset.pattern.permute.xlu0 0
        %860 = vperm.xlu0 %859, %v526
        %v861 = vpop.permute.xlu0 %860
        %864 = vset.pattern.permute.xlu0 0
        %865 = vperm.xlu0 %864, %v528
        %v866 = vpop.permute.xlu0 %865
        %869 = vset.pattern.permute.xlu0 0
        %870 = vperm.xlu0 %869, %v530
        %v871 = vpop.permute.xlu0 %870
        %v873 = vmul.f32 %v796, %v777
        %v874 = vmul.f32 %v801, %v778
        %v875 = vmul.f32 %v806, %v779
        %v876 = vmul.f32 %v811, %v780
        %v877 = vmul.f32 %v816, %v781
        %v878 = vmul.f32 %v821, %v782
        %v879 = vmul.f32 %v826, %v783
        %v880 = vmul.f32 %v831, %v784
        %v881 = vmul.f32 %v836, %v785
        %v882 = vmul.f32 %v841, %v786
        %v883 = vmul.f32 %v846, %v787
        %v884 = vmul.f32 %v851, %v788
        %v885 = vmul.f32 %v856, %v789
        %v886 = vmul.f32 %v861, %v790
        %v887 = vmul.f32 %v866, %v791
        %v888 = vmul.f32 %v871, %v792
        %v889 = vpack.c.bf16 %v630, %v628
        %v890 = vpack.c.bf16 %v634, %v632
        %v891 = vpack.c.bf16 %v638, %v636
        %v892 = vpack.c.bf16 %v642, %v640
        %v893 = vpack.c.bf16 %v646, %v644
        %v894 = vpack.c.bf16 %v650, %v648
        %v895 = vpack.c.bf16 %v654, %v652
        %v896 = vpack.c.bf16 %v658, %v656
        %v913 = vunpack.c.l.b16 %v761
        %v914 = vunpack.c.l.b16 %v762
        %v915 = vunpack.c.l.b16 %v763
        %v916 = vunpack.c.l.b16 %v764
        %v917 = vunpack.c.l.b16 %v765
        %v918 = vunpack.c.l.b16 %v766
        %v919 = vunpack.c.l.b16 %v767
        %v920 = vunpack.c.l.b16 %v768
        %v921 = vunpack.c.l.b16 %v769
        %v922 = vunpack.c.l.b16 %v770
        %v923 = vunpack.c.l.b16 %v771
        %v924 = vunpack.c.l.b16 %v772
        %v925 = vunpack.c.l.b16 %v773
        %v926 = vunpack.c.l.b16 %v774
        %v927 = vunpack.c.l.b16 %v775
        %v928 = vunpack.c.l.b16 %v776
        %v929 = vpack.c.b16 %v914, %v913
        %v930 = vpack.c.b16 %v916, %v915
        %v931 = vpack.c.b16 %v918, %v917
        %v932 = vpack.c.b16 %v920, %v919
        %v933 = vpack.c.b16 %v922, %v921
        %v934 = vpack.c.b16 %v924, %v923
        %v935 = vpack.c.b16 %v926, %v925
        %v936 = vpack.c.b16 %v928, %v927
        %945 = vmatprep.subr.bf16.mxu0 0
        %946 = vmatpush1.bf16.msra.mxu0 %v929
        %947 = vmatprep.subr.bf16.mxu0 0
        %948 = vmatpush1.bf16.msra.mxu0 %v930
        %949 = vmatprep.subr.bf16.mxu0 0
        %950 = vmatpush1.bf16.msra.mxu0 %v931
        %951 = vmatprep.subr.bf16.mxu0 0
        %952 = vmatpush1.bf16.msra.mxu0 %v932
        %953 = vmatprep.subr.bf16.mxu0 0
        %954 = vmatpush1.bf16.msra.mxu0 %v933
        %955 = vmatprep.subr.bf16.mxu0 0
        %956 = vmatpush1.bf16.msra.mxu0 %v934
        %957 = vmatprep.subr.bf16.mxu0 0
        %958 = vmatpush1.bf16.msra.mxu0 %v935
        %959 = vmatprep.subr.bf16.mxu0 0
        %960 = vmatpush1.bf16.msra.mxu0 %v936
        %961 = vmatprep.subr.bf16.mxu0 0
        %962 = vmatpush1.bf16.msra.mxu0 0
        %963 = vmatprep.subr.bf16.mxu0 0
        %964 = vmatpush1.bf16.msra.mxu0 0
        %965 = vmatprep.subr.bf16.mxu0 0
        %966 = vmatpush1.bf16.msra.mxu0 0
        %967 = vmatprep.subr.bf16.mxu0 0
        %968 = vmatpush1.bf16.msra.mxu0 0
        %969 = vmatprep.subr.bf16.mxu0 0
        %970 = vmatpush1.bf16.msra.mxu0 0
        %971 = vmatprep.subr.bf16.mxu0 0
        %972 = vmatpush1.bf16.msra.mxu0 0
        %973 = vmatprep.subr.bf16.mxu0 0
        %974 = vmatpush1.bf16.msra.mxu0 0
        %975 = vmatprep.subr.bf16.mxu0 0
        %976 = vmatpush1.bf16.msra.mxu0 0
        %977 = vmatprep.mubr.bf16.mxu0 0
        %978 = vmatmul.mubr.bf16.gmra.mrb[0].mxu0 %v889
        %v979 = vpop.f32.mrb[0].mxu0
        %v980 = vadd.f32 0.0, %v979
        %v981 = vpop.f32.mrb[0].mxu0
        %v982 = vpop.f32.mrb[0].mxu0
        %v983 = vadd.f32 0.0, %v982
        %v984 = vpop.f32.mrb[0].mxu0
        %985 = vmatprep.mubr.bf16.mxu0 0
        %986 = vmatmul.mubr.bf16.gmra.mrb[0].mxu0 %v890
        %v987 = vpop.f32.mrb[0].mxu0
        %v988 = vadd.f32 0.0, %v987
        %v989 = vpop.f32.mrb[0].mxu0
        %v990 = vpop.f32.mrb[0].mxu0
        %v991 = vadd.f32 0.0, %v990
        %v992 = vpop.f32.mrb[0].mxu0
        %993 = vmatprep.mubr.bf16.mxu0 0
        %994 = vmatmul.mubr.bf16.gmra.mrb[0].mxu0 %v891
        %v995 = vpop.f32.mrb[0].mxu0
        %v996 = vadd.f32 0.0, %v995
        %v997 = vpop.f32.mrb[0].mxu0
        %v998 = vpop.f32.mrb[0].mxu0
        %v999 = vadd.f32 0.0, %v998
        %v1000 = vpop.f32.mrb[0].mxu0
        %1001 = vmatprep.mubr.bf16.mxu0 0
        %1002 = vmatmul.mubr.bf16.gmra.mrb[0].mxu0 %v892
        %v1003 = vpop.f32.mrb[0].mxu0
        %v1004 = vadd.f32 0.0, %v1003
        %v1005 = vpop.f32.mrb[0].mxu0
        %v1006 = vpop.f32.mrb[0].mxu0
        %v1007 = vadd.f32 0.0, %v1006
        %v1008 = vpop.f32.mrb[0].mxu0
        %1009 = vmatprep.mubr.bf16.mxu0 0
        %1010 = vmatmul.mubr.bf16.gmra.mrb[0].mxu0 %v893
        %v1011 = vpop.f32.mrb[0].mxu0
        %v1012 = vadd.f32 0.0, %v1011
        %v1013 = vpop.f32.mrb[0].mxu0
        %v1014 = vpop.f32.mrb[0].mxu0
        %v1015 = vadd.f32 0.0, %v1014
        %v1016 = vpop.f32.mrb[0].mxu0
        %1017 = vmatprep.mubr.bf16.mxu0 0
        %1018 = vmatmul.mubr.bf16.gmra.mrb[0].mxu0 %v894
        %v1019 = vpop.f32.mrb[0].mxu0
        %v1020 = vadd.f32 0.0, %v1019
        %v1021 = vpop.f32.mrb[0].mxu0
        %v1022 = vpop.f32.mrb[0].mxu0
        %v1023 = vadd.f32 0.0, %v1022
        %v1024 = vpop.f32.mrb[0].mxu0
        %1025 = vmatprep.mubr.bf16.mxu0 0
        %1026 = vmatmul.mubr.bf16.gmra.mrb[0].mxu0 %v895
        %v1027 = vpop.f32.mrb[0].mxu0
        %v1028 = vadd.f32 0.0, %v1027
        %v1029 = vpop.f32.mrb[0].mxu0
        %v1030 = vpop.f32.mrb[0].mxu0
        %v1031 = vadd.f32 0.0, %v1030
        %v1032 = vpop.f32.mrb[0].mxu0
        %1033 = vmatprep.mubr.bf16.mxu0 0
        %1034 = vmatmul.mubr.bf16.gmra.mrb[0].mxu0 %v896
        %v1035 = vpop.f32.mrb[0].mxu0
        %v1036 = vadd.f32 0.0, %v1035
        %v1037 = vpop.f32.mrb[0].mxu0
        %v1038 = vpop.f32.mrb[0].mxu0
        %v1039 = vadd.f32 0.0, %v1038
        %v1040 = vpop.f32.mrb[0].mxu0
        %1041 = vdwg.mxu0
        %v1042 = vadd.f32 %v873, %v980
        %v1043 = vadd.f32 %v874, %v983
        %v1044 = vadd.f32 %v875, %v988
        %v1045 = vadd.f32 %v876, %v991
        %v1046 = vadd.f32 %v877, %v996
        %v1047 = vadd.f32 %v878, %v999
        %v1048 = vadd.f32 %v879, %v1004
        %v1049 = vadd.f32 %v880, %v1007
        %v1050 = vadd.f32 %v881, %v1012
        %v1051 = vadd.f32 %v882, %v1015
        %v1052 = vadd.f32 %v883, %v1020
        %v1053 = vadd.f32 %v884, %v1023
        %v1054 = vadd.f32 %v885, %v1028
        %v1055 = vadd.f32 %v886, %v1031
        %v1056 = vadd.f32 %v887, %v1036
        %v1057 = vadd.f32 %v888, %v1039
        %vm1058 = vcmask 64512
        %1059 = vst.msk [vmem:[#allocation4] sm:$0xff] %vm1058, %v1042
        %1060 = vst.msk [vmem:[#allocation4 + $0x8] sm:$0xff] %vm1058, %v1043
        %1061 = vst.msk [vmem:[#allocation4 + $0x10] sm:$0xff] %vm1058, %v1044
        %1062 = vst.msk [vmem:[#allocation4 + $0x18] sm:$0xff] %vm1058, %v1045
        %1063 = vst.msk [vmem:[#allocation4 + $0x20] sm:$0xff] %vm1058, %v1046
        %1064 = vst.msk [vmem:[#allocation4 + $0x28] sm:$0xff] %vm1058, %v1047
        %1065 = vst.msk [vmem:[#allocation4 + $0x30] sm:$0xff] %vm1058, %v1048
        %1066 = vst.msk [vmem:[#allocation4 + $0x38] sm:$0xff] %vm1058, %v1049
        %1067 = vst.msk [vmem:[#allocation4 + $0x40] sm:$0xff] %vm1058, %v1050
        %1068 = vst.msk [vmem:[#allocation4 + $0x48] sm:$0xff] %vm1058, %v1051
        %1069 = vst.msk [vmem:[#allocation4 + $0x50] sm:$0xff] %vm1058, %v1052
        %1070 = vst.msk [vmem:[#allocation4 + $0x58] sm:$0xff] %vm1058, %v1053
        %1071 = vst.msk [vmem:[#allocation4 + $0x60] sm:$0xff] %vm1058, %v1054
        %1072 = vst.msk [vmem:[#allocation4 + $0x68] sm:$0xff] %vm1058, %v1055
        %1073 = vst.msk [vmem:[#allocation4 + $0x70] sm:$0xff] %vm1058, %v1056
        %1074 = vst.msk [vmem:[#allocation4 + $0x78] sm:$0xff] %vm1058, %v1057
        %1075 = vst.msk [vmem:[#allocation2] sm:$0xff] %vm739, %v467
        %1076 = vst.msk [vmem:[#allocation2 + $0x8] sm:$0xff] %vm739, %v468
        %1077 = vst.msk [vmem:[#allocation2 + $0x10] sm:$0xff] %vm739, %v469
        %1078 = vst.msk [vmem:[#allocation2 + $0x18] sm:$0xff] %vm739, %v470
        %1079 = vst.msk [vmem:[#allocation2 + $0x20] sm:$0xff] %vm739, %v471
        %1080 = vst.msk [vmem:[#allocation2 + $0x28] sm:$0xff] %vm739, %v472
        %1081 = vst.msk [vmem:[#allocation2 + $0x30] sm:$0xff] %vm739, %v473
        %1082 = vst.msk [vmem:[#allocation2 + $0x38] sm:$0xff] %vm739, %v474
        %1083 = vst.msk [vmem:[#allocation2 + $0x40] sm:$0xff] %vm739, %v475
        %1084 = vst.msk [vmem:[#allocation2 + $0x48] sm:$0xff] %vm739, %v476
        %1085 = vst.msk [vmem:[#allocation2 + $0x50] sm:$0xff] %vm739, %v477
        %1086 = vst.msk [vmem:[#allocation2 + $0x58] sm:$0xff] %vm739, %v478
        %1087 = vst.msk [vmem:[#allocation2 + $0x60] sm:$0xff] %vm739, %v479
        %1088 = vst.msk [vmem:[#allocation2 + $0x68] sm:$0xff] %vm739, %v480
        %1089 = vst.msk [vmem:[#allocation2 + $0x70] sm:$0xff] %vm739, %v481
        %1090 = vst.msk [vmem:[#allocation2 + $0x78] sm:$0xff] %vm739, %v482
        // Predicated region
        $region74: #{gcnnet_forward.7} parent=64 // pred_check
          %p1091 = pneg %p331
        $region75: #{gcnnet_forward.7} parent=64 // pred_check_branch
          %1093 = sbr.rel (%p1091) target = $region77
        $region76: #{gcnnet_forward.7} parent=64 // pred_region
          %v1094 = vld [vmem:[#allocation4] sm:$0xff]
          %v1095 = vld [vmem:[#allocation4 + $0x8] sm:$0xff]
          %v1096 = vld [vmem:[#allocation4 + $0x10] sm:$0xff]
          %v1097 = vld [vmem:[#allocation4 + $0x18] sm:$0xff]
          %v1098 = vld [vmem:[#allocation4 + $0x20] sm:$0xff]
          %v1099 = vld [vmem:[#allocation4 + $0x28] sm:$0xff]
          %v1100 = vld [vmem:[#allocation4 + $0x30] sm:$0xff]
          %v1101 = vld [vmem:[#allocation4 + $0x38] sm:$0xff]
          %v1102 = vld [vmem:[#allocation4 + $0x40] sm:$0xff]
          %v1103 = vld [vmem:[#allocation4 + $0x48] sm:$0xff]
          %v1104 = vld [vmem:[#allocation4 + $0x50] sm:$0xff]
          %v1105 = vld [vmem:[#allocation4 + $0x58] sm:$0xff]
          %v1106 = vld [vmem:[#allocation4 + $0x60] sm:$0xff]
          %v1107 = vld [vmem:[#allocation4 + $0x68] sm:$0xff]
          %v1108 = vld [vmem:[#allocation4 + $0x70] sm:$0xff]
          %v1109 = vld [vmem:[#allocation4 + $0x78] sm:$0xff]
          %v1110 = vld [vmem:[#allocation3] sm:$0xff]
          %v1111 = vld [vmem:[#allocation3 + $0x8] sm:$0xff]
          %v1112 = vld [vmem:[#allocation3 + $0x10] sm:$0xff]
          %v1113 = vld [vmem:[#allocation3 + $0x18] sm:$0xff]
          %v1114 = vld [vmem:[#allocation3 + $0x20] sm:$0xff]
          %v1115 = vld [vmem:[#allocation3 + $0x28] sm:$0xff]
          %v1116 = vld [vmem:[#allocation3 + $0x30] sm:$0xff]
          %v1117 = vld [vmem:[#allocation3 + $0x38] sm:$0xff]
          %v1118 = vld [vmem:[#allocation3 + $0x40] sm:$0xff]
          %v1119 = vld [vmem:[#allocation3 + $0x48] sm:$0xff]
          %v1120 = vld [vmem:[#allocation3 + $0x50] sm:$0xff]
          %v1121 = vld [vmem:[#allocation3 + $0x58] sm:$0xff]
          %v1122 = vld [vmem:[#allocation3 + $0x60] sm:$0xff]
          %v1123 = vld [vmem:[#allocation3 + $0x68] sm:$0xff]
          %v1124 = vld [vmem:[#allocation3 + $0x70] sm:$0xff]
          %v1125 = vld [vmem:[#allocation3 + $0x78] sm:$0xff]
          %v1126 = vrcp.pop %v1110
          %v1127 = vrcp.pop %v1111
          %v1128 = vrcp.pop %v1112
          %v1129 = vrcp.pop %v1113
          %v1130 = vrcp.pop %v1114
          %v1131 = vrcp.pop %v1115
          %v1132 = vrcp.pop %v1116
          %v1133 = vrcp.pop %v1117
          %v1134 = vrcp.pop %v1118
          %v1135 = vrcp.pop %v1119
          %v1136 = vrcp.pop %v1120
          %v1137 = vrcp.pop %v1121
          %v1138 = vrcp.pop %v1122
          %v1139 = vrcp.pop %v1123
          %v1140 = vrcp.pop %v1124
          %v1141 = vrcp.pop %v1125
          %1143 = vset.pattern.permute.xlu0 0
          %1144 = vperm.xlu0 %1143, %v1126
          %v1145 = vpop.permute.xlu0 %1144
          %1148 = vset.pattern.permute.xlu0 0
          %1149 = vperm.xlu0 %1148, %v1127
          %v1150 = vpop.permute.xlu0 %1149
          %1153 = vset.pattern.permute.xlu0 0
          %1154 = vperm.xlu0 %1153, %v1128
          %v1155 = vpop.permute.xlu0 %1154
          %1158 = vset.pattern.permute.xlu0 0
          %1159 = vperm.xlu0 %1158, %v1129
          %v1160 = vpop.permute.xlu0 %1159
          %1163 = vset.pattern.permute.xlu0 0
          %1164 = vperm.xlu0 %1163, %v1130
          %v1165 = vpop.permute.xlu0 %1164
          %1168 = vset.pattern.permute.xlu0 0
          %1169 = vperm.xlu0 %1168, %v1131
          %v1170 = vpop.permute.xlu0 %1169
          %1173 = vset.pattern.permute.xlu0 0
          %1174 = vperm.xlu0 %1173, %v1132
          %v1175 = vpop.permute.xlu0 %1174
          %1178 = vset.pattern.permute.xlu0 0
          %1179 = vperm.xlu0 %1178, %v1133
          %v1180 = vpop.permute.xlu0 %1179
          %1183 = vset.pattern.permute.xlu0 0
          %1184 = vperm.xlu0 %1183, %v1134
          %v1185 = vpop.permute.xlu0 %1184
          %1188 = vset.pattern.permute.xlu0 0
          %1189 = vperm.xlu0 %1188, %v1135
          %v1190 = vpop.permute.xlu0 %1189
          %1193 = vset.pattern.permute.xlu0 0
          %1194 = vperm.xlu0 %1193, %v1136
          %v1195 = vpop.permute.xlu0 %1194
          %1198 = vset.pattern.permute.xlu0 0
          %1199 = vperm.xlu0 %1198, %v1137
          %v1200 = vpop.permute.xlu0 %1199
          %1203 = vset.pattern.permute.xlu0 0
          %1204 = vperm.xlu0 %1203, %v1138
          %v1205 = vpop.permute.xlu0 %1204
          %1208 = vset.pattern.permute.xlu0 0
          %1209 = vperm.xlu0 %1208, %v1139
          %v1210 = vpop.permute.xlu0 %1209
          %1213 = vset.pattern.permute.xlu0 0
          %1214 = vperm.xlu0 %1213, %v1140
          %v1215 = vpop.permute.xlu0 %1214
          %1218 = vset.pattern.permute.xlu0 0
          %1219 = vperm.xlu0 %1218, %v1141
          %v1220 = vpop.permute.xlu0 %1219
          %v1222 = vmul.f32 %v1094, %v1145
          %v1223 = vmul.f32 %v1095, %v1150
          %v1224 = vmul.f32 %v1096, %v1155
          %v1225 = vmul.f32 %v1097, %v1160
          %v1226 = vmul.f32 %v1098, %v1165
          %v1227 = vmul.f32 %v1099, %v1170
          %v1228 = vmul.f32 %v1100, %v1175
          %v1229 = vmul.f32 %v1101, %v1180
          %v1230 = vmul.f32 %v1102, %v1185
          %v1231 = vmul.f32 %v1103, %v1190
          %v1232 = vmul.f32 %v1104, %v1195
          %v1233 = vmul.f32 %v1105, %v1200
          %v1234 = vmul.f32 %v1106, %v1205
          %v1235 = vmul.f32 %v1107, %v1210
          %v1236 = vmul.f32 %v1108, %v1215
          %v1237 = vmul.f32 %v1109, %v1220
          %p1238 = scmp.eq.s32.totalorder %s332, 0
          // Predicated region
          $region78: #{gcnnet_forward.7} parent=76 // pred_check
            %p1239 = pneg %p1238
          $region79: #{gcnnet_forward.7} parent=76 // pred_check_branch
            %1241 = sbr.rel (%p1239) target = $region81
          $region80: #{gcnnet_forward.7} parent=76 // pred_region
            %1242 = vst.msk [vmem:[#allocation5] sm:$0xff] %vm1058, %v1222
            %1243 = vst.msk [vmem:[#allocation5 + $0x8] sm:$0xff] %vm1058, %v1223
            %1244 = vst.msk [vmem:[#allocation5 + $0x10] sm:$0xff] %vm1058, %v1224
            %1245 = vst.msk [vmem:[#allocation5 + $0x18] sm:$0xff] %vm1058, %v1225
            %1246 = vst.msk [vmem:[#allocation5 + $0x20] sm:$0xff] %vm1058, %v1226
            %1247 = vst.msk [vmem:[#allocation5 + $0x28] sm:$0xff] %vm1058, %v1227
            %1248 = vst.msk [vmem:[#allocation5 + $0x30] sm:$0xff] %vm1058, %v1228
            %1249 = vst.msk [vmem:[#allocation5 + $0x38] sm:$0xff] %vm1058, %v1229
            %1250 = vst.msk [vmem:[#allocation5 + $0x40] sm:$0xff] %vm1058, %v1230
            %1251 = vst.msk [vmem:[#allocation5 + $0x48] sm:$0xff] %vm1058, %v1231
            %1252 = vst.msk [vmem:[#allocation5 + $0x50] sm:$0xff] %vm1058, %v1232
            %1253 = vst.msk [vmem:[#allocation5 + $0x58] sm:$0xff] %vm1058, %v1233
            %1254 = vst.msk [vmem:[#allocation5 + $0x60] sm:$0xff] %vm1058, %v1234
            %1255 = vst.msk [vmem:[#allocation5 + $0x68] sm:$0xff] %vm1058, %v1235
            %1256 = vst.msk [vmem:[#allocation5 + $0x70] sm:$0xff] %vm1058, %v1236
            %1257 = vst.msk [vmem:[#allocation5 + $0x78] sm:$0xff] %vm1058, %v1237
          $region81: #{gcnnet_forward.7} parent=76 // pred_fallthru
            _
          %p1258 = scmp.gt.s32.totalorder %s332, 0
          // Predicated region
          $region82: #{gcnnet_forward.7} parent=76 // pred_check
            %p1259 = pneg %p1258
          $region83: #{gcnnet_forward.7} parent=76 // pred_check_branch
            %1261 = sbr.rel (%p1259) target = $region85
          $region84: #{gcnnet_forward.7} parent=76 // pred_region
            %v1262 = vld [vmem:[#allocation5] sm:$0xff]
            %v1263 = vld [vmem:[#allocation5 + $0x8] sm:$0xff]
            %v1264 = vld [vmem:[#allocation5 + $0x10] sm:$0xff]
            %v1265 = vld [vmem:[#allocation5 + $0x18] sm:$0xff]
            %v1266 = vld [vmem:[#allocation5 + $0x20] sm:$0xff]
            %v1267 = vld [vmem:[#allocation5 + $0x28] sm:$0xff]
            %v1268 = vld [vmem:[#allocation5 + $0x30] sm:$0xff]
            %v1269 = vld [vmem:[#allocation5 + $0x38] sm:$0xff]
            %v1270 = vld [vmem:[#allocation5 + $0x40] sm:$0xff]
            %v1271 = vld [vmem:[#allocation5 + $0x48] sm:$0xff]
            %v1272 = vld [vmem:[#allocation5 + $0x50] sm:$0xff]
            %v1273 = vld [vmem:[#allocation5 + $0x58] sm:$0xff]
            %v1274 = vld [vmem:[#allocation5 + $0x60] sm:$0xff]
            %v1275 = vld [vmem:[#allocation5 + $0x68] sm:$0xff]
            %v1276 = vld [vmem:[#allocation5 + $0x70] sm:$0xff]
            %v1277 = vld [vmem:[#allocation5 + $0x78] sm:$0xff]
            %v1278 = vadd.f32 %v1262, %v1222
            %v1279 = vadd.f32 %v1263, %v1223
            %v1280 = vadd.f32 %v1264, %v1224
            %v1281 = vadd.f32 %v1265, %v1225
            %v1282 = vadd.f32 %v1266, %v1226
            %v1283 = vadd.f32 %v1267, %v1227
            %v1284 = vadd.f32 %v1268, %v1228
            %v1285 = vadd.f32 %v1269, %v1229
            %v1286 = vadd.f32 %v1270, %v1230
            %v1287 = vadd.f32 %v1271, %v1231
            %v1288 = vadd.f32 %v1272, %v1232
            %v1289 = vadd.f32 %v1273, %v1233
            %v1290 = vadd.f32 %v1274, %v1234
            %v1291 = vadd.f32 %v1275, %v1235
            %v1292 = vadd.f32 %v1276, %v1236
            %v1293 = vadd.f32 %v1277, %v1237
            %1294 = vst.msk [vmem:[#allocation5] sm:$0xff] %vm1058, %v1278
            %1295 = vst.msk [vmem:[#allocation5 + $0x8] sm:$0xff] %vm1058, %v1279
            %1296 = vst.msk [vmem:[#allocation5 + $0x10] sm:$0xff] %vm1058, %v1280
            %1297 = vst.msk [vmem:[#allocation5 + $0x18] sm:$0xff] %vm1058, %v1281
            %1298 = vst.msk [vmem:[#allocation5 + $0x20] sm:$0xff] %vm1058, %v1282
            %1299 = vst.msk [vmem:[#allocation5 + $0x28] sm:$0xff] %vm1058, %v1283
            %1300 = vst.msk [vmem:[#allocation5 + $0x30] sm:$0xff] %vm1058, %v1284
            %1301 = vst.msk [vmem:[#allocation5 + $0x38] sm:$0xff] %vm1058, %v1285
            %1302 = vst.msk [vmem:[#allocation5 + $0x40] sm:$0xff] %vm1058, %v1286
            %1303 = vst.msk [vmem:[#allocation5 + $0x48] sm:$0xff] %vm1058, %v1287
            %1304 = vst.msk [vmem:[#allocation5 + $0x50] sm:$0xff] %vm1058, %v1288
            %1305 = vst.msk [vmem:[#allocation5 + $0x58] sm:$0xff] %vm1058, %v1289
            %1306 = vst.msk [vmem:[#allocation5 + $0x60] sm:$0xff] %vm1058, %v1290
            %1307 = vst.msk [vmem:[#allocation5 + $0x68] sm:$0xff] %vm1058, %v1291
            %1308 = vst.msk [vmem:[#allocation5 + $0x70] sm:$0xff] %vm1058, %v1292
            %1309 = vst.msk [vmem:[#allocation5 + $0x78] sm:$0xff] %vm1058, %v1293
          $region85: #{gcnnet_forward.7} parent=76 // pred_fallthru
            _
          %p1310 = scmp.eq.s32.totalorder %s332, 1
          // Predicated region
          $region86: #{gcnnet_forward.7} parent=76 // pred_check
            %p1311 = pneg %p1310
          $region87: #{gcnnet_forward.7} parent=76 // pred_check_branch
            %1313 = sbr.rel (%p1311) target = $region89
          $region88: #{gcnnet_forward.7} parent=76 // pred_region
            %v1314 = vld [vmem:[#allocation5] sm:$0xff]
            %v1315 = vld [vmem:[#allocation5 + $0x8] sm:$0xff]
            %v1316 = vld [vmem:[#allocation5 + $0x10] sm:$0xff]
            %v1317 = vld [vmem:[#allocation5 + $0x18] sm:$0xff]
            %v1318 = vld [vmem:[#allocation5 + $0x20] sm:$0xff]
            %v1319 = vld [vmem:[#allocation5 + $0x28] sm:$0xff]
            %v1320 = vld [vmem:[#allocation5 + $0x30] sm:$0xff]
            %v1321 = vld [vmem:[#allocation5 + $0x38] sm:$0xff]
            %v1322 = vld [vmem:[#allocation5 + $0x40] sm:$0xff]
            %v1323 = vld [vmem:[#allocation5 + $0x48] sm:$0xff]
            %v1324 = vld [vmem:[#allocation5 + $0x50] sm:$0xff]
            %v1325 = vld [vmem:[#allocation5 + $0x58] sm:$0xff]
            %v1326 = vld [vmem:[#allocation5 + $0x60] sm:$0xff]
            %v1327 = vld [vmem:[#allocation5 + $0x68] sm:$0xff]
            %v1328 = vld [vmem:[#allocation5 + $0x70] sm:$0xff]
            %v1329 = vld [vmem:[#allocation5 + $0x78] sm:$0xff]
            %v1330 = vmul.f32 %v1314, 0.5
            %v1331 = vmul.f32 %v1315, 0.5
            %v1332 = vmul.f32 %v1316, 0.5
            %v1333 = vmul.f32 %v1317, 0.5
            %v1334 = vmul.f32 %v1318, 0.5
            %v1335 = vmul.f32 %v1319, 0.5
            %v1336 = vmul.f32 %v1320, 0.5
            %v1337 = vmul.f32 %v1321, 0.5
            %v1338 = vmul.f32 %v1322, 0.5
            %v1339 = vmul.f32 %v1323, 0.5
            %v1340 = vmul.f32 %v1324, 0.5
            %v1341 = vmul.f32 %v1325, 0.5
            %v1342 = vmul.f32 %v1326, 0.5
            %v1343 = vmul.f32 %v1327, 0.5
            %v1344 = vmul.f32 %v1328, 0.5
            %v1345 = vmul.f32 %v1329, 0.5
            %1346 = vst.msk [vmem:[%s324] sm:$0xff] %vm1058, %v1330
            %1347 = vst.msk [vmem:[%s324 + $0x8] sm:$0xff] %vm1058, %v1331
            %1348 = vst.msk [vmem:[%s324 + $0x10] sm:$0xff] %vm1058, %v1332
            %1349 = vst.msk [vmem:[%s324 + $0x18] sm:$0xff] %vm1058, %v1333
            %1350 = vst.msk [vmem:[%s324 + $0x20] sm:$0xff] %vm1058, %v1334
            %1351 = vst.msk [vmem:[%s324 + $0x28] sm:$0xff] %vm1058, %v1335
            %1352 = vst.msk [vmem:[%s324 + $0x30] sm:$0xff] %vm1058, %v1336
            %1353 = vst.msk [vmem:[%s324 + $0x38] sm:$0xff] %vm1058, %v1337
            %1354 = vst.msk [vmem:[%s324 + $0x40] sm:$0xff] %vm1058, %v1338
            %1355 = vst.msk [vmem:[%s324 + $0x48] sm:$0xff] %vm1058, %v1339
            %1356 = vst.msk [vmem:[%s324 + $0x50] sm:$0xff] %vm1058, %v1340
            %1357 = vst.msk [vmem:[%s324 + $0x58] sm:$0xff] %vm1058, %v1341
            %1358 = vst.msk [vmem:[%s324 + $0x60] sm:$0xff] %vm1058, %v1342
            %1359 = vst.msk [vmem:[%s324 + $0x68] sm:$0xff] %vm1058, %v1343
            %1360 = vst.msk [vmem:[%s324 + $0x70] sm:$0xff] %vm1058, %v1344
            %1361 = vst.msk [vmem:[%s324 + $0x78] sm:$0xff] %vm1058, %v1345
          $region89: #{gcnnet_forward.7} parent=76 // pred_fallthru
            _
        $region77: #{gcnnet_forward.7} parent=64 // pred_fallthru
          _
        %s1362 = sld [smem:[#allocation7 + %s40]]
        %s1363 = smul.u32 16, %s1362
        %p1364 = scmp.lt.s32.totalorder %s1363, 47
        %s1365 = scalar_select %p1364, %s1363, 47
        %s1366 = smul.addr %s1365, 8
        %s1367 = scalar_lea.vmem %s7, %s1366
        // Predicated region
        $region90: #{gcnnet_forward.7} parent=64 // pred_check
          %p1368 = pneg %p124
        $region91: #{gcnnet_forward.7} parent=64 // pred_check_branch
          %1370 = sbr.rel (%p1368) target = $region93
        $region92: #{gcnnet_forward.7} parent=64 // pred_region
          %s1371 = sld [smem:[#allocation7 + %s40]]
          %s1372 = smul.u32 16, %s1371
        $region93: #{gcnnet_forward.7} parent=64 // pred_fallthru
          _
      $region65: #{gcnnet_forward.7} parent=5 // pred_fallthru
        _
      %p1373 = scmp.le.s32.totalorder 2, %s35
      // Predicated region
      $region94: #{gcnnet_forward.7} parent=5 // pred_check
        %p1374 = pneg %p1373
      $region95: #{gcnnet_forward.7} parent=5 // pred_check_branch
        %1376 = sbr.rel (%p1374) target = $region97
      $region96: #{gcnnet_forward.7} parent=5 // pred_region
        %s1377 = ssub.s32 %s35, 2
        // Predicated region
        $region98: #{gcnnet_forward.7} parent=96 // pred_check
          %p1378 = pneg %p130
        $region99: #{gcnnet_forward.7} parent=96 // pred_check_branch
          %1380 = sbr.rel (%p1378) target = $region101
        $region100: #{gcnnet_forward.7} parent=96 // pred_region
          %s1381 = sld [smem:[#allocation7 + %s41]]
          %s1382 = smul.u32 16, %s1381
          %p1383 = scmp.lt.s32.totalorder %s1382, 47
          %s1384 = scalar_select %p1383, %s1382, 47
          %s1385 = smul.addr %s1384, 8
          %s1386 = scalar_lea.vmem %s7, %s1385
        $region101: #{gcnnet_forward.7} parent=96 // pred_fallthru
          _
      $region97: #{gcnnet_forward.7} parent=5 // pred_fallthru
        _
    $region6: #{gcnnet_forward.7} parent=1 // loop_footer
      %s39 = sadd.s32 1, %s35
    $region7: #{gcnnet_forward.7} parent=1 // loop_footer_branch
      %34 = sbr.rel target = $region3
    $region8: #{gcnnet_forward.7} parent=1 // loop_exit
      _

</llo_original>
